<compile_context>
chip_gen: v6e
topology: v6e:2x2x1
jax: 0.10.0
libtpu: 0.0.40
codegen_flags: <defaults>
</compile_context>

<pallas_src>
import math

import jax
import jax.numpy as jnp
from jax import lax
from jax.experimental import pallas as pl
from jax.experimental.pallas import tpu as pltpu


def _fused_decoder_kernel(init_ref, pos_ref, src_ref, mask_ref,
                          wq_ref, wk_ref, wv_ref, wo_ref, w1_ref, w2_ref,
                          vecd_ref, b1_ref, out_ref):
    """One (batch_tile, layer) grid step of the fused decoder stack."""
    layer = pl.program_id(1)

    # Layer 0: seed the resident activation.  init_ref is either (Q, D)
    # (shared tgt, broadcast here instead of materializing (B,Q,D) in HBM) or
    # (bB, Q, D) for the use_pos=False path.  out_ref's block index is constant
    # over the layer axis, so it is the cross-layer VMEM carry.
    @pl.when(layer == 0)
    def _():
        out_ref[...] = jnp.broadcast_to(init_ref[...],
                                        out_ref.shape).astype(out_ref.dtype)

    eps = 1e-5
    bB, Q, D = out_ref.shape
    S = src_ref.shape[1]
    BQ = bB * Q
    bf16 = jnp.bfloat16

    x = out_ref[...].astype(jnp.float32)        # (bB, Q, D) carried activation
    pos = pos_ref[...].astype(jnp.float32)      # (Q, D) shared positional embed
    msk = mask_ref[...].astype(jnp.float32)     # (bB, Q, S) additive mask (bf16 in HBM)

    vd = vecd_ref[0]                            # (9, D) packed f32 vectors
    bq, bk, bv, bo = vd[0:1], vd[1:2], vd[2:3], vd[3:4]
    g1, be1 = vd[4:5], vd[5:6]
    b2, g2, be2 = vd[6:7], vd[7:8], vd[8:9]
    b1 = b1_ref[0]                              # (1, F)

    # ---- projections: batch folded into M, bf16 in / f32 accumulate ----
    # 1/sqrt(D) is pre-folded into wq/bq at weight-stack time.
    q_in = (x + pos[None]).reshape(BQ, D).astype(bf16)
    src2 = src_ref[...].reshape(bB * S, D)      # already bf16
    q = jnp.dot(q_in, wq_ref[0], preferred_element_type=jnp.float32) + bq
    k = jnp.dot(src2, wk_ref[0], preferred_element_type=jnp.float32) + bk
    v = jnp.dot(src2, wv_ref[0], preferred_element_type=jnp.float32) + bv
    # TODO(synk): at production S, add biases after the bf16 cast and S-tile the
    # attention with an online softmax so no full f32 (bB*S,D)/(bB,Q,S)
    # transients exist and the working set fits v7x's 64 MiB VMEM.

    # ---- single-head cross attention (per-batch mask) ----
    qb = q.reshape(bB, Q, D).astype(bf16)
    kb = k.reshape(bB, S, D).astype(bf16)
    vb = v.reshape(bB, S, D).astype(bf16)
    # Contract last dim of q with last dim of k: no k transpose materialized.
    # (These batched matmuls have M = Q only; bulk MXU FLOPs stay in the
    #  folded-M projections/FFN above, so keep bB large.)
    logits = lax.dot_general(qb, kb, (((2,), (2,)), ((0,), (0,))),
                             preferred_element_type=jnp.float32)      # (bB,Q,S)
    logits = logits + msk
    m = jnp.max(logits, axis=-1, keepdims=True)
    p = jnp.exp(logits - m)
    p = p * pl.reciprocal(jnp.sum(p, axis=-1, keepdims=True), approx=True)
    attn = lax.dot_general(p.astype(bf16), vb, (((2,), (1,)), ((0,), (0,))),
                           preferred_element_type=jnp.float32)        # (bB,Q,D)
    attn = jnp.dot(attn.reshape(BQ, D).astype(bf16), wo_ref[0],
                   preferred_element_type=jnp.float32) + bo

    # ---- residual + LayerNorm 1 (f32, single-pass variance) ----
    x1 = x.reshape(BQ, D) + attn
    mu = jnp.mean(x1, axis=-1, keepdims=True)
    var = jnp.maximum(jnp.mean(x1 * x1, axis=-1, keepdims=True) - mu * mu, 0.0)
    x1 = (x1 - mu) * lax.rsqrt(var + eps) * g1 + be1

    # ---- ReLU FFN (bf16 matmuls / f32 accumulate) ----
    h = jnp.maximum(
        jnp.dot(x1.astype(bf16), w1_ref[0],
                preferred_element_type=jnp.float32) + b1, 0.0)
    y = jnp.dot(h.astype(bf16), w2_ref[0],
                preferred_element_type=jnp.float32) + b2

    # ---- residual + LayerNorm 2 (f32, single-pass variance) ----
    x2 = x1 + y
    mu2 = jnp.mean(x2, axis=-1, keepdims=True)
    var2 = jnp.maximum(jnp.mean(x2 * x2, axis=-1, keepdims=True) - mu2 * mu2, 0.0)
    out = (x2 - mu2) * lax.rsqrt(var2 + eps) * g2 + be2

    out_ref[...] = out.reshape(bB, Q, D).astype(out_ref.dtype)


def _tpu_vmem_capacity_bytes():
    """Physical VMEM per TensorCore; falls back to 128 MiB if unavailable."""
    try:
        info = pltpu.get_tpu_info()
        cap = getattr(info, "vmem_capacity_bytes", None)
        if cap:
            return int(cap)
    except Exception:
        pass
    return 128 * 1024 * 1024


def ssn_transformer_decoder(embed, src, mask, layer_params, use_pos=True,
                            batch_block=None):
    """Mirrors SSNTransformerDecoder.forward for the DETR-style decoder layer."""
    B, S, D = src.shape
    bf16 = jnp.bfloat16
    scale = 1.0 / math.sqrt(D)

    if use_pos:
        pos = embed[:, :D].astype(jnp.float32)              # (Q, D), unbatched
        init = embed[:, D:2 * D].astype(jnp.float32)        # (Q, D) tgt; broadcast in-kernel
        Q = init.shape[0]
        init_is_shared = True
    else:
        # TODO(synk): the torch path keeps `tgt = embed` un-expanded; here we
        # require a pre-batched (B, Q, D) embed and use a zero positional embed.
        init = embed.astype(jnp.float32)
        Q = init.shape[1]
        pos = jnp.zeros((Q, D), jnp.float32)
        init_is_shared = False

    L = len(layer_params)
    F_dim = layer_params[0]["w1"].shape[1]

    def stack_f32(name):
        return jnp.stack([p[name] for p in layer_params]).astype(jnp.float32)

    # 1/sqrt(D) folded into wq / bq at stack time (scale applied in f32, then bf16).
    wq = (stack_f32("wq") * scale).astype(bf16)
    wk = stack_f32("wk").astype(bf16)
    wv = stack_f32("wv").astype(bf16)
    wo = stack_f32("wo").astype(bf16)
    w1 = stack_f32("w1").astype(bf16)
    w2 = stack_f32("w2").astype(bf16)
    # Pack the 9 per-layer (D,) vectors into one array -> 1 DMA instead of 9.
    vec_d = jnp.stack([
        jnp.stack([p["bq"] * scale] +
                  [p[n] for n in ("bk", "bv", "bo", "g1", "be1", "b2", "g2", "be2")])
        for p in layer_params]).astype(jnp.float32)          # (L, 9, D)
    b1 = jnp.stack([p["b1"].reshape(1, F_dim) for p in layer_params]
                   ).astype(jnp.float32)                     # (L, 1, F)

    src_bf = src.astype(bf16)        # src only feeds matmuls -> bf16 in HBM
    mask_bf = mask.astype(bf16)      # additive mask as bf16: halves its HBM/VMEM stream

    # Per-chip tuning: ~48 MiB limit + batch sharded across both TCs on v7x
    # (64 MiB physical VMEM); ~96 MiB + one large batch tile on v5e/v6e.
    vmem_cap = _tpu_vmem_capacity_bytes()
    vmem_limit = min(vmem_cap * 3 // 4, 100 * 1024 * 1024)
    if batch_block is None:
        if vmem_cap <= 64 * 1024 * 1024 and B >= 2 and B % 2 == 0:
            batch_block = B // 2     # nb >= 2 so both v7x TensorCores get work
        else:
            batch_block = B          # amortize per-layer weight DMA on v5e/v6e
    bB = batch_block
    assert B % bB == 0
    nb = B // bB

    out_shape = jax.ShapeDtypeStruct((B, Q, D), jnp.float32)

    def run(single_buffer_invariants):
        def spec(shape, index_map, invariant=False):
            # Inputs that never change across the inner (layer) axis don't need
            # double-buffering; Buffered(1) halves their VMEM footprint.
            if invariant and single_buffer_invariants:
                return pl.BlockSpec(shape, index_map,
                                    pipeline_mode=pl.Buffered(1))
            return pl.BlockSpec(shape, index_map)

        batched3 = lambda s, inv=False: spec(s, lambda b, l: (b, 0, 0), inv)
        shared2 = lambda s, inv=False: spec(s, lambda b, l: (0, 0), inv)
        per_layer = lambda s: spec(s, lambda b, l: (l, 0, 0))
        # TODO(synk): if per-layer weight DMA is exposed at production sizes,
        # bump the six per-layer weight specs to pl.Buffered(3) where VMEM allows.

        init_spec = (shared2((Q, D), True) if init_is_shared
                     else batched3((bB, Q, D), True))

        grid_spec = pltpu.PrefetchScalarGridSpec(
            num_scalar_prefetch=0,
            grid=(nb, L),                      # layer axis innermost (the carry)
            in_specs=[
                init_spec,                     # tgt (layer-0 seed)
                shared2((Q, D), True),         # pos, unbatched
                batched3((bB, S, D), True),    # src (bf16)
                batched3((bB, Q, S), True),    # additive attention mask (bf16)
                per_layer((1, D, D)),          # wq (scale folded in)
                per_layer((1, D, D)),          # wk
                per_layer((1, D, D)),          # wv
                per_layer((1, D, D)),          # wo
                per_layer((1, D, F_dim)),      # w1
                per_layer((1, F_dim, D)),      # w2
                per_layer((1, 9, D)),          # packed biases / LN params
                per_layer((1, 1, F_dim)),      # b1
            ],
            out_specs=pl.BlockSpec((bB, Q, D), lambda b, l: (b, 0, 0)),
        )
        out = pl.pallas_call(
            _fused_decoder_kernel,
            out_shape=out_shape,
            grid_spec=grid_spec,
            compiler_params=pltpu.CompilerParams(
                dimension_semantics=("parallel", "arbitrary"),
                vmem_limit_bytes=int(vmem_limit),
            ),
        )(init, pos, src_bf, mask_bf, wq, wk, wv, wo, w1, w2, vec_d, b1)
        return jax.block_until_ready(out)

    try:
        return run(True)
    except Exception:
        # Fallback: default double-buffering (e.g. if pipeline_mode /
        # Buffered(1) is unsupported in this jax build).  Same numerics.
        return run(False)


def _jax_reference(embed, src, mask, layer_params, use_pos=True):
    """Pure-JAX reference mirroring the kernel's bf16-matmul / f32-math scheme."""
    B, S, D = src.shape
    bf16 = jnp.bfloat16
    if use_pos:
        pos = embed[:, :D].astype(jnp.float32)
        tgt = embed[:, D:2 * D]
        x = jnp.broadcast_to(tgt[None], (B,) + tgt.shape).astype(jnp.float32)
    else:
        x = embed.astype(jnp.float32)
        pos = jnp.zeros(x.shape[1:], jnp.float32)
    src_bf = src.astype(bf16)
    mask = mask.astype(jnp.float32)

    def ln(z, g, b):
        mu = z.mean(-1, keepdims=True)
        var = ((z - mu) ** 2).mean(-1, keepdims=True)
        return (z - mu) * lax.rsqrt(var + 1e-5) * g + b

    scale = 1.0 / math.sqrt(D)
    for p in layer_params:
        wq, wk, wv, wo = (p[n].astype(bf16) for n in ("wq", "wk", "wv", "wo"))
        w1, w2 = p["w1"].astype(bf16), p["w2"].astype(bf16)
        q_in = (x + pos[None]).astype(bf16)
        q = jnp.einsum("bqd,de->bqe", q_in, wq,
                       preferred_element_type=jnp.float32) + p["bq"]
        k = jnp.einsum("bsd,de->bse", src_bf, wk,
                       preferred_element_type=jnp.float32) + p["bk"]
        v = jnp.einsum("bsd,de->bse", src_bf, wv,
                       preferred_element_type=jnp.float32) + p["bv"]
        logits = jnp.einsum("bqd,bsd->bqs", (q * scale).astype(bf16),
                            k.astype(bf16),
                            preferred_element_type=jnp.float32) + mask
        a = jax.nn.softmax(logits, axis=-1)
        attn = jnp.einsum("bqs,bsd->bqd", a.astype(bf16), v.astype(bf16),
                          preferred_element_type=jnp.float32)
        attn = jnp.einsum("bqd,de->bqe", attn.astype(bf16), wo,
                          preferred_element_type=jnp.float32) + p["bo"]
        x1 = ln(x + attn, p["g1"], p["be1"])
        h = jnp.maximum(jnp.einsum("bqd,df->bqf", x1.astype(bf16), w1,
                                   preferred_element_type=jnp.float32)
                        + p["b1"], 0.0)
        y = jnp.einsum("bqf,fd->bqd", h.astype(bf16), w2,
                       preferred_element_type=jnp.float32) + p["b2"]
        x = ln(x1 + y, p["g2"], p["be2"])
    return x


def _init_layer_params(key, d_model, d_ff):
    ks = jax.random.split(key, 16)
    s = 1.0 / math.sqrt(d_model)
    sf = 1.0 / math.sqrt(d_ff)
    nrm = lambda k, shape, sc: jax.random.normal(k, shape, jnp.float32) * sc
    return {
        "wq": nrm(ks[0], (d_model, d_model), s),
        "bq": nrm(ks[1], (d_model,), 0.05),
        "wk": nrm(ks[2], (d_model, d_model), s),
        "bk": nrm(ks[3], (d_model,), 0.05),
        "wv": nrm(ks[4], (d_model, d_model), s),
        "bv": nrm(ks[5], (d_model,), 0.05),
        "wo": nrm(ks[6], (d_model, d_model), s),
        "bo": nrm(ks[7], (d_model,), 0.05),
        "g1": 1.0 + nrm(ks[8], (d_model,), 0.05),
        "be1": nrm(ks[9], (d_model,), 0.05),
        "w1": nrm(ks[10], (d_model, d_ff), s),
        "b1": nrm(ks[11], (d_ff,), 0.05),
        "w2": nrm(ks[12], (d_ff, d_model), sf),
        "b2": nrm(ks[13], (d_model,), 0.05),
        "g2": 1.0 + nrm(ks[14], (d_model,), 0.05),
        "be2": nrm(ks[15], (d_model,), 0.05),
    }


if __name__ == "__main__":
    # Small but lane-dense shapes: d_model multiple of 128 for full lanes.
    B, Q, S, D, F_DIM = 2, 16, 16, 128, 256
    NUM_LAYERS = 2

    root = jax.random.PRNGKey(0)
    k_embed, k_src, k_layers = jax.random.split(root, 3)

    embed = jax.random.normal(k_embed, (Q, 2 * D), jnp.float32)  # [Q, 2*d_model]
    src = jax.random.normal(k_src, (B, S, D), jnp.float32)       # [B, S, d_model]
    # Additive attention mask: last 4 source positions masked for all queries.
    mask = jnp.concatenate(
        [jnp.zeros((B, Q, S - 4), jnp.float32),
         jnp.full((B, Q, 4), -1e9, jnp.float32)], axis=-1)

    layer_keys = jax.random.split(k_layers, NUM_LAYERS)
    layer_params = [_init_layer_params(k, D, F_DIM) for k in layer_keys]

    out = ssn_transformer_decoder(embed, src, mask, layer_params, use_pos=True)
    out = jax.block_until_ready(out)

    ref = _jax_reference(embed, src, mask, layer_params, use_pos=True)
    assert out.shape == (B, Q, D)
    max_err = float(jnp.max(jnp.abs(out - ref)))
    assert jnp.allclose(out, ref, atol=3e-2, rtol=3e-2), \
        f"mismatch vs JAX reference, max abs err {max_err}"

    print("KERNEL_OK")
</pallas_src>

<mosaic_0001>
module attributes {stable_mosaic.version = 11 : i64} {
  func.func @_fused_decoder_kernel(%arg0: i32, %arg1: i32, %arg2: memref<16x128xf32, #tpu.memory_space<vmem>>, %arg3: memref<16x128xf32, #tpu.memory_space<vmem>>, %arg4: memref<2x16x128xbf16, #tpu.memory_space<vmem>>, %arg5: memref<2x16x16xbf16, #tpu.memory_space<vmem>>, %arg6: memref<1x128x128xbf16, #tpu.memory_space<vmem>>, %arg7: memref<1x128x128xbf16, #tpu.memory_space<vmem>>, %arg8: memref<1x128x128xbf16, #tpu.memory_space<vmem>>, %arg9: memref<1x128x128xbf16, #tpu.memory_space<vmem>>, %arg10: memref<1x128x256xbf16, #tpu.memory_space<vmem>>, %arg11: memref<1x256x128xbf16, #tpu.memory_space<vmem>>, %arg12: memref<1x9x128xf32, #tpu.memory_space<vmem>>, %arg13: memref<1x1x256xf32, #tpu.memory_space<vmem>>, %arg14: memref<2x16x128xf32, #tpu.memory_space<vmem>>) attributes {dimension_semantics = [#tpu.dimension_semantics<parallel>, #tpu.dimension_semantics<arbitrary>], iteration_bounds = array<i64: 1, 2>, scalar_prefetch = 0 : i64, scratch_operands = 0 : i64, tpu.core_type = #tpu.core_type<tc>, window_params = [{pipeline_mode = #tpu.pipeline_mode<synchronous>, transform_indices = @transform_0, window_bounds = array<i64: 16, 128>}, {pipeline_mode = #tpu.pipeline_mode<synchronous>, transform_indices = @transform_1, window_bounds = array<i64: 16, 128>}, {pipeline_mode = #tpu.pipeline_mode<synchronous>, transform_indices = @transform_2, window_bounds = array<i64: 2, 16, 128>}, {pipeline_mode = #tpu.pipeline_mode<synchronous>, transform_indices = @transform_3, window_bounds = array<i64: 2, 16, 16>}, {transform_indices = @transform_4, window_bounds = array<i64: 1, 128, 128>}, {transform_indices = @transform_5, window_bounds = array<i64: 1, 128, 128>}, {transform_indices = @transform_6, window_bounds = array<i64: 1, 128, 128>}, {transform_indices = @transform_7, window_bounds = array<i64: 1, 128, 128>}, {transform_indices = @transform_8, window_bounds = array<i64: 1, 128, 256>}, {transform_indices = @transform_9, window_bounds = array<i64: 1, 256, 128>}, {transform_indices = @transform_10, window_bounds = array<i64: 1, 9, 128>}, {transform_indices = @transform_11, window_bounds = array<i64: 1, 1, 256>}, {transform_indices = @transform_12, window_bounds = array<i64: 2, 16, 128>}]} {
    %c0_i32 = arith.constant 0 : i32
    %0 = arith.cmpi eq, %arg1, %c0_i32 : i32
    %1 = arith.extui %0 : i1 to i32
    %c0_i32_0 = arith.constant 0 : i32
    %2 = arith.cmpi ne, %1, %c0_i32_0 : i32
    scf.if %2 {
      %c0_60 = arith.constant 0 : index
      %c0_61 = arith.constant 0 : index
      %136 = vector.load %arg2[%c0_60, %c0_61] : memref<16x128xf32, #tpu.memory_space<vmem>>, vector<16x128xf32>
      %137 = vector.shape_cast %136 : vector<16x128xf32> to vector<1x16x128xf32>
      %138 = vector.broadcast %137 : vector<1x16x128xf32> to vector<2x16x128xf32>
      %c0_62 = arith.constant 0 : index
      %c0_63 = arith.constant 0 : index
      %c0_64 = arith.constant 0 : index
      %139 = vector.load %arg14[%c0_62, %c0_63, %c0_64] : memref<2x16x128xf32, #tpu.memory_space<vmem>>, vector<2x16x128xf32>
      tpu.vector_store %arg14[%c0_62, %c0_63, %c0_64], %138 {strides = array<i32>} : memref<2x16x128xf32, #tpu.memory_space<vmem>>, vector<2x16x128xf32>,
    } else {
    }
    %c0 = arith.constant 0 : index
    %c0_1 = arith.constant 0 : index
    %c0_2 = arith.constant 0 : index
    %3 = vector.load %arg14[%c0, %c0_1, %c0_2] : memref<2x16x128xf32, #tpu.memory_space<vmem>>, vector<2x16x128xf32>
    %c0_3 = arith.constant 0 : index
    %c0_4 = arith.constant 0 : index
    %4 = vector.load %arg3[%c0_3, %c0_4] : memref<16x128xf32, #tpu.memory_space<vmem>>, vector<16x128xf32>
    %c0_5 = arith.constant 0 : index
    %c0_6 = arith.constant 0 : index
    %c0_7 = arith.constant 0 : index
    %5 = vector.load %arg5[%c0_5, %c0_6, %c0_7] : memref<2x16x16xbf16, #tpu.memory_space<vmem>>, vector<2x16x16xbf16>
    %6 = arith.extf %5 : vector<2x16x16xbf16> to vector<2x16x16xf32>
    %c0_8 = arith.constant 0 : index
    %c0_9 = arith.constant 0 : index
    %c0_10 = arith.constant 0 : index
    %7 = vector.load %arg12[%c0_8, %c0_9, %c0_10] : memref<1x9x128xf32, #tpu.memory_space<vmem>>, vector<1x9x128xf32>
    %8 = vector.shape_cast %7 : vector<1x9x128xf32> to vector<9x128xf32>
    %9 = vector.extract_strided_slice %8 {offsets = [0, 0], sizes = [1, 128], strides = [1, 1]} : vector<9x128xf32> to vector<1x128xf32>
    %10 = vector.extract_strided_slice %8 {offsets = [1, 0], sizes = [1, 128], strides = [1, 1]} : vector<9x128xf32> to vector<1x128xf32>
    %11 = vector.extract_strided_slice %8 {offsets = [2, 0], sizes = [1, 128], strides = [1, 1]} : vector<9x128xf32> to vector<1x128xf32>
    %12 = vector.extract_strided_slice %8 {offsets = [3, 0], sizes = [1, 128], strides = [1, 1]} : vector<9x128xf32> to vector<1x128xf32>
    %13 = vector.extract_strided_slice %8 {offsets = [4, 0], sizes = [1, 128], strides = [1, 1]} : vector<9x128xf32> to vector<1x128xf32>
    %14 = vector.extract_strided_slice %8 {offsets = [5, 0], sizes = [1, 128], strides = [1, 1]} : vector<9x128xf32> to vector<1x128xf32>
    %15 = vector.extract_strided_slice %8 {offsets = [6, 0], sizes = [1, 128], strides = [1, 1]} : vector<9x128xf32> to vector<1x128xf32>
    %16 = vector.extract_strided_slice %8 {offsets = [7, 0], sizes = [1, 128], strides = [1, 1]} : vector<9x128xf32> to vector<1x128xf32>
    %17 = vector.extract_strided_slice %8 {offsets = [8, 0], sizes = [1, 128], strides = [1, 1]} : vector<9x128xf32> to vector<1x128xf32>
    %c0_11 = arith.constant 0 : index
    %c0_12 = arith.constant 0 : index
    %c0_13 = arith.constant 0 : index
    %18 = vector.load %arg13[%c0_11, %c0_12, %c0_13] : memref<1x1x256xf32, #tpu.memory_space<vmem>>, vector<1x1x256xf32>
    %19 = vector.shape_cast %18 : vector<1x1x256xf32> to vector<1x256xf32>
    %20 = vector.shape_cast %4 : vector<16x128xf32> to vector<1x16x128xf32>
    %21 = vector.broadcast %20 : vector<1x16x128xf32> to vector<2x16x128xf32>
    %22 = arith.addf %3, %21 : vector<2x16x128xf32>
    %23 = vector.shape_cast %22 : vector<2x16x128xf32> to vector<32x128xf32>
    %24 = arith.truncf %23 : vector<32x128xf32> to vector<32x128xbf16>
    %c0_14 = arith.constant 0 : index
    %c0_15 = arith.constant 0 : index
    %c0_16 = arith.constant 0 : index
    %25 = vector.load %arg4[%c0_14, %c0_15, %c0_16] : memref<2x16x128xbf16, #tpu.memory_space<vmem>>, vector<2x16x128xbf16>
    %26 = vector.shape_cast %25 : vector<2x16x128xbf16> to vector<32x128xbf16>
    %c0_17 = arith.constant 0 : index
    %c0_18 = arith.constant 0 : index
    %c0_19 = arith.constant 0 : index
    %27 = vector.load %arg6[%c0_17, %c0_18, %c0_19] : memref<1x128x128xbf16, #tpu.memory_space<vmem>>, vector<1x128x128xbf16>
    %28 = vector.shape_cast %27 : vector<1x128x128xbf16> to vector<128x128xbf16>
    %cst = arith.constant dense<0.000000e+00> : vector<32x128xf32>
    %29 = tpu.matmul %24, %28, %cst {dimension_numbers = #tpu.dot_dimension_numbers<[1], [0], [0], [1], [0, 0, 1, 1], [], []>} : vector<32x128xbf16>, vector<128x128xbf16>, vector<32x128xf32> -> vector<32x128xf32>
    %30 = vector.broadcast %9 : vector<1x128xf32> to vector<32x128xf32>
    %31 = arith.addf %29, %30 : vector<32x128xf32>
    %c0_20 = arith.constant 0 : index
    %c0_21 = arith.constant 0 : index
    %c0_22 = arith.constant 0 : index
    %32 = vector.load %arg7[%c0_20, %c0_21, %c0_22] : memref<1x128x128xbf16, #tpu.memory_space<vmem>>, vector<1x128x128xbf16>
    %33 = vector.shape_cast %32 : vector<1x128x128xbf16> to vector<128x128xbf16>
    %cst_23 = arith.constant dense<0.000000e+00> : vector<32x128xf32>
    %34 = tpu.matmul %26, %33, %cst_23 {dimension_numbers = #tpu.dot_dimension_numbers<[1], [0], [0], [1], [0, 0, 1, 1], [], []>} : vector<32x128xbf16>, vector<128x128xbf16>, vector<32x128xf32> -> vector<32x128xf32>
    %35 = vector.broadcast %10 : vector<1x128xf32> to vector<32x128xf32>
    %36 = arith.addf %34, %35 : vector<32x128xf32>
    %c0_24 = arith.constant 0 : index
    %c0_25 = arith.constant 0 : index
    %c0_26 = arith.constant 0 : index
    %37 = vector.load %arg8[%c0_24, %c0_25, %c0_26] : memref<1x128x128xbf16, #tpu.memory_space<vmem>>, vector<1x128x128xbf16>
    %38 = vector.shape_cast %37 : vector<1x128x128xbf16> to vector<128x128xbf16>
    %cst_27 = arith.constant dense<0.000000e+00> : vector<32x128xf32>
    %39 = tpu.matmul %26, %38, %cst_27 {dimension_numbers = #tpu.dot_dimension_numbers<[1], [0], [0], [1], [0, 0, 1, 1], [], []>} : vector<32x128xbf16>, vector<128x128xbf16>, vector<32x128xf32> -> vector<32x128xf32>
    %40 = vector.broadcast %11 : vector<1x128xf32> to vector<32x128xf32>
    %41 = arith.addf %39, %40 : vector<32x128xf32>
    %42 = vector.shape_cast %31 : vector<32x128xf32> to vector<2x16x128xf32>
    %43 = arith.truncf %42 : vector<2x16x128xf32> to vector<2x16x128xbf16>
    %44 = vector.shape_cast %36 : vector<32x128xf32> to vector<2x16x128xf32>
    %45 = arith.truncf %44 : vector<2x16x128xf32> to vector<2x16x128xbf16>
    %46 = vector.shape_cast %41 : vector<32x128xf32> to vector<2x16x128xf32>
    %47 = arith.truncf %46 : vector<2x16x128xf32> to vector<2x16x128xbf16>
    %cst_28 = arith.constant dense<0.000000e+00> : vector<2x16x16xf32>
    %48 = tpu.matmul %43, %45, %cst_28 {dimension_numbers = #tpu.dot_dimension_numbers<[2], [2], [1], [1], [0, 0, 0, 1, 1, 1], [0], [0]>} : vector<2x16x128xbf16>, vector<2x16x128xbf16>, vector<2x16x16xf32> -> vector<2x16x16xf32>
    %49 = arith.addf %48, %6 : vector<2x16x16xf32>
    %cst_29 = arith.constant dense<0xFF800000> : vector<2x16xf32>
    %50 = vector.multi_reduction <maximumf>, %49, %cst_29 [2] : vector<2x16x16xf32> to vector<2x16xf32>
    %51 = vector.shape_cast %50 : vector<2x16xf32> to vector<2x16x1xf32>
    %52 = vector.broadcast %51 : vector<2x16x1xf32> to vector<2x16x16xf32>
    %53 = arith.subf %49, %52 : vector<2x16x16xf32>
    %54 = math.exp %53 : vector<2x16x16xf32>
    %cst_30 = arith.constant dense<0.000000e+00> : vector<2x16xf32>
    %55 = vector.multi_reduction <add>, %54, %cst_30 [2] : vector<2x16x16xf32> to vector<2x16xf32>
    %56 = vector.shape_cast %55 : vector<2x16xf32> to vector<2x16x1xf32>
    %57 = tpu.reciprocal %56 {approx = true} : vector<2x16x1xf32> -> vector<2x16x1xf32>
    %58 = vector.broadcast %57 : vector<2x16x1xf32> to vector<2x16x16xf32>
    %59 = arith.mulf %54, %58 : vector<2x16x16xf32>
    %60 = arith.truncf %59 : vector<2x16x16xf32> to vector<2x16x16xbf16>
    %cst_31 = arith.constant dense<0.000000e+00> : vector<2x16x128xf32>
    %61 = tpu.matmul %60, %47, %cst_31 {dimension_numbers = #tpu.dot_dimension_numbers<[2], [1], [1], [2], [0, 0, 0, 1, 1, 2], [0], [0]>} : vector<2x16x16xbf16>, vector<2x16x128xbf16>, vector<2x16x128xf32> -> vector<2x16x128xf32>
    %62 = vector.shape_cast %61 : vector<2x16x128xf32> to vector<32x128xf32>
    %63 = arith.truncf %62 : vector<32x128xf32> to vector<32x128xbf16>
    %c0_32 = arith.constant 0 : index
    %c0_33 = arith.constant 0 : index
    %c0_34 = arith.constant 0 : index
    %64 = vector.load %arg9[%c0_32, %c0_33, %c0_34] : memref<1x128x128xbf16, #tpu.memory_space<vmem>>, vector<1x128x128xbf16>
    %65 = vector.shape_cast %64 : vector<1x128x128xbf16> to vector<128x128xbf16>
    %cst_35 = arith.constant dense<0.000000e+00> : vector<32x128xf32>
    %66 = tpu.matmul %63, %65, %cst_35 {dimension_numbers = #tpu.dot_dimension_numbers<[1], [0], [0], [1], [0, 0, 1, 1], [], []>} : vector<32x128xbf16>, vector<128x128xbf16>, vector<32x128xf32> -> vector<32x128xf32>
    %67 = vector.broadcast %12 : vector<1x128xf32> to vector<32x128xf32>
    %68 = arith.addf %66, %67 : vector<32x128xf32>
    %69 = vector.shape_cast %3 : vector<2x16x128xf32> to vector<32x128xf32>
    %70 = arith.addf %69, %68 : vector<32x128xf32>
    %cst_36 = arith.constant dense<0.000000e+00> : vector<32xf32>
    %71 = vector.multi_reduction <add>, %70, %cst_36 [1] : vector<32x128xf32> to vector<32xf32>
    %72 = vector.shape_cast %71 : vector<32xf32> to vector<32x1xf32>
    %cst_37 = arith.constant 1.280000e+02 : f32
    %73 = vector.broadcast %cst_37 : f32 to vector<32x1xf32>
    %74 = arith.divf %72, %73 : vector<32x1xf32>
    %75 = arith.mulf %70, %70 : vector<32x128xf32>
    %cst_38 = arith.constant dense<0.000000e+00> : vector<32xf32>
    %76 = vector.multi_reduction <add>, %75, %cst_38 [1] : vector<32x128xf32> to vector<32xf32>
    %77 = vector.shape_cast %76 : vector<32xf32> to vector<32x1xf32>
    %cst_39 = arith.constant 1.280000e+02 : f32
    %78 = vector.broadcast %cst_39 : f32 to vector<32x1xf32>
    %79 = arith.divf %77, %78 : vector<32x1xf32>
    %80 = arith.mulf %74, %74 : vector<32x1xf32>
    %81 = arith.subf %79, %80 : vector<32x1xf32>
    %cst_40 = arith.constant 0.000000e+00 : f32
    %82 = vector.broadcast %cst_40 : f32 to vector<32x1xf32>
    %83 = arith.maximumf %81, %82 : vector<32x1xf32>
    %84 = vector.broadcast %74 : vector<32x1xf32> to vector<32x128xf32>
    %85 = arith.subf %70, %84 : vector<32x128xf32>
    %cst_41 = arith.constant 9.99999974E-6 : f32
    %86 = vector.broadcast %cst_41 : f32 to vector<32x1xf32>
    %87 = arith.addf %83, %86 : vector<32x1xf32>
    %88 = math.rsqrt %87 : vector<32x1xf32>
    %89 = vector.broadcast %88 : vector<32x1xf32> to vector<32x128xf32>
    %90 = arith.mulf %85, %89 : vector<32x128xf32>
    %91 = vector.broadcast %13 : vector<1x128xf32> to vector<32x128xf32>
    %92 = arith.mulf %90, %91 : vector<32x128xf32>
    %93 = vector.broadcast %14 : vector<1x128xf32> to vector<32x128xf32>
    %94 = arith.addf %92, %93 : vector<32x128xf32>
    %95 = arith.truncf %94 : vector<32x128xf32> to vector<32x128xbf16>
    %c0_42 = arith.constant 0 : index
    %c0_43 = arith.constant 0 : index
    %c0_44 = arith.constant 0 : index
    %96 = vector.load %arg10[%c0_42, %c0_43, %c0_44] : memref<1x128x256xbf16, #tpu.memory_space<vmem>>, vector<1x128x256xbf16>
    %97 = vector.shape_cast %96 : vector<1x128x256xbf16> to vector<128x256xbf16>
    %cst_45 = arith.constant dense<0.000000e+00> : vector<32x256xf32>
    %98 = tpu.matmul %95, %97, %cst_45 {dimension_numbers = #tpu.dot_dimension_numbers<[1], [0], [0], [1], [0, 0, 1, 1], [], []>} : vector<32x128xbf16>, vector<128x256xbf16>, vector<32x256xf32> -> vector<32x256xf32>
    %99 = vector.broadcast %19 : vector<1x256xf32> to vector<32x256xf32>
    %100 = arith.addf %98, %99 : vector<32x256xf32>
    %cst_46 = arith.constant 0.000000e+00 : f32
    %101 = vector.broadcast %cst_46 : f32 to vector<32x256xf32>
    %102 = arith.maximumf %100, %101 : vector<32x256xf32>
    %103 = arith.truncf %102 : vector<32x256xf32> to vector<32x256xbf16>
    %c0_47 = arith.constant 0 : index
    %c0_48 = arith.constant 0 : index
    %c0_49 = arith.constant 0 : index
    %104 = vector.load %arg11[%c0_47, %c0_48, %c0_49] : memref<1x256x128xbf16, #tpu.memory_space<vmem>>, vector<1x256x128xbf16>
    %105 = vector.shape_cast %104 : vector<1x256x128xbf16> to vector<256x128xbf16>
    %cst_50 = arith.constant dense<0.000000e+00> : vector<32x128xf32>
    %106 = tpu.matmul %103, %105, %cst_50 {dimension_numbers = #tpu.dot_dimension_numbers<[1], [0], [0], [1], [0, 0, 1, 1], [], []>} : vector<32x256xbf16>, vector<256x128xbf16>, vector<32x128xf32> -> vector<32x128xf32>
    %107 = vector.broadcast %15 : vector<1x128xf32> to vector<32x128xf32>
    %108 = arith.addf %106, %107 : vector<32x128xf32>
    %109 = arith.addf %94, %108 : vector<32x128xf32>
    %cst_51 = arith.constant dense<0.000000e+00> : vector<32xf32>
    %110 = vector.multi_reduction <add>, %109, %cst_51 [1] : vector<32x128xf32> to vector<32xf32>
    %111 = vector.shape_cast %110 : vector<32xf32> to vector<32x1xf32>
    %cst_52 = arith.constant 1.280000e+02 : f32
    %112 = vector.broadcast %cst_52 : f32 to vector<32x1xf32>
    %113 = arith.divf %111, %112 : vector<32x1xf32>
    %114 = arith.mulf %109, %109 : vector<32x128xf32>
    %cst_53 = arith.constant dense<0.000000e+00> : vector<32xf32>
    %115 = vector.multi_reduction <add>, %114, %cst_53 [1] : vector<32x128xf32> to vector<32xf32>
    %116 = vector.shape_cast %115 : vector<32xf32> to vector<32x1xf32>
    %cst_54 = arith.constant 1.280000e+02 : f32
    %117 = vector.broadcast %cst_54 : f32 to vector<32x1xf32>
    %118 = arith.divf %116, %117 : vector<32x1xf32>
    %119 = arith.mulf %113, %113 : vector<32x1xf32>
    %120 = arith.subf %118, %119 : vector<32x1xf32>
    %cst_55 = arith.constant 0.000000e+00 : f32
    %121 = vector.broadcast %cst_55 : f32 to vector<32x1xf32>
    %122 = arith.maximumf %120, %121 : vector<32x1xf32>
    %123 = vector.broadcast %113 : vector<32x1xf32> to vector<32x128xf32>
    %124 = arith.subf %109, %123 : vector<32x128xf32>
    %cst_56 = arith.constant 9.99999974E-6 : f32
    %125 = vector.broadcast %cst_56 : f32 to vector<32x1xf32>
    %126 = arith.addf %122, %125 : vector<32x1xf32>
    %127 = math.rsqrt %126 : vector<32x1xf32>
    %128 = vector.broadcast %127 : vector<32x1xf32> to vector<32x128xf32>
    %129 = arith.mulf %124, %128 : vector<32x128xf32>
    %130 = vector.broadcast %16 : vector<1x128xf32> to vector<32x128xf32>
    %131 = arith.mulf %129, %130 : vector<32x128xf32>
    %132 = vector.broadcast %17 : vector<1x128xf32> to vector<32x128xf32>
    %133 = arith.addf %131, %132 : vector<32x128xf32>
    %134 = vector.shape_cast %133 : vector<32x128xf32> to vector<2x16x128xf32>
    %c0_57 = arith.constant 0 : index
    %c0_58 = arith.constant 0 : index
    %c0_59 = arith.constant 0 : index
    %135 = vector.load %arg14[%c0_57, %c0_58, %c0_59] : memref<2x16x128xf32, #tpu.memory_space<vmem>>, vector<2x16x128xf32>
    tpu.vector_store %arg14[%c0_57, %c0_58, %c0_59], %134 {strides = array<i32>} : memref<2x16x128xf32, #tpu.memory_space<vmem>>, vector<2x16x128xf32>,
    return
  }
  func.func @transform_0(%arg0: i32, %arg1: i32) -> (i32, i32) {
    %c0_i32 = arith.constant 0 : i32
    %c0_i32_0 = arith.constant 0 : i32
    %c0_i32_1 = arith.constant 0 : i32
    return %c0_i32, %c0_i32_0 : i32, i32
  }
  func.func @transform_1(%arg0: i32, %arg1: i32) -> (i32, i32) {
    %c0_i32 = arith.constant 0 : i32
    %c0_i32_0 = arith.constant 0 : i32
    %c0_i32_1 = arith.constant 0 : i32
    return %c0_i32, %c0_i32_0 : i32, i32
  }
  func.func @transform_2(%arg0: i32, %arg1: i32) -> (i32, i32, i32) {
    %c0_i32 = arith.constant 0 : i32
    %c0_i32_0 = arith.constant 0 : i32
    %c0_i32_1 = arith.constant 0 : i32
    return %arg0, %c0_i32, %c0_i32_0 : i32, i32, i32
  }
  func.func @transform_3(%arg0: i32, %arg1: i32) -> (i32, i32, i32) {
    %c0_i32 = arith.constant 0 : i32
    %c0_i32_0 = arith.constant 0 : i32
    %c0_i32_1 = arith.constant 0 : i32
    return %arg0, %c0_i32, %c0_i32_0 : i32, i32, i32
  }
  func.func @transform_4(%arg0: i32, %arg1: i32) -> (i32, i32, i32) {
    %c0_i32 = arith.constant 0 : i32
    %c0_i32_0 = arith.constant 0 : i32
    %c0_i32_1 = arith.constant 0 : i32
    return %arg1, %c0_i32, %c0_i32_0 : i32, i32, i32
  }
  func.func @transform_5(%arg0: i32, %arg1: i32) -> (i32, i32, i32) {
    %c0_i32 = arith.constant 0 : i32
    %c0_i32_0 = arith.constant 0 : i32
    %c0_i32_1 = arith.constant 0 : i32
    return %arg1, %c0_i32, %c0_i32_0 : i32, i32, i32
  }
  func.func @transform_6(%arg0: i32, %arg1: i32) -> (i32, i32, i32) {
    %c0_i32 = arith.constant 0 : i32
    %c0_i32_0 = arith.constant 0 : i32
    %c0_i32_1 = arith.constant 0 : i32
    return %arg1, %c0_i32, %c0_i32_0 : i32, i32, i32
  }
  func.func @transform_7(%arg0: i32, %arg1: i32) -> (i32, i32, i32) {
    %c0_i32 = arith.constant 0 : i32
    %c0_i32_0 = arith.constant 0 : i32
    %c0_i32_1 = arith.constant 0 : i32
    return %arg1, %c0_i32, %c0_i32_0 : i32, i32, i32
  }
  func.func @transform_8(%arg0: i32, %arg1: i32) -> (i32, i32, i32) {
    %c0_i32 = arith.constant 0 : i32
    %c0_i32_0 = arith.constant 0 : i32
    %c0_i32_1 = arith.constant 0 : i32
    return %arg1, %c0_i32, %c0_i32_0 : i32, i32, i32
  }
  func.func @transform_9(%arg0: i32, %arg1: i32) -> (i32, i32, i32) {
    %c0_i32 = arith.constant 0 : i32
    %c0_i32_0 = arith.constant 0 : i32
    %c0_i32_1 = arith.constant 0 : i32
    return %arg1, %c0_i32, %c0_i32_0 : i32, i32, i32
  }
  func.func @transform_10(%arg0: i32, %arg1: i32) -> (i32, i32, i32) {
    %c0_i32 = arith.constant 0 : i32
    %c0_i32_0 = arith.constant 0 : i32
    %c0_i32_1 = arith.constant 0 : i32
    return %arg1, %c0_i32, %c0_i32_0 : i32, i32, i32
  }
  func.func @transform_11(%arg0: i32, %arg1: i32) -> (i32, i32, i32) {
    %c0_i32 = arith.constant 0 : i32
    %c0_i32_0 = arith.constant 0 : i32
    %c0_i32_1 = arith.constant 0 : i32
    return %arg1, %c0_i32, %c0_i32_0 : i32, i32, i32
  }
  func.func @transform_12(%arg0: i32, %arg1: i32) -> (i32, i32, i32) {
    %c0_i32 = arith.constant 0 : i32
    %c0_i32_0 = arith.constant 0 : i32
    %c0_i32_1 = arith.constant 0 : i32
    return %arg0, %c0_i32, %c0_i32_0 : i32, i32, i32
  }
}

module attributes {stable_mosaic.version = 11 : i64} {
  func.func @_fused_decoder_kernel(%arg0: i32, %arg1: i32, %arg2: memref<16x128xf32, #tpu.memory_space<vmem>>, %arg3: memref<16x128xf32, #tpu.memory_space<vmem>>, %arg4: memref<2x16x128xbf16, #tpu.memory_space<vmem>>, %arg5: memref<2x16x16xbf16, #tpu.memory_space<vmem>>, %arg6: memref<1x128x128xbf16, #tpu.memory_space<vmem>>, %arg7: memref<1x128x128xbf16, #tpu.memory_space<vmem>>, %arg8: memref<1x128x128xbf16, #tpu.memory_space<vmem>>, %arg9: memref<1x128x128xbf16, #tpu.memory_space<vmem>>, %arg10: memref<1x128x256xbf16, #tpu.memory_space<vmem>>, %arg11: memref<1x256x128xbf16, #tpu.memory_space<vmem>>, %arg12: memref<1x9x128xf32, #tpu.memory_space<vmem>>, %arg13: memref<1x1x256xf32, #tpu.memory_space<vmem>>, %arg14: memref<2x16x128xf32, #tpu.memory_space<vmem>>) attributes {dimension_semantics = [#tpu.dimension_semantics<parallel>, #tpu.dimension_semantics<arbitrary>], iteration_bounds = array<i64: 1, 2>, scalar_prefetch = 0 : i64, scratch_operands = 0 : i64, tpu.core_type = #tpu.core_type<tc>, window_params = [{pipeline_mode = #tpu.pipeline_mode<synchronous>, transform_indices = @transform_0, window_bounds = array<i64: 16, 128>}, {pipeline_mode = #tpu.pipeline_mode<synchronous>, transform_indices = @transform_1, window_bounds = array<i64: 16, 128>}, {transform_indices = @transform_2, window_bounds = array<i64: 2, 16, 128>}, {transform_indices = @transform_3, window_bounds = array<i64: 2, 16, 16>}, {transform_indices = @transform_4, window_bounds = array<i64: 1, 128, 128>}, {transform_indices = @transform_5, window_bounds = array<i64: 1, 128, 128>}, {transform_indices = @transform_6, window_bounds = array<i64: 1, 128, 128>}, {transform_indices = @transform_7, window_bounds = array<i64: 1, 128, 128>}, {transform_indices = @transform_8, window_bounds = array<i64: 1, 128, 256>}, {transform_indices = @transform_9, window_bounds = array<i64: 1, 256, 128>}, {transform_indices = @transform_10, window_bounds = array<i64: 1, 9, 128>}, {transform_indices = @transform_11, window_bounds = array<i64: 1, 1, 256>}, {transform_indices = @transform_12, window_bounds = array<i64: 2, 16, 128>}]} {
    %c0_i32 = arith.constant 0 : i32
    %0 = arith.cmpi eq, %arg1, %c0_i32 : i32
    %1 = arith.extui %0 : i1 to i32
    %c0_i32_0 = arith.constant 0 : i32
    %2 = arith.cmpi ne, %1, %c0_i32_0 : i32
    scf.if %2 {
      %c0_60 = arith.constant 0 : index
      %c0_61 = arith.constant 0 : index
      %136 = vector.load %arg2[%c0_60, %c0_61] : memref<16x128xf32, #tpu.memory_space<vmem>>, vector<16x128xf32>
      %137 = vector.shape_cast %136 : vector<16x128xf32> to vector<1x16x128xf32>
      %138 = vector.broadcast %137 : vector<1x16x128xf32> to vector<2x16x128xf32>
      %c0_62 = arith.constant 0 : index
      %c0_63 = arith.constant 0 : index
      %c0_64 = arith.constant 0 : index
      %139 = vector.load %arg14[%c0_62, %c0_63, %c0_64] : memref<2x16x128xf32, #tpu.memory_space<vmem>>, vector<2x16x128xf32>
      tpu.vector_store %arg14[%c0_62, %c0_63, %c0_64], %138 {strides = array<i32>} : memref<2x16x128xf32, #tpu.memory_space<vmem>>, vector<2x16x128xf32>,
    } else {
    }
    %c0 = arith.constant 0 : index
    %c0_1 = arith.constant 0 : index
    %c0_2 = arith.constant 0 : index
    %3 = vector.load %arg14[%c0, %c0_1, %c0_2] : memref<2x16x128xf32, #tpu.memory_space<vmem>>, vector<2x16x128xf32>
    %c0_3 = arith.constant 0 : index
    %c0_4 = arith.constant 0 : index
    %4 = vector.load %arg3[%c0_3, %c0_4] : memref<16x128xf32, #tpu.memory_space<vmem>>, vector<16x128xf32>
    %c0_5 = arith.constant 0 : index
    %c0_6 = arith.constant 0 : index
    %c0_7 = arith.constant 0 : index
    %5 = vector.load %arg5[%c0_5, %c0_6, %c0_7] : memref<2x16x16xbf16, #tpu.memory_space<vmem>>, vector<2x16x16xbf16>
    %6 = arith.extf %5 : vector<2x16x16xbf16> to vector<2x16x16xf32>
    %c0_8 = arith.constant 0 : index
    %c0_9 = arith.constant 0 : index
    %c0_10 = arith.constant 0 : index
    %7 = vector.load %arg12[%c0_8, %c0_9, %c0_10] : memref<1x9x128xf32, #tpu.memory_space<vmem>>, vector<1x9x128xf32>
    %8 = vector.shape_cast %7 : vector<1x9x128xf32> to vector<9x128xf32>
    %9 = vector.extract_strided_slice %8 {offsets = [0, 0], sizes = [1, 128], strides = [1, 1]} : vector<9x128xf32> to vector<1x128xf32>
    %10 = vector.extract_strided_slice %8 {offsets = [1, 0], sizes = [1, 128], strides = [1, 1]} : vector<9x128xf32> to vector<1x128xf32>
    %11 = vector.extract_strided_slice %8 {offsets = [2, 0], sizes = [1, 128], strides = [1, 1]} : vector<9x128xf32> to vector<1x128xf32>
    %12 = vector.extract_strided_slice %8 {offsets = [3, 0], sizes = [1, 128], strides = [1, 1]} : vector<9x128xf32> to vector<1x128xf32>
    %13 = vector.extract_strided_slice %8 {offsets = [4, 0], sizes = [1, 128], strides = [1, 1]} : vector<9x128xf32> to vector<1x128xf32>
    %14 = vector.extract_strided_slice %8 {offsets = [5, 0], sizes = [1, 128], strides = [1, 1]} : vector<9x128xf32> to vector<1x128xf32>
    %15 = vector.extract_strided_slice %8 {offsets = [6, 0], sizes = [1, 128], strides = [1, 1]} : vector<9x128xf32> to vector<1x128xf32>
    %16 = vector.extract_strided_slice %8 {offsets = [7, 0], sizes = [1, 128], strides = [1, 1]} : vector<9x128xf32> to vector<1x128xf32>
    %17 = vector.extract_strided_slice %8 {offsets = [8, 0], sizes = [1, 128], strides = [1, 1]} : vector<9x128xf32> to vector<1x128xf32>
    %c0_11 = arith.constant 0 : index
    %c0_12 = arith.constant 0 : index
    %c0_13 = arith.constant 0 : index
    %18 = vector.load %arg13[%c0_11, %c0_12, %c0_13] : memref<1x1x256xf32, #tpu.memory_space<vmem>>, vector<1x1x256xf32>
    %19 = vector.shape_cast %18 : vector<1x1x256xf32> to vector<1x256xf32>
    %20 = vector.shape_cast %4 : vector<16x128xf32> to vector<1x16x128xf32>
    %21 = vector.broadcast %20 : vector<1x16x128xf32> to vector<2x16x128xf32>
    %22 = arith.addf %3, %21 : vector<2x16x128xf32>
    %23 = vector.shape_cast %22 : vector<2x16x128xf32> to vector<32x128xf32>
    %24 = arith.truncf %23 : vector<32x128xf32> to vector<32x128xbf16>
    %c0_14 = arith.constant 0 : index
    %c0_15 = arith.constant 0 : index
    %c0_16 = arith.constant 0 : index
    %25 = vector.load %arg4[%c0_14, %c0_15, %c0_16] : memref<2x16x128xbf16, #tpu.memory_space<vmem>>, vector<2x16x128xbf16>
    %26 = vector.shape_cast %25 : vector<2x16x128xbf16> to vector<32x128xbf16>
    %c0_17 = arith.constant 0 : index
    %c0_18 = arith.constant 0 : index
    %c0_19 = arith.constant 0 : index
    %27 = vector.load %arg6[%c0_17, %c0_18, %c0_19] : memref<1x128x128xbf16, #tpu.memory_space<vmem>>, vector<1x128x128xbf16>
    %28 = vector.shape_cast %27 : vector<1x128x128xbf16> to vector<128x128xbf16>
    %cst = arith.constant dense<0.000000e+00> : vector<32x128xf32>
    %29 = tpu.matmul %24, %28, %cst {dimension_numbers = #tpu.dot_dimension_numbers<[1], [0], [0], [1], [0, 0, 1, 1], [], []>} : vector<32x128xbf16>, vector<128x128xbf16>, vector<32x128xf32> -> vector<32x128xf32>
    %30 = vector.broadcast %9 : vector<1x128xf32> to vector<32x128xf32>
    %31 = arith.addf %29, %30 : vector<32x128xf32>
    %c0_20 = arith.constant 0 : index
    %c0_21 = arith.constant 0 : index
    %c0_22 = arith.constant 0 : index
    %32 = vector.load %arg7[%c0_20, %c0_21, %c0_22] : memref<1x128x128xbf16, #tpu.memory_space<vmem>>, vector<1x128x128xbf16>
    %33 = vector.shape_cast %32 : vector<1x128x128xbf16> to vector<128x128xbf16>
    %cst_23 = arith.constant dense<0.000000e+00> : vector<32x128xf32>
    %34 = tpu.matmul %26, %33, %cst_23 {dimension_numbers = #tpu.dot_dimension_numbers<[1], [0], [0], [1], [0, 0, 1, 1], [], []>} : vector<32x128xbf16>, vector<128x128xbf16>, vector<32x128xf32> -> vector<32x128xf32>
    %35 = vector.broadcast %10 : vector<1x128xf32> to vector<32x128xf32>
    %36 = arith.addf %34, %35 : vector<32x128xf32>
    %c0_24 = arith.constant 0 : index
    %c0_25 = arith.constant 0 : index
    %c0_26 = arith.constant 0 : index
    %37 = vector.load %arg8[%c0_24, %c0_25, %c0_26] : memref<1x128x128xbf16, #tpu.memory_space<vmem>>, vector<1x128x128xbf16>
    %38 = vector.shape_cast %37 : vector<1x128x128xbf16> to vector<128x128xbf16>
    %cst_27 = arith.constant dense<0.000000e+00> : vector<32x128xf32>
    %39 = tpu.matmul %26, %38, %cst_27 {dimension_numbers = #tpu.dot_dimension_numbers<[1], [0], [0], [1], [0, 0, 1, 1], [], []>} : vector<32x128xbf16>, vector<128x128xbf16>, vector<32x128xf32> -> vector<32x128xf32>
    %40 = vector.broadcast %11 : vector<1x128xf32> to vector<32x128xf32>
    %41 = arith.addf %39, %40 : vector<32x128xf32>
    %42 = vector.shape_cast %31 : vector<32x128xf32> to vector<2x16x128xf32>
    %43 = arith.truncf %42 : vector<2x16x128xf32> to vector<2x16x128xbf16>
    %44 = vector.shape_cast %36 : vector<32x128xf32> to vector<2x16x128xf32>
    %45 = arith.truncf %44 : vector<2x16x128xf32> to vector<2x16x128xbf16>
    %46 = vector.shape_cast %41 : vector<32x128xf32> to vector<2x16x128xf32>
    %47 = arith.truncf %46 : vector<2x16x128xf32> to vector<2x16x128xbf16>
    %cst_28 = arith.constant dense<0.000000e+00> : vector<2x16x16xf32>
    %48 = tpu.matmul %43, %45, %cst_28 {dimension_numbers = #tpu.dot_dimension_numbers<[2], [2], [1], [1], [0, 0, 0, 1, 1, 1], [0], [0]>} : vector<2x16x128xbf16>, vector<2x16x128xbf16>, vector<2x16x16xf32> -> vector<2x16x16xf32>
    %49 = arith.addf %48, %6 : vector<2x16x16xf32>
    %cst_29 = arith.constant dense<0xFF800000> : vector<2x16xf32>
    %50 = vector.multi_reduction <maximumf>, %49, %cst_29 [2] : vector<2x16x16xf32> to vector<2x16xf32>
    %51 = vector.shape_cast %50 : vector<2x16xf32> to vector<2x16x1xf32>
    %52 = vector.broadcast %51 : vector<2x16x1xf32> to vector<2x16x16xf32>
    %53 = arith.subf %49, %52 : vector<2x16x16xf32>
    %54 = math.exp %53 : vector<2x16x16xf32>
    %cst_30 = arith.constant dense<0.000000e+00> : vector<2x16xf32>
    %55 = vector.multi_reduction <add>, %54, %cst_30 [2] : vector<2x16x16xf32> to vector<2x16xf32>
    %56 = vector.shape_cast %55 : vector<2x16xf32> to vector<2x16x1xf32>
    %57 = tpu.reciprocal %56 {approx = true} : vector<2x16x1xf32> -> vector<2x16x1xf32>
    %58 = vector.broadcast %57 : vector<2x16x1xf32> to vector<2x16x16xf32>
    %59 = arith.mulf %54, %58 : vector<2x16x16xf32>
    %60 = arith.truncf %59 : vector<2x16x16xf32> to vector<2x16x16xbf16>
    %cst_31 = arith.constant dense<0.000000e+00> : vector<2x16x128xf32>
    %61 = tpu.matmul %60, %47, %cst_31 {dimension_numbers = #tpu.dot_dimension_numbers<[2], [1], [1], [2], [0, 0, 0, 1, 1, 2], [0], [0]>} : vector<2x16x16xbf16>, vector<2x16x128xbf16>, vector<2x16x128xf32> -> vector<2x16x128xf32>
    %62 = vector.shape_cast %61 : vector<2x16x128xf32> to vector<32x128xf32>
    %63 = arith.truncf %62 : vector<32x128xf32> to vector<32x128xbf16>
    %c0_32 = arith.constant 0 : index
    %c0_33 = arith.constant 0 : index
    %c0_34 = arith.constant 0 : index
    %64 = vector.load %arg9[%c0_32, %c0_33, %c0_34] : memref<1x128x128xbf16, #tpu.memory_space<vmem>>, vector<1x128x128xbf16>
    %65 = vector.shape_cast %64 : vector<1x128x128xbf16> to vector<128x128xbf16>
    %cst_35 = arith.constant dense<0.000000e+00> : vector<32x128xf32>
    %66 = tpu.matmul %63, %65, %cst_35 {dimension_numbers = #tpu.dot_dimension_numbers<[1], [0], [0], [1], [0, 0, 1, 1], [], []>} : vector<32x128xbf16>, vector<128x128xbf16>, vector<32x128xf32> -> vector<32x128xf32>
    %67 = vector.broadcast %12 : vector<1x128xf32> to vector<32x128xf32>
    %68 = arith.addf %66, %67 : vector<32x128xf32>
    %69 = vector.shape_cast %3 : vector<2x16x128xf32> to vector<32x128xf32>
    %70 = arith.addf %69, %68 : vector<32x128xf32>
    %cst_36 = arith.constant dense<0.000000e+00> : vector<32xf32>
    %71 = vector.multi_reduction <add>, %70, %cst_36 [1] : vector<32x128xf32> to vector<32xf32>
    %72 = vector.shape_cast %71 : vector<32xf32> to vector<32x1xf32>
    %cst_37 = arith.constant 1.280000e+02 : f32
    %73 = vector.broadcast %cst_37 : f32 to vector<32x1xf32>
    %74 = arith.divf %72, %73 : vector<32x1xf32>
    %75 = arith.mulf %70, %70 : vector<32x128xf32>
    %cst_38 = arith.constant dense<0.000000e+00> : vector<32xf32>
    %76 = vector.multi_reduction <add>, %75, %cst_38 [1] : vector<32x128xf32> to vector<32xf32>
    %77 = vector.shape_cast %76 : vector<32xf32> to vector<32x1xf32>
    %cst_39 = arith.constant 1.280000e+02 : f32
    %78 = vector.broadcast %cst_39 : f32 to vector<32x1xf32>
    %79 = arith.divf %77, %78 : vector<32x1xf32>
    %80 = arith.mulf %74, %74 : vector<32x1xf32>
    %81 = arith.subf %79, %80 : vector<32x1xf32>
    %cst_40 = arith.constant 0.000000e+00 : f32
    %82 = vector.broadcast %cst_40 : f32 to vector<32x1xf32>
    %83 = arith.maximumf %81, %82 : vector<32x1xf32>
    %84 = vector.broadcast %74 : vector<32x1xf32> to vector<32x128xf32>
    %85 = arith.subf %70, %84 : vector<32x128xf32>
    %cst_41 = arith.constant 9.99999974E-6 : f32
    %86 = vector.broadcast %cst_41 : f32 to vector<32x1xf32>
    %87 = arith.addf %83, %86 : vector<32x1xf32>
    %88 = math.rsqrt %87 : vector<32x1xf32>
    %89 = vector.broadcast %88 : vector<32x1xf32> to vector<32x128xf32>
    %90 = arith.mulf %85, %89 : vector<32x128xf32>
    %91 = vector.broadcast %13 : vector<1x128xf32> to vector<32x128xf32>
    %92 = arith.mulf %90, %91 : vector<32x128xf32>
    %93 = vector.broadcast %14 : vector<1x128xf32> to vector<32x128xf32>
    %94 = arith.addf %92, %93 : vector<32x128xf32>
    %95 = arith.truncf %94 : vector<32x128xf32> to vector<32x128xbf16>
    %c0_42 = arith.constant 0 : index
    %c0_43 = arith.constant 0 : index
    %c0_44 = arith.constant 0 : index
    %96 = vector.load %arg10[%c0_42, %c0_43, %c0_44] : memref<1x128x256xbf16, #tpu.memory_space<vmem>>, vector<1x128x256xbf16>
    %97 = vector.shape_cast %96 : vector<1x128x256xbf16> to vector<128x256xbf16>
    %cst_45 = arith.constant dense<0.000000e+00> : vector<32x256xf32>
    %98 = tpu.matmul %95, %97, %cst_45 {dimension_numbers = #tpu.dot_dimension_numbers<[1], [0], [0], [1], [0, 0, 1, 1], [], []>} : vector<32x128xbf16>, vector<128x256xbf16>, vector<32x256xf32> -> vector<32x256xf32>
    %99 = vector.broadcast %19 : vector<1x256xf32> to vector<32x256xf32>
    %100 = arith.addf %98, %99 : vector<32x256xf32>
    %cst_46 = arith.constant 0.000000e+00 : f32
    %101 = vector.broadcast %cst_46 : f32 to vector<32x256xf32>
    %102 = arith.maximumf %100, %101 : vector<32x256xf32>
    %103 = arith.truncf %102 : vector<32x256xf32> to vector<32x256xbf16>
    %c0_47 = arith.constant 0 : index
    %c0_48 = arith.constant 0 : index
    %c0_49 = arith.constant 0 : index
    %104 = vector.load %arg11[%c0_47, %c0_48, %c0_49] : memref<1x256x128xbf16, #tpu.memory_space<vmem>>, vector<1x256x128xbf16>
    %105 = vector.shape_cast %104 : vector<1x256x128xbf16> to vector<256x128xbf16>
    %cst_50 = arith.constant dense<0.000000e+00> : vector<32x128xf32>
    %106 = tpu.matmul %103, %105, %cst_50 {dimension_numbers = #tpu.dot_dimension_numbers<[1], [0], [0], [1], [0, 0, 1, 1], [], []>} : vector<32x256xbf16>, vector<256x128xbf16>, vector<32x128xf32> -> vector<32x128xf32>
    %107 = vector.broadcast %15 : vector<1x128xf32> to vector<32x128xf32>
    %108 = arith.addf %106, %107 : vector<32x128xf32>
    %109 = arith.addf %94, %108 : vector<32x128xf32>
    %cst_51 = arith.constant dense<0.000000e+00> : vector<32xf32>
    %110 = vector.multi_reduction <add>, %109, %cst_51 [1] : vector<32x128xf32> to vector<32xf32>
    %111 = vector.shape_cast %110 : vector<32xf32> to vector<32x1xf32>
    %cst_52 = arith.constant 1.280000e+02 : f32
    %112 = vector.broadcast %cst_52 : f32 to vector<32x1xf32>
    %113 = arith.divf %111, %112 : vector<32x1xf32>
    %114 = arith.mulf %109, %109 : vector<32x128xf32>
    %cst_53 = arith.constant dense<0.000000e+00> : vector<32xf32>
    %115 = vector.multi_reduction <add>, %114, %cst_53 [1] : vector<32x128xf32> to vector<32xf32>
    %116 = vector.shape_cast %115 : vector<32xf32> to vector<32x1xf32>
    %cst_54 = arith.constant 1.280000e+02 : f32
    %117 = vector.broadcast %cst_54 : f32 to vector<32x1xf32>
    %118 = arith.divf %116, %117 : vector<32x1xf32>
    %119 = arith.mulf %113, %113 : vector<32x1xf32>
    %120 = arith.subf %118, %119 : vector<32x1xf32>
    %cst_55 = arith.constant 0.000000e+00 : f32
    %121 = vector.broadcast %cst_55 : f32 to vector<32x1xf32>
    %122 = arith.maximumf %120, %121 : vector<32x1xf32>
    %123 = vector.broadcast %113 : vector<32x1xf32> to vector<32x128xf32>
    %124 = arith.subf %109, %123 : vector<32x128xf32>
    %cst_56 = arith.constant 9.99999974E-6 : f32
    %125 = vector.broadcast %cst_56 : f32 to vector<32x1xf32>
    %126 = arith.addf %122, %125 : vector<32x1xf32>
    %127 = math.rsqrt %126 : vector<32x1xf32>
    %128 = vector.broadcast %127 : vector<32x1xf32> to vector<32x128xf32>
    %129 = arith.mulf %124, %128 : vector<32x128xf32>
    %130 = vector.broadcast %16 : vector<1x128xf32> to vector<32x128xf32>
    %131 = arith.mulf %129, %130 : vector<32x128xf32>
    %132 = vector.broadcast %17 : vector<1x128xf32> to vector<32x128xf32>
    %133 = arith.addf %131, %132 : vector<32x128xf32>
    %134 = vector.shape_cast %133 : vector<32x128xf32> to vector<2x16x128xf32>
    %c0_57 = arith.constant 0 : index
    %c0_58 = arith.constant 0 : index
    %c0_59 = arith.constant 0 : index
    %135 = vector.load %arg14[%c0_57, %c0_58, %c0_59] : memref<2x16x128xf32, #tpu.memory_space<vmem>>, vector<2x16x128xf32>
    tpu.vector_store %arg14[%c0_57, %c0_58, %c0_59], %134 {strides = array<i32>} : memref<2x16x128xf32, #tpu.memory_space<vmem>>, vector<2x16x128xf32>,
    return
  }
  func.func @transform_0(%arg0: i32, %arg1: i32) -> (i32, i32) {
    %c0_i32 = arith.constant 0 : i32
    %c0_i32_0 = arith.constant 0 : i32
    %c0_i32_1 = arith.constant 0 : i32
    return %c0_i32, %c0_i32_0 : i32, i32
  }
  func.func @transform_1(%arg0: i32, %arg1: i32) -> (i32, i32) {
    %c0_i32 = arith.constant 0 : i32
    %c0_i32_0 = arith.constant 0 : i32
    %c0_i32_1 = arith.constant 0 : i32
    return %c0_i32, %c0_i32_0 : i32, i32
  }
  func.func @transform_2(%arg0: i32, %arg1: i32) -> (i32, i32, i32) {
    %c0_i32 = arith.constant 0 : i32
    %c0_i32_0 = arith.constant 0 : i32
    %c0_i32_1 = arith.constant 0 : i32
    return %arg0, %c0_i32, %c0_i32_0 : i32, i32, i32
  }
  func.func @transform_3(%arg0: i32, %arg1: i32) -> (i32, i32, i32) {
    %c0_i32 = arith.constant 0 : i32
    %c0_i32_0 = arith.constant 0 : i32
    %c0_i32_1 = arith.constant 0 : i32
    return %arg0, %c0_i32, %c0_i32_0 : i32, i32, i32
  }
  func.func @transform_4(%arg0: i32, %arg1: i32) -> (i32, i32, i32) {
    %c0_i32 = arith.constant 0 : i32
    %c0_i32_0 = arith.constant 0 : i32
    %c0_i32_1 = arith.constant 0 : i32
    return %arg1, %c0_i32, %c0_i32_0 : i32, i32, i32
  }
  func.func @transform_5(%arg0: i32, %arg1: i32) -> (i32, i32, i32) {
    %c0_i32 = arith.constant 0 : i32
    %c0_i32_0 = arith.constant 0 : i32
    %c0_i32_1 = arith.constant 0 : i32
    return %arg1, %c0_i32, %c0_i32_0 : i32, i32, i32
  }
  func.func @transform_6(%arg0: i32, %arg1: i32) -> (i32, i32, i32) {
    %c0_i32 = arith.constant 0 : i32
    %c0_i32_0 = arith.constant 0 : i32
    %c0_i32_1 = arith.constant 0 : i32
    return %arg1, %c0_i32, %c0_i32_0 : i32, i32, i32
  }
  func.func @transform_7(%arg0: i32, %arg1: i32) -> (i32, i32, i32) {
    %c0_i32 = arith.constant 0 : i32
    %c0_i32_0 = arith.constant 0 : i32
    %c0_i32_1 = arith.constant 0 : i32
    return %arg1, %c0_i32, %c0_i32_0 : i32, i32, i32
  }
  func.func @transform_8(%arg0: i32, %arg1: i32) -> (i32, i32, i32) {
    %c0_i32 = arith.constant 0 : i32
    %c0_i32_0 = arith.constant 0 : i32
    %c0_i32_1 = arith.constant 0 : i32
    return %arg1, %c0_i32, %c0_i32_0 : i32, i32, i32
  }
  func.func @transform_9(%arg0: i32, %arg1: i32) -> (i32, i32, i32) {
    %c0_i32 = arith.constant 0 : i32
    %c0_i32_0 = arith.constant 0 : i32
    %c0_i32_1 = arith.constant 0 : i32
    return %arg1, %c0_i32, %c0_i32_0 : i32, i32, i32
  }
  func.func @transform_10(%arg0: i32, %arg1: i32) -> (i32, i32, i32) {
    %c0_i32 = arith.constant 0 : i32
    %c0_i32_0 = arith.constant 0 : i32
    %c0_i32_1 = arith.constant 0 : i32
    return %arg1, %c0_i32, %c0_i32_0 : i32, i32, i32
  }
  func.func @transform_11(%arg0: i32, %arg1: i32) -> (i32, i32, i32) {
    %c0_i32 = arith.constant 0 : i32
    %c0_i32_0 = arith.constant 0 : i32
    %c0_i32_1 = arith.constant 0 : i32
    return %arg1, %c0_i32, %c0_i32_0 : i32, i32, i32
  }
  func.func @transform_12(%arg0: i32, %arg1: i32) -> (i32, i32, i32) {
    %c0_i32 = arith.constant 0 : i32
    %c0_i32_0 = arith.constant 0 : i32
    %c0_i32_1 = arith.constant 0 : i32
    return %arg0, %c0_i32, %c0_i32_0 : i32, i32, i32
  }
}

</mosaic_0001>

<llo_original>
// kernel: tpu_custom_call.1
$region0: #{tpu_custom_call.1}
  #allocation0 [shape = 'u32[]', space=smem, size = 0x4, offset = 0x4, fixed_abs, tag = 'smem constant byte address 0x4 - core index']
  #allocation1 [shape = 'u32[144,128]{1,0:T(1,128)}', space=vmem, size = 0x12000, scoped, tag = 'internal scratch']
  %s0 = inlined_call_operand.vmem [shape: f32[16,128], index: 0, kind: input, shape index: {}]
  %s1 = inlined_call_operand.vmem [shape: f32[16,128], index: 1, kind: input, shape index: {}]
  %s2 = inlined_call_operand.vmem [shape: bf16[2,16,128], index: 2, kind: input, shape index: {}]
  %s3 = inlined_call_operand.hbm [shape: bf16[2,16,16], index: 3, kind: input, shape index: {}]
  %s4 = inlined_call_operand.hbm [shape: bf16[2,128,128], index: 4, kind: input, shape index: {}]
  %s5 = inlined_call_operand.hbm [shape: bf16[2,128,128], index: 5, kind: input, shape index: {}]
  %s6 = inlined_call_operand.hbm [shape: bf16[2,128,128], index: 6, kind: input, shape index: {}]
  %s7 = inlined_call_operand.hbm [shape: bf16[2,128,128], index: 7, kind: input, shape index: {}]
  %s8 = inlined_call_operand.hbm [shape: bf16[2,128,256], index: 8, kind: input, shape index: {}]
  %s9 = inlined_call_operand.hbm [shape: bf16[2,256,128], index: 9, kind: input, shape index: {}]
  %s10 = inlined_call_operand.vmem [shape: f32[2,9,128], index: 10, kind: input, shape index: {}]
  %s11 = inlined_call_operand.hbm [shape: f32[2,1,256], index: 11, kind: input, shape index: {}]
  %s12 = inlined_call_operand.hbm [shape: f32[2,16,128], index: 12, kind: output, shape index: {}]
  %s13 = sld [smem:[#allocation0]]
  $region117: #{tpu_custom_call.1} parent=0
    _
  %s15 = ssub.s32 1, %s13
  %s16 = scalar_select 0, %s15, %s13
  $region1: #{tpu_custom_call.1} parent=0
    #allocation2 [shape = 'u8[8192]{0}', space=vmem, size = 0x2000, scoped, tag = 'input window, operand 3, single buffered']
    #allocation3 [shape = 's32[2]{0}', space=sflag, size = 0x8, scoped, tag = 'scoped memory for tpu_custom_call.1']
    #allocation4 [shape = 's32[2]{0}', space=sflag, size = 0x8, scoped, tag = 'scoped memory for tpu_custom_call.1']
    #allocation5 [shape = 'u8[65536]{0}', space=vmem, size = 0x10000, scoped, tag = 'input window, operand 4']
    #allocation6 [shape = 's32[2]{0}', space=sflag, size = 0x8, scoped, tag = 'scoped memory for tpu_custom_call.1']
    #allocation7 [shape = 'u8[65536]{0}', space=vmem, size = 0x10000, scoped, tag = 'input window, operand 5']
    #allocation8 [shape = 'u8[65536]{0}', space=vmem, size = 0x10000, scoped, tag = 'input window, operand 6']
    #allocation9 [shape = 's32[2]{0}', space=sflag, size = 0x8, scoped, tag = 'scoped memory for tpu_custom_call.1']
    #allocation10 [shape = 'u8[65536]{0}', space=vmem, size = 0x10000, scoped, tag = 'input window, operand 7']
    #allocation11 [shape = 'u8[131072]{0}', space=vmem, size = 0x20000, scoped, tag = 'input window, operand 8']
    #allocation12 [shape = 's32[2]{0}', space=sflag, size = 0x8, scoped, tag = 'scoped memory for tpu_custom_call.1']
    #allocation13 [shape = 'u8[131072]{0}', space=vmem, size = 0x20000, scoped, tag = 'input window, operand 9']
    #allocation14 [shape = 'u8[2048]{0}', space=vmem, size = 0x800, scoped, tag = 'input window, operand 11']
    #allocation15 [shape = 's32[2]{0}', space=sflag, size = 0x8, scoped, tag = 'scoped memory for tpu_custom_call.1']
    #allocation16 [shape = 'u8[16384]{0}', space=vmem, size = 0x4000, scoped, tag = 'output window, operand 0, single buffered']
    %17 = vsyncpa [#allocation3], 0
    %18 = vsyncpa [#allocation6], 0
    %s19 = scalar_lea.sflag [#allocation6], 1
    %20 = vsyncpa %s19, 0
    %21 = vsyncpa [#allocation9], 0
    %s22 = scalar_lea.sflag [#allocation9], 1
    %23 = vsyncpa %s22, 0
    %24 = vsyncpa [#allocation12], 0
    %s25 = scalar_lea.sflag [#allocation12], 1
    %26 = vsyncpa %s25, 0
    %27 = vsyncpa [#allocation15], 0
    %s28 = scalar_lea.sflag [#allocation15], 1
    %29 = vsyncpa %s28, 0
    %30 = vsyncpa [#allocation4], 0
    loop: start=0, step=1, limit=4
    $region2: #{tpu_custom_call.1} parent=1 // loop_pre_header
      _
    $region3: #{tpu_custom_call.1} parent=1 // loop_header
      %s32 = sphi 0, %s36
      %p33 = scmp.ge.s32.totalorder %s32, 4
      %s39 = sphi 0, %s51
      %s40 = sphi 0, %s47
      %s41 = sphi 0, %s39
      %s42 = sphi 0, %s40
      %s43 = sphi 0, %s41
      %s44 = sphi 0, %s42
      %s52 = sphi 0, %s52
      %s54 = sphi 0, %s52
      %s55 = sphi 0, %s54
      %s69 = sphi 0, %s55
      %s73 = sphi 0, %s73
      %s75 = sphi 0, %s73
      %s76 = sphi 0, %s75
      %s90 = sphi 0, %s76
      %s96 = sphi 0, %s98
      %s99 = sphi 0, %s96
      %s100 = sphi 0, %s99
      %s116 = sphi 0, %s100
      %s122 = sphi 0, %s124
      %s125 = sphi 0, %s122
      %s126 = sphi 0, %s125
      %s142 = sphi 0, %s126
      %s148 = sphi 0, %s150
      %s151 = sphi 0, %s148
      %s152 = sphi 0, %s151
      %s168 = sphi 0, %s152
      %s174 = sphi 0, %s176
      %s177 = sphi 0, %s174
      %s178 = sphi 0, %s177
      %s194 = sphi 0, %s178
      %s200 = sphi 0, %s202
      %s203 = sphi 0, %s200
      %s204 = sphi 0, %s203
      %s220 = sphi 0, %s204
      %s226 = sphi 0, %s228
      %s229 = sphi 0, %s226
      %s230 = sphi 0, %s229
      %s246 = sphi 0, %s230
      %s252 = sphi 0, %s254
      %s255 = sphi 0, %s252
      %s256 = sphi 0, %s255
      %s272 = sphi 0, %s256
      %s278 = sphi 0, %s280
      %s281 = sphi 0, %s278
      %s282 = sphi 0, %s281
      %s298 = sphi 0, %s282
      %s304 = sphi 0, %s306
      %s307 = sphi 0, %s304
      %s308 = sphi 0, %s307
      %s324 = sphi 0, %s308
      %s330 = sphi 0, %s332
      %s333 = sphi 0, %s330
      %s334 = sphi 0, %s333
      %s350 = sphi 0, %s334
      %s356 = sphi 0, %s358
      %s359 = sphi 0, %s356
      %s360 = sphi 0, %s359
      %s376 = sphi 0, %s360
    $region4: #{tpu_custom_call.1} parent=1 // loop_header_branch
      %35 = sbr.rel (%p33) target = $region8
    $region5: #{tpu_custom_call.1} parent=1 // loop_body
      %s37 = ssub.s32 %s32, 1
      %s38 = ssub.s32 %s32, 2
      %s45 = sadd.s32 1, %s40
      %p46 = scmp.ge.s32.totalorder %s45, 2
      %s47 = scalar_select %p46, 0, %s45
      %s48 = sadd.s32 1, %s39
      %s49 = scalar_select %p46, %s48, %s39
      %p50 = scmp.ge.s32.totalorder %s49, 1
      %s51 = scalar_select %p50, 0, %s49
      %s53 = sadd.s32 %s52, 1
      %p56 = scmp.eq.s32.totalorder %s32, 1
      %p57 = scmp.ne.s32.totalorder %s52, %s54
      %p58 = scmp.eq.s32.totalorder %s32, 0
      %p59 = por %p57, %p58
      %p60 = scmp.ne.s32.totalorder %s52, %s54
      %p61 = scmp.eq.s32.totalorder %s37, 1
      %p62 = por %p60, %p61
      %p63 = scmp.ne.s32.totalorder %s54, %s55
      %p64 = scmp.eq.s32.totalorder %s37, 0
      %p65 = por %p63, %p64
      %p66 = scmp.ne.s32.totalorder %s54, %s55
      %p67 = scmp.eq.s32.totalorder %s38, 1
      %p68 = por %p66, %p67
      %p70 = scmp.ne.s32.totalorder %s55, %s69
      %p71 = scmp.eq.s32.totalorder %s38, 0
      %p72 = por %p70, %p71
      %s74 = sadd.s32 %s73, 1
      %p77 = scmp.eq.s32.totalorder %s32, 1
      %p78 = scmp.ne.s32.totalorder %s73, %s75
      %p79 = scmp.eq.s32.totalorder %s32, 0
      %p80 = por %p78, %p79
      %p81 = scmp.ne.s32.totalorder %s73, %s75
      %p82 = scmp.eq.s32.totalorder %s37, 1
      %p83 = por %p81, %p82
      %p84 = scmp.ne.s32.totalorder %s75, %s76
      %p85 = scmp.eq.s32.totalorder %s37, 0
      %p86 = por %p84, %p85
      %p87 = scmp.ne.s32.totalorder %s75, %s76
      %p88 = scmp.eq.s32.totalorder %s38, 1
      %p89 = por %p87, %p88
      %p91 = scmp.ne.s32.totalorder %s76, %s90
      %p92 = scmp.eq.s32.totalorder %s38, 0
      %p93 = por %p91, %p92
      %s94 = ssub.s32 %s39, %s51
      %p95 = scmp.eq.s32.totalorder %s94, 0
      %s97 = sadd.s32 %s96, 1
      %s98 = scalar_select %p95, %s96, %s97
      %p101 = pneg %p95
      %p102 = scmp.eq.s32.totalorder %s32, 1
      %p103 = por %p101, %p102
      %p104 = scmp.ne.s32.totalorder %s96, %s99
      %p105 = scmp.eq.s32.totalorder %s32, 0
      %p106 = por %p104, %p105
      %p107 = scmp.ne.s32.totalorder %s96, %s99
      %p108 = scmp.eq.s32.totalorder %s37, 1
      %p109 = por %p107, %p108
      %p110 = scmp.ne.s32.totalorder %s99, %s100
      %p111 = scmp.eq.s32.totalorder %s37, 0
      %p112 = por %p110, %p111
      %p113 = scmp.ne.s32.totalorder %s99, %s100
      %p114 = scmp.eq.s32.totalorder %s38, 1
      %p115 = por %p113, %p114
      %p117 = scmp.ne.s32.totalorder %s100, %s116
      %p118 = scmp.eq.s32.totalorder %s38, 0
      %p119 = por %p117, %p118
      %s120 = ssub.s32 %s39, %s51
      %p121 = scmp.eq.s32.totalorder %s120, 0
      %s123 = sadd.s32 %s122, 1
      %s124 = scalar_select %p121, %s122, %s123
      %p127 = pneg %p121
      %p128 = scmp.eq.s32.totalorder %s32, 1
      %p129 = por %p127, %p128
      %p130 = scmp.ne.s32.totalorder %s122, %s125
      %p131 = scmp.eq.s32.totalorder %s32, 0
      %p132 = por %p130, %p131
      %p133 = scmp.ne.s32.totalorder %s122, %s125
      %p134 = scmp.eq.s32.totalorder %s37, 1
      %p135 = por %p133, %p134
      %p136 = scmp.ne.s32.totalorder %s125, %s126
      %p137 = scmp.eq.s32.totalorder %s37, 0
      %p138 = por %p136, %p137
      %p139 = scmp.ne.s32.totalorder %s125, %s126
      %p140 = scmp.eq.s32.totalorder %s38, 1
      %p141 = por %p139, %p140
      %p143 = scmp.ne.s32.totalorder %s126, %s142
      %p144 = scmp.eq.s32.totalorder %s38, 0
      %p145 = por %p143, %p144
      %s146 = ssub.s32 %s40, %s47
      %p147 = scmp.eq.s32.totalorder %s146, 0
      %s149 = sadd.s32 %s148, 1
      %s150 = scalar_select %p147, %s148, %s149
      %p153 = pneg %p147
      %p154 = scmp.eq.s32.totalorder %s32, 1
      %p155 = por %p153, %p154
      %p156 = scmp.ne.s32.totalorder %s148, %s151
      %p157 = scmp.eq.s32.totalorder %s32, 0
      %p158 = por %p156, %p157
      %p159 = scmp.ne.s32.totalorder %s148, %s151
      %p160 = scmp.eq.s32.totalorder %s37, 1
      %p161 = por %p159, %p160
      %p162 = scmp.ne.s32.totalorder %s151, %s152
      %p163 = scmp.eq.s32.totalorder %s37, 0
      %p164 = por %p162, %p163
      %p165 = scmp.ne.s32.totalorder %s151, %s152
      %p166 = scmp.eq.s32.totalorder %s38, 1
      %p167 = por %p165, %p166
      %p169 = scmp.ne.s32.totalorder %s152, %s168
      %p170 = scmp.eq.s32.totalorder %s38, 0
      %p171 = por %p169, %p170
      %s172 = ssub.s32 %s40, %s47
      %p173 = scmp.eq.s32.totalorder %s172, 0
      %s175 = sadd.s32 %s174, 1
      %s176 = scalar_select %p173, %s174, %s175
      %p179 = pneg %p173
      %p180 = scmp.eq.s32.totalorder %s32, 1
      %p181 = por %p179, %p180
      %p182 = scmp.ne.s32.totalorder %s174, %s177
      %p183 = scmp.eq.s32.totalorder %s32, 0
      %p184 = por %p182, %p183
      %p185 = scmp.ne.s32.totalorder %s174, %s177
      %p186 = scmp.eq.s32.totalorder %s37, 1
      %p187 = por %p185, %p186
      %p188 = scmp.ne.s32.totalorder %s177, %s178
      %p189 = scmp.eq.s32.totalorder %s37, 0
      %p190 = por %p188, %p189
      %p191 = scmp.ne.s32.totalorder %s177, %s178
      %p192 = scmp.eq.s32.totalorder %s38, 1
      %p193 = por %p191, %p192
      %p195 = scmp.ne.s32.totalorder %s178, %s194
      %p196 = scmp.eq.s32.totalorder %s38, 0
      %p197 = por %p195, %p196
      %s198 = ssub.s32 %s40, %s47
      %p199 = scmp.eq.s32.totalorder %s198, 0
      %s201 = sadd.s32 %s200, 1
      %s202 = scalar_select %p199, %s200, %s201
      %p205 = pneg %p199
      %p206 = scmp.eq.s32.totalorder %s32, 1
      %p207 = por %p205, %p206
      %p208 = scmp.ne.s32.totalorder %s200, %s203
      %p209 = scmp.eq.s32.totalorder %s32, 0
      %p210 = por %p208, %p209
      %p211 = scmp.ne.s32.totalorder %s200, %s203
      %p212 = scmp.eq.s32.totalorder %s37, 1
      %p213 = por %p211, %p212
      %p214 = scmp.ne.s32.totalorder %s203, %s204
      %p215 = scmp.eq.s32.totalorder %s37, 0
      %p216 = por %p214, %p215
      %p217 = scmp.ne.s32.totalorder %s203, %s204
      %p218 = scmp.eq.s32.totalorder %s38, 1
      %p219 = por %p217, %p218
      %p221 = scmp.ne.s32.totalorder %s204, %s220
      %p222 = scmp.eq.s32.totalorder %s38, 0
      %p223 = por %p221, %p222
      %s224 = ssub.s32 %s40, %s47
      %p225 = scmp.eq.s32.totalorder %s224, 0
      %s227 = sadd.s32 %s226, 1
      %s228 = scalar_select %p225, %s226, %s227
      %p231 = pneg %p225
      %p232 = scmp.eq.s32.totalorder %s32, 1
      %p233 = por %p231, %p232
      %p234 = scmp.ne.s32.totalorder %s226, %s229
      %p235 = scmp.eq.s32.totalorder %s32, 0
      %p236 = por %p234, %p235
      %p237 = scmp.ne.s32.totalorder %s226, %s229
      %p238 = scmp.eq.s32.totalorder %s37, 1
      %p239 = por %p237, %p238
      %p240 = scmp.ne.s32.totalorder %s229, %s230
      %p241 = scmp.eq.s32.totalorder %s37, 0
      %p242 = por %p240, %p241
      %p243 = scmp.ne.s32.totalorder %s229, %s230
      %p244 = scmp.eq.s32.totalorder %s38, 1
      %p245 = por %p243, %p244
      %p247 = scmp.ne.s32.totalorder %s230, %s246
      %p248 = scmp.eq.s32.totalorder %s38, 0
      %p249 = por %p247, %p248
      %s250 = ssub.s32 %s40, %s47
      %p251 = scmp.eq.s32.totalorder %s250, 0
      %s253 = sadd.s32 %s252, 1
      %s254 = scalar_select %p251, %s252, %s253
      %p257 = pneg %p251
      %p258 = scmp.eq.s32.totalorder %s32, 1
      %p259 = por %p257, %p258
      %p260 = scmp.ne.s32.totalorder %s252, %s255
      %p261 = scmp.eq.s32.totalorder %s32, 0
      %p262 = por %p260, %p261
      %p263 = scmp.ne.s32.totalorder %s252, %s255
      %p264 = scmp.eq.s32.totalorder %s37, 1
      %p265 = por %p263, %p264
      %p266 = scmp.ne.s32.totalorder %s255, %s256
      %p267 = scmp.eq.s32.totalorder %s37, 0
      %p268 = por %p266, %p267
      %p269 = scmp.ne.s32.totalorder %s255, %s256
      %p270 = scmp.eq.s32.totalorder %s38, 1
      %p271 = por %p269, %p270
      %p273 = scmp.ne.s32.totalorder %s256, %s272
      %p274 = scmp.eq.s32.totalorder %s38, 0
      %p275 = por %p273, %p274
      %s276 = ssub.s32 %s40, %s47
      %p277 = scmp.eq.s32.totalorder %s276, 0
      %s279 = sadd.s32 %s278, 1
      %s280 = scalar_select %p277, %s278, %s279
      %p283 = pneg %p277
      %p284 = scmp.eq.s32.totalorder %s32, 1
      %p285 = por %p283, %p284
      %p286 = scmp.ne.s32.totalorder %s278, %s281
      %p287 = scmp.eq.s32.totalorder %s32, 0
      %p288 = por %p286, %p287
      %p289 = scmp.ne.s32.totalorder %s278, %s281
      %p290 = scmp.eq.s32.totalorder %s37, 1
      %p291 = por %p289, %p290
      %p292 = scmp.ne.s32.totalorder %s281, %s282
      %p293 = scmp.eq.s32.totalorder %s37, 0
      %p294 = por %p292, %p293
      %p295 = scmp.ne.s32.totalorder %s281, %s282
      %p296 = scmp.eq.s32.totalorder %s38, 1
      %p297 = por %p295, %p296
      %p299 = scmp.ne.s32.totalorder %s282, %s298
      %p300 = scmp.eq.s32.totalorder %s38, 0
      %p301 = por %p299, %p300
      %s302 = ssub.s32 %s40, %s47
      %p303 = scmp.eq.s32.totalorder %s302, 0
      %s305 = sadd.s32 %s304, 1
      %s306 = scalar_select %p303, %s304, %s305
      %p309 = pneg %p303
      %p310 = scmp.eq.s32.totalorder %s32, 1
      %p311 = por %p309, %p310
      %p312 = scmp.ne.s32.totalorder %s304, %s307
      %p313 = scmp.eq.s32.totalorder %s32, 0
      %p314 = por %p312, %p313
      %p315 = scmp.ne.s32.totalorder %s304, %s307
      %p316 = scmp.eq.s32.totalorder %s37, 1
      %p317 = por %p315, %p316
      %p318 = scmp.ne.s32.totalorder %s307, %s308
      %p319 = scmp.eq.s32.totalorder %s37, 0
      %p320 = por %p318, %p319
      %p321 = scmp.ne.s32.totalorder %s307, %s308
      %p322 = scmp.eq.s32.totalorder %s38, 1
      %p323 = por %p321, %p322
      %p325 = scmp.ne.s32.totalorder %s308, %s324
      %p326 = scmp.eq.s32.totalorder %s38, 0
      %p327 = por %p325, %p326
      %s328 = ssub.s32 %s40, %s47
      %p329 = scmp.eq.s32.totalorder %s328, 0
      %s331 = sadd.s32 %s330, 1
      %s332 = scalar_select %p329, %s330, %s331
      %p335 = pneg %p329
      %p336 = scmp.eq.s32.totalorder %s32, 1
      %p337 = por %p335, %p336
      %p338 = scmp.ne.s32.totalorder %s330, %s333
      %p339 = scmp.eq.s32.totalorder %s32, 0
      %p340 = por %p338, %p339
      %p341 = scmp.ne.s32.totalorder %s330, %s333
      %p342 = scmp.eq.s32.totalorder %s37, 1
      %p343 = por %p341, %p342
      %p344 = scmp.ne.s32.totalorder %s333, %s334
      %p345 = scmp.eq.s32.totalorder %s37, 0
      %p346 = por %p344, %p345
      %p347 = scmp.ne.s32.totalorder %s333, %s334
      %p348 = scmp.eq.s32.totalorder %s38, 1
      %p349 = por %p347, %p348
      %p351 = scmp.ne.s32.totalorder %s334, %s350
      %p352 = scmp.eq.s32.totalorder %s38, 0
      %p353 = por %p351, %p352
      %s354 = ssub.s32 %s39, %s51
      %p355 = scmp.eq.s32.totalorder %s354, 0
      %s357 = sadd.s32 %s356, 1
      %s358 = scalar_select %p355, %s356, %s357
      %p361 = pneg %p355
      %p362 = scmp.eq.s32.totalorder %s32, 1
      %p363 = por %p361, %p362
      %p364 = scmp.ne.s32.totalorder %s356, %s359
      %p365 = scmp.eq.s32.totalorder %s32, 0
      %p366 = por %p364, %p365
      %p367 = scmp.ne.s32.totalorder %s356, %s359
      %p368 = scmp.eq.s32.totalorder %s37, 1
      %p369 = por %p367, %p368
      %p370 = scmp.ne.s32.totalorder %s359, %s360
      %p371 = scmp.eq.s32.totalorder %s37, 0
      %p372 = por %p370, %p371
      %p373 = scmp.ne.s32.totalorder %s359, %s360
      %p374 = scmp.eq.s32.totalorder %s38, 1
      %p375 = por %p373, %p374
      %p377 = scmp.ne.s32.totalorder %s360, %s376
      %p378 = scmp.eq.s32.totalorder %s38, 0
      %p379 = por %p377, %p378
      %p380 = scmp.le.s32.totalorder 1, %s32
      %p381 = scmp.lt.s32.totalorder %s32, 3
      %p382 = pnand %p380, %p381
      %p383 = pneg %p382
      // Predicated region
      $region9: #{tpu_custom_call.1} parent=5 // pred_check
        _
      $region10: #{tpu_custom_call.1} parent=5 // pred_check_branch
        %385 = sbr.rel (%p382) target = $region12
      $region11: #{tpu_custom_call.1} parent=5 // pred_region
        %s386 = ssub.s32 %s32, 1
        // Predicated region
        $region13: #{tpu_custom_call.1} parent=11 // pred_check
          %p387 = pneg %p65
        $region14: #{tpu_custom_call.1} parent=11 // pred_check_branch
          %389 = sbr.rel (%p387) target = $region16
        $region15: #{tpu_custom_call.1} parent=11 // pred_region
          _
        $region16: #{tpu_custom_call.1} parent=11 // pred_fallthru
          _
        // Predicated region
        $region17: #{tpu_custom_call.1} parent=11 // pred_check
          %p390 = pneg %p86
        $region18: #{tpu_custom_call.1} parent=11 // pred_check_branch
          %392 = sbr.rel (%p390) target = $region20
        $region19: #{tpu_custom_call.1} parent=11 // pred_region
          _
        $region20: #{tpu_custom_call.1} parent=11 // pred_fallthru
          _
        // Predicated region
        $region21: #{tpu_custom_call.1} parent=11 // pred_check
          %p393 = pneg %p112
        $region22: #{tpu_custom_call.1} parent=11 // pred_check_branch
          %395 = sbr.rel (%p393) target = $region24
        $region23: #{tpu_custom_call.1} parent=11 // pred_region
          %s396 = smul.u32 2, %s41
          %p397 = scmp.lt.s32.totalorder %s396, 1
          %s398 = scalar_select %p397, %s396, 1
          %s399 = smul.addr %s398, 2
          %s400 = smul.addr %s399, 4
          %s401 = scalar_lea.vmem %s2, %s400
          %s402 = smul.u32 2, %s41
        $region24: #{tpu_custom_call.1} parent=11 // pred_fallthru
          _
        // Predicated region
        $region25: #{tpu_custom_call.1} parent=11 // pred_check
          %p403 = pneg %p138
        $region26: #{tpu_custom_call.1} parent=11 // pred_check_branch
          %405 = sbr.rel (%p403) target = $region28
        $region27: #{tpu_custom_call.1} parent=11 // pred_region
          %s406 = smul.u32 2, %s41
          %s408 = ssub.s32 256, 256
          %409 = vsyncadd [#allocation3], %s408
          %s410 = smul.addr %s406, 2
          %s411 = smul.addr %s410, 64
          %s412 = scalar_lea.hbm %s3, %s411
          %s413 = sshll.u32 [#allocation2], 4
          %s414 = int_to_ptr.vmem [resolvable:$true] %s413
          %419 = dma.hbm_to_vmem [thread:$0]  %s412, 256, %s414, [#allocation3], 64, 64, 4
        $region28: #{tpu_custom_call.1} parent=11 // pred_fallthru
          _
      $region12: #{tpu_custom_call.1} parent=5 // pred_fallthru
        _
      %p420 = scmp.lt.s32.totalorder %s32, 2
      // Predicated region
      $region29: #{tpu_custom_call.1} parent=5 // pred_check
        %p421 = pneg %p420
      $region30: #{tpu_custom_call.1} parent=5 // pred_check_branch
        %423 = sbr.rel (%p421) target = $region32
      $region31: #{tpu_custom_call.1} parent=5 // pred_region
        // Predicated region
        $region33: #{tpu_custom_call.1} parent=31 // pred_check
          %p424 = pneg %p158
        $region34: #{tpu_custom_call.1} parent=31 // pred_check_branch
          %426 = sbr.rel (%p424) target = $region36
        $region35: #{tpu_custom_call.1} parent=31 // pred_region
          %s427 = sand.u32 %s32, 1
          %s428 = scalar_lea.sflag [#allocation6], %s427
          %s429 = sand.u32 %s148, 1
          %s430 = smul.addr %s429, 64
          %s431 = scalar_lea.vmem [#allocation5], %s430
          %s433 = ssub.s32 1024, 1024
          %434 = vsyncadd %s428, %s433
          %s435 = smul.addr %s40, 16
          %s436 = smul.addr %s435, 64
          %s437 = scalar_lea.hbm %s4, %s436
          %s438 = sshll.u32 %s431, 4
          %s439 = int_to_ptr.vmem [resolvable:$true] %s438
          %444 = dma.hbm_to_vmem [thread:$0]  %s437, 1024, %s439, %s428, 64, 64, 4
        $region36: #{tpu_custom_call.1} parent=31 // pred_fallthru
          _
        // Predicated region
        $region37: #{tpu_custom_call.1} parent=31 // pred_check
          %p445 = pneg %p184
        $region38: #{tpu_custom_call.1} parent=31 // pred_check_branch
          %447 = sbr.rel (%p445) target = $region40
        $region39: #{tpu_custom_call.1} parent=31 // pred_region
          %s448 = sand.u32 %s32, 1
          %s449 = scalar_lea.sflag [#allocation6], %s448
          %s450 = sand.u32 %s174, 1
          %s451 = smul.addr %s450, 64
          %s452 = scalar_lea.vmem [#allocation7], %s451
          %s454 = ssub.s32 1024, 1024
          %455 = vsyncadd %s449, %s454
          %s456 = smul.addr %s40, 16
          %s457 = smul.addr %s456, 64
          %s458 = scalar_lea.hbm %s5, %s457
          %s459 = sshll.u32 %s452, 4
          %s460 = int_to_ptr.vmem [resolvable:$true] %s459
          %465 = dma.hbm_to_vmem [thread:$0]  %s458, 1024, %s460, %s449, 64, 64, 4
        $region40: #{tpu_custom_call.1} parent=31 // pred_fallthru
          _
        // Predicated region
        $region41: #{tpu_custom_call.1} parent=31 // pred_check
          %p466 = pneg %p210
        $region42: #{tpu_custom_call.1} parent=31 // pred_check_branch
          %468 = sbr.rel (%p466) target = $region44
        $region43: #{tpu_custom_call.1} parent=31 // pred_region
          %s469 = sand.u32 %s32, 1
          %s470 = scalar_lea.sflag [#allocation9], %s469
          %s471 = sand.u32 %s200, 1
          %s472 = smul.addr %s471, 64
          %s473 = scalar_lea.vmem [#allocation8], %s472
          %s475 = ssub.s32 1024, 1024
          %476 = vsyncadd %s470, %s475
          %s477 = smul.addr %s40, 16
          %s478 = smul.addr %s477, 64
          %s479 = scalar_lea.hbm %s6, %s478
          %s480 = sshll.u32 %s473, 4
          %s481 = int_to_ptr.vmem [resolvable:$true] %s480
          %486 = dma.hbm_to_vmem [thread:$0]  %s479, 1024, %s481, %s470, 64, 64, 4
        $region44: #{tpu_custom_call.1} parent=31 // pred_fallthru
          _
        // Predicated region
        $region45: #{tpu_custom_call.1} parent=31 // pred_check
          %p487 = pneg %p236
        $region46: #{tpu_custom_call.1} parent=31 // pred_check_branch
          %489 = sbr.rel (%p487) target = $region48
        $region47: #{tpu_custom_call.1} parent=31 // pred_region
          %s490 = sand.u32 %s32, 1
          %s491 = scalar_lea.sflag [#allocation9], %s490
          %s492 = sand.u32 %s226, 1
          %s493 = smul.addr %s492, 64
          %s494 = scalar_lea.vmem [#allocation10], %s493
          %s496 = ssub.s32 1024, 1024
          %497 = vsyncadd %s491, %s496
          %s498 = smul.addr %s40, 16
          %s499 = smul.addr %s498, 64
          %s500 = scalar_lea.hbm %s7, %s499
          %s501 = sshll.u32 %s494, 4
          %s502 = int_to_ptr.vmem [resolvable:$true] %s501
          %507 = dma.hbm_to_vmem [thread:$0]  %s500, 1024, %s502, %s491, 64, 64, 4
        $region48: #{tpu_custom_call.1} parent=31 // pred_fallthru
          _
        // Predicated region
        $region49: #{tpu_custom_call.1} parent=31 // pred_check
          %p508 = pneg %p262
        $region50: #{tpu_custom_call.1} parent=31 // pred_check_branch
          %510 = sbr.rel (%p508) target = $region52
        $region51: #{tpu_custom_call.1} parent=31 // pred_region
          %s511 = sand.u32 %s32, 1
          %s512 = scalar_lea.sflag [#allocation12], %s511
          %s513 = sand.u32 %s252, 1
          %s514 = smul.addr %s513, 128
          %s515 = scalar_lea.vmem [#allocation11], %s514
          %s517 = ssub.s32 2048, 2048
          %518 = vsyncadd %s512, %s517
          %s519 = smul.addr %s40, 32
          %s520 = smul.addr %s519, 64
          %s521 = scalar_lea.hbm %s8, %s520
          %s522 = sshll.u32 %s515, 4
          %s523 = int_to_ptr.vmem [resolvable:$true] %s522
          %528 = dma.hbm_to_vmem [thread:$0]  %s521, 2048, %s523, %s512, 128, 128, 8
        $region52: #{tpu_custom_call.1} parent=31 // pred_fallthru
          _
        // Predicated region
        $region53: #{tpu_custom_call.1} parent=31 // pred_check
          %p529 = pneg %p288
        $region54: #{tpu_custom_call.1} parent=31 // pred_check_branch
          %531 = sbr.rel (%p529) target = $region56
        $region55: #{tpu_custom_call.1} parent=31 // pred_region
          %s532 = sand.u32 %s32, 1
          %s533 = scalar_lea.sflag [#allocation12], %s532
          %s534 = sand.u32 %s278, 1
          %s535 = smul.addr %s534, 128
          %s536 = scalar_lea.vmem [#allocation13], %s535
          %s538 = ssub.s32 2048, 2048
          %539 = vsyncadd %s533, %s538
          %s540 = smul.addr %s40, 32
          %s541 = smul.addr %s540, 64
          %s542 = scalar_lea.hbm %s9, %s541
          %s543 = sshll.u32 %s536, 4
          %s544 = int_to_ptr.vmem [resolvable:$true] %s543
          %549 = dma.hbm_to_vmem [thread:$0]  %s542, 2048, %s544, %s533, 64, 64, 4
        $region56: #{tpu_custom_call.1} parent=31 // pred_fallthru
          _
        // Predicated region
        $region57: #{tpu_custom_call.1} parent=31 // pred_check
          %p550 = pneg %p314
        $region58: #{tpu_custom_call.1} parent=31 // pred_check_branch
          %552 = sbr.rel (%p550) target = $region60
        $region59: #{tpu_custom_call.1} parent=31 // pred_region
          %p553 = scmp.lt.s32.totalorder %s40, 1
          %s554 = scalar_select %p553, %s40, 1
          %s555 = smul.addr %s554, 2
          %s556 = smul.addr %s555, 8
          %s557 = scalar_lea.vmem %s10, %s556
        $region60: #{tpu_custom_call.1} parent=31 // pred_fallthru
          _
        // Predicated region
        $region61: #{tpu_custom_call.1} parent=31 // pred_check
          %p558 = pneg %p340
        $region62: #{tpu_custom_call.1} parent=31 // pred_check_branch
          %560 = sbr.rel (%p558) target = $region64
        $region63: #{tpu_custom_call.1} parent=31 // pred_region
          %s561 = sand.u32 %s330, 1
          %s562 = scalar_lea.sflag [#allocation15], %s561
          %s563 = sand.u32 %s330, 1
          %s564 = smul.addr %s563, 2
          %s565 = scalar_lea.vmem [#allocation14], %s564
          %s567 = ssub.s32 32, 32
          %568 = vsyncadd %s562, %s567
          %s569 = smul.addr %s40, 2
          %s570 = smul.addr %s569, 16
          %s571 = scalar_lea.hbm %s11, %s570
          %s573 = sshll.u32 %s565, 4
          %s574 = int_to_ptr.vmem [resolvable:$true] %s573
          %576 = dma.hbm_to_vmem [thread:$0]  %s571, 32, %s574, %s562
        $region64: #{tpu_custom_call.1} parent=31 // pred_fallthru
          _
      $region32: #{tpu_custom_call.1} parent=5 // pred_fallthru
        _
      %p577 = scmp.le.s32.totalorder 1, %s32
      %p578 = scmp.lt.s32.totalorder %s32, 3
      %p579 = pnand %p577, %p578
      %p580 = pneg %p579
      // Predicated region
      $region65: #{tpu_custom_call.1} parent=5 // pred_check
        _
      $region66: #{tpu_custom_call.1} parent=5 // pred_check_branch
        %582 = sbr.rel (%p579) target = $region68
      $region67: #{tpu_custom_call.1} parent=5 // pred_region
        %s583 = ssub.s32 %s32, 1
        // Predicated region
        $region69: #{tpu_custom_call.1} parent=67 // pred_check
          %p584 = pneg %p138
        $region70: #{tpu_custom_call.1} parent=67 // pred_check_branch
          %586 = sbr.rel (%p584) target = $region72
        $region71: #{tpu_custom_call.1} parent=67 // pred_region
          %587 = dma.done [#allocation3], 256
        $region72: #{tpu_custom_call.1} parent=67 // pred_fallthru
          _
        %s588 = sand.u32 %s37, 1
        %s589 = scalar_lea.sflag [#allocation6], %s588
        %s590 = sand.u32 %s151, 1
        %s591 = smul.addr %s590, 64
        %s592 = scalar_lea.vmem [#allocation5], %s591
        // Predicated region
        $region73: #{tpu_custom_call.1} parent=67 // pred_check
          %p593 = pneg %p164
        $region74: #{tpu_custom_call.1} parent=67 // pred_check_branch
          %595 = sbr.rel (%p593) target = $region76
        $region75: #{tpu_custom_call.1} parent=67 // pred_region
          %596 = dma.done %s589, 1024
        $region76: #{tpu_custom_call.1} parent=67 // pred_fallthru
          _
        %s597 = sand.u32 %s37, 1
        %s598 = scalar_lea.sflag [#allocation6], %s597
        %s599 = sand.u32 %s177, 1
        %s600 = smul.addr %s599, 64
        %s601 = scalar_lea.vmem [#allocation7], %s600
        // Predicated region
        $region77: #{tpu_custom_call.1} parent=67 // pred_check
          %p602 = pneg %p190
        $region78: #{tpu_custom_call.1} parent=67 // pred_check_branch
          %604 = sbr.rel (%p602) target = $region80
        $region79: #{tpu_custom_call.1} parent=67 // pred_region
          %605 = dma.done %s598, 1024
        $region80: #{tpu_custom_call.1} parent=67 // pred_fallthru
          _
        %s606 = sand.u32 %s37, 1
        %s607 = scalar_lea.sflag [#allocation9], %s606
        %s608 = sand.u32 %s203, 1
        %s609 = smul.addr %s608, 64
        %s610 = scalar_lea.vmem [#allocation8], %s609
        // Predicated region
        $region81: #{tpu_custom_call.1} parent=67 // pred_check
          %p611 = pneg %p216
        $region82: #{tpu_custom_call.1} parent=67 // pred_check_branch
          %613 = sbr.rel (%p611) target = $region84
        $region83: #{tpu_custom_call.1} parent=67 // pred_region
          %614 = dma.done %s607, 1024
        $region84: #{tpu_custom_call.1} parent=67 // pred_fallthru
          _
        %s615 = sand.u32 %s37, 1
        %s616 = scalar_lea.sflag [#allocation9], %s615
        %s617 = sand.u32 %s229, 1
        %s618 = smul.addr %s617, 64
        %s619 = scalar_lea.vmem [#allocation10], %s618
        // Predicated region
        $region85: #{tpu_custom_call.1} parent=67 // pred_check
          %p620 = pneg %p242
        $region86: #{tpu_custom_call.1} parent=67 // pred_check_branch
          %622 = sbr.rel (%p620) target = $region88
        $region87: #{tpu_custom_call.1} parent=67 // pred_region
          %623 = dma.done %s616, 1024
        $region88: #{tpu_custom_call.1} parent=67 // pred_fallthru
          _
        %s624 = sand.u32 %s37, 1
        %s625 = scalar_lea.sflag [#allocation12], %s624
        %s626 = sand.u32 %s255, 1
        %s627 = smul.addr %s626, 128
        %s628 = scalar_lea.vmem [#allocation11], %s627
        // Predicated region
        $region89: #{tpu_custom_call.1} parent=67 // pred_check
          %p629 = pneg %p268
        $region90: #{tpu_custom_call.1} parent=67 // pred_check_branch
          %631 = sbr.rel (%p629) target = $region92
        $region91: #{tpu_custom_call.1} parent=67 // pred_region
          %632 = dma.done %s625, 2048
        $region92: #{tpu_custom_call.1} parent=67 // pred_fallthru
          _
        %s633 = sand.u32 %s37, 1
        %s634 = scalar_lea.sflag [#allocation12], %s633
        %s635 = sand.u32 %s281, 1
        %s636 = smul.addr %s635, 128
        %s637 = scalar_lea.vmem [#allocation13], %s636
        // Predicated region
        $region93: #{tpu_custom_call.1} parent=67 // pred_check
          %p638 = pneg %p294
        $region94: #{tpu_custom_call.1} parent=67 // pred_check_branch
          %640 = sbr.rel (%p638) target = $region96
        $region95: #{tpu_custom_call.1} parent=67 // pred_region
          %641 = dma.done %s634, 2048
        $region96: #{tpu_custom_call.1} parent=67 // pred_fallthru
          _
        %s642 = sand.u32 %s333, 1
        %s643 = scalar_lea.sflag [#allocation15], %s642
        %s644 = sand.u32 %s333, 1
        %s645 = smul.addr %s644, 2
        %s646 = scalar_lea.vmem [#allocation14], %s645
        // Predicated region
        $region97: #{tpu_custom_call.1} parent=67 // pred_check
          %p647 = pneg %p346
        $region98: #{tpu_custom_call.1} parent=67 // pred_check_branch
          %649 = sbr.rel (%p647) target = $region100
        $region99: #{tpu_custom_call.1} parent=67 // pred_region
          %650 = dma.done %s643, 32
        $region100: #{tpu_custom_call.1} parent=67 // pred_fallthru
          _
        %p651 = pneg %p65
        %p652 = pneg %p62
        %p653 = pneg %p86
        %p654 = pneg %p83
        %s655 = smul.u32 2, %s41
        %p656 = scmp.lt.s32.totalorder %s655, 1
        %s657 = scalar_select %p656, %s655, 1
        %s658 = smul.addr %s657, 2
        %s659 = smul.addr %s658, 4
        %s660 = scalar_lea.vmem %s2, %s659
        %p661 = pneg %p112
        %p662 = pneg %p109
        %p663 = pneg %p138
        %p664 = pneg %p135
        %s665 = sand.u32 %s37, 1
        %s666 = scalar_lea.sflag [#allocation6], %s665
        %s667 = sand.u32 %s151, 1
        %s668 = smul.addr %s667, 64
        %s669 = scalar_lea.vmem [#allocation5], %s668
        %p670 = pneg %p164
        %p671 = pneg %p161
        %s672 = sand.u32 %s37, 1
        %s673 = scalar_lea.sflag [#allocation6], %s672
        %s674 = sand.u32 %s177, 1
        %s675 = smul.addr %s674, 64
        %s676 = scalar_lea.vmem [#allocation7], %s675
        %p677 = pneg %p190
        %p678 = pneg %p187
        %s679 = sand.u32 %s37, 1
        %s680 = scalar_lea.sflag [#allocation9], %s679
        %s681 = sand.u32 %s203, 1
        %s682 = smul.addr %s681, 64
        %s683 = scalar_lea.vmem [#allocation8], %s682
        %p684 = pneg %p216
        %p685 = pneg %p213
        %s686 = sand.u32 %s37, 1
        %s687 = scalar_lea.sflag [#allocation9], %s686
        %s688 = sand.u32 %s229, 1
        %s689 = smul.addr %s688, 64
        %s690 = scalar_lea.vmem [#allocation10], %s689
        %p691 = pneg %p242
        %p692 = pneg %p239
        %s693 = sand.u32 %s37, 1
        %s694 = scalar_lea.sflag [#allocation12], %s693
        %s695 = sand.u32 %s255, 1
        %s696 = smul.addr %s695, 128
        %s697 = scalar_lea.vmem [#allocation11], %s696
        %p698 = pneg %p268
        %p699 = pneg %p265
        %s700 = sand.u32 %s37, 1
        %s701 = scalar_lea.sflag [#allocation12], %s700
        %s702 = sand.u32 %s281, 1
        %s703 = smul.addr %s702, 128
        %s704 = scalar_lea.vmem [#allocation13], %s703
        %p705 = pneg %p294
        %p706 = pneg %p291
        %p707 = scmp.lt.s32.totalorder %s42, 1
        %s708 = scalar_select %p707, %s42, 1
        %s709 = smul.addr %s708, 2
        %s710 = smul.addr %s709, 8
        %s711 = scalar_lea.vmem %s10, %s710
        %p712 = pneg %p320
        %p713 = pneg %p317
        %s714 = sand.u32 %s333, 1
        %s715 = scalar_lea.sflag [#allocation15], %s714
        %s716 = sand.u32 %s333, 1
        %s717 = smul.addr %s716, 2
        %s718 = scalar_lea.vmem [#allocation14], %s717
        %p719 = pneg %p346
        %p720 = pneg %p343
        %p721 = pneg %p372
        %p722 = pneg %p369
        %s723 = smul.u32 2, %s41
        %p724 = scmp.lt.s32.totalorder %s723, 1
        %s725 = scalar_select %p724, %s723, 1
        %s726 = smul.addr %s725, 2
        %s727 = smul.addr %s726, 4
        %s728 = scalar_lea.vmem %s2, %s727
        %s729 = smul.u32 2, %s41
        %s730 = smul.u32 2, %s41
        %p731 = scmp.lt.s32.totalorder %s42, 1
        %s732 = scalar_select %p731, %s42, 1
        %s733 = smul.addr %s732, 2
        %s734 = smul.addr %s733, 8
        %s735 = scalar_lea.vmem %s10, %s734
        %s736 = smul.u32 2, %s41
        %p738 = scmp.eq.s32.totalorder %s42, 0
        // Predicated region
        $region101: #{tpu_custom_call.1} parent=67 // pred_check
          %p739 = pneg %p738
        $region102: #{tpu_custom_call.1} parent=67 // pred_check_branch
          %741 = sbr.rel (%p739) target = $region104
        $region103: #{tpu_custom_call.1} parent=67 // pred_region
          %v742 = vld [vmem:[%s0] sm:$0xff]
          %v743 = vld [vmem:[%s0 + $0x8] sm:$0xff]
          %744 = vst [vmem:[#allocation16] sm:$0xff] %v742
          %745 = vst [vmem:[#allocation16 + $0x8] sm:$0xff] %v743
          %746 = vst [vmem:[#allocation16 + $0x10] sm:$0xff] %v742
          %747 = vst [vmem:[#allocation16 + $0x18] sm:$0xff] %v743
        $region104: #{tpu_custom_call.1} parent=67 // pred_fallthru
          _
        %v748 = vld [vmem:[#allocation16] sm:$0xff]
        %v749 = vld [vmem:[#allocation16 + $0x8] sm:$0xff]
        %v750 = vld [vmem:[#allocation16 + $0x10] sm:$0xff]
        %v751 = vld [vmem:[#allocation16 + $0x18] sm:$0xff]
        %v752 = vld [vmem:[%s1] sm:$0xff]
        %v753 = vld [vmem:[%s1 + $0x8] sm:$0xff]
        %v754 = vld [vmem:[#allocation2] sm:$0xf]
        %v755 = vld [vmem:[#allocation2 + $0x4] sm:$0xf]
        %v756 = vld [vmem:[#allocation2 + $0x8] sm:$0xf]
        %v757 = vld [vmem:[#allocation2 + $0xc] sm:$0xf]
        %v758 = vunpack.c.l.bf16 %v754
        %v759 = vunpack.c.l.bf16 %v755
        %v760 = vunpack.c.l.bf16 %v756
        %v761 = vunpack.c.l.bf16 %v757
        %v762 = vld [vmem:[%s735] sm:$0xff]
        %v763 = vld [vmem:[%s735 + $0x8] sm:$0x1]
        %v764 = vld [vmem:[%s646] sm:$0x3]
        %v765 = vadd.f32 %v748, %v752
        %v766 = vadd.f32 %v749, %v753
        %v767 = vadd.f32 %v750, %v752
        %v768 = vadd.f32 %v751, %v753
        %v769 = vpack.c.bf16 %v766, %v765
        %v770 = vpack.c.bf16 %v768, %v767
        %v771 = vld [vmem:[%s728] sm:$0xf]
        %v772 = vld [vmem:[%s728 + $0x4] sm:$0xf]
        %v773 = vld [vmem:[%s728 + $0x8] sm:$0xf]
        %v774 = vld [vmem:[%s728 + $0xc] sm:$0xf]
        %v775 = vld [vmem:[%s592] sm:$0xf]
        %v776 = vld [vmem:[%s592 + $0x4] sm:$0xf]
        %v777 = vld [vmem:[%s592 + $0x8] sm:$0xf]
        %v778 = vld [vmem:[%s592 + $0xc] sm:$0xf]
        %v779 = vld [vmem:[%s592 + $0x10] sm:$0xf]
        %v780 = vld [vmem:[%s592 + $0x14] sm:$0xf]
        %v781 = vld [vmem:[%s592 + $0x18] sm:$0xf]
        %v782 = vld [vmem:[%s592 + $0x1c] sm:$0xf]
        %v783 = vld [vmem:[%s592 + $0x20] sm:$0xf]
        %v784 = vld [vmem:[%s592 + $0x24] sm:$0xf]
        %v785 = vld [vmem:[%s592 + $0x28] sm:$0xf]
        %v786 = vld [vmem:[%s592 + $0x2c] sm:$0xf]
        %v787 = vld [vmem:[%s592 + $0x30] sm:$0xf]
        %v788 = vld [vmem:[%s592 + $0x34] sm:$0xf]
        %v789 = vld [vmem:[%s592 + $0x38] sm:$0xf]
        %v790 = vld [vmem:[%s592 + $0x3c] sm:$0xf]
        %v791 = vlaneseq
        %v792 = vshrl.u32 %v791, 7
        %v793 = vsub.s32 0, %v792
        %v794 = vrot.slane %v762, %v793
        %v811 = vunpack.c.l.b16 %v775
        %v812 = vunpack.c.l.b16 %v776
        %v813 = vunpack.c.l.b16 %v777
        %v814 = vunpack.c.l.b16 %v778
        %v815 = vunpack.c.l.b16 %v779
        %v816 = vunpack.c.l.b16 %v780
        %v817 = vunpack.c.l.b16 %v781
        %v818 = vunpack.c.l.b16 %v782
        %v819 = vunpack.c.l.b16 %v783
        %v820 = vunpack.c.l.b16 %v784
        %v821 = vunpack.c.l.b16 %v785
        %v822 = vunpack.c.l.b16 %v786
        %v823 = vunpack.c.l.b16 %v787
        %v824 = vunpack.c.l.b16 %v788
        %v825 = vunpack.c.l.b16 %v789
        %v826 = vunpack.c.l.b16 %v790
        %v827 = vpack.c.b16 %v812, %v811
        %v828 = vpack.c.b16 %v814, %v813
        %v829 = vpack.c.b16 %v816, %v815
        %v830 = vpack.c.b16 %v818, %v817
        %v831 = vpack.c.b16 %v820, %v819
        %v832 = vpack.c.b16 %v822, %v821
        %v833 = vpack.c.b16 %v824, %v823
        %v834 = vpack.c.b16 %v826, %v825
        %843 = vmatprep.subr.bf16.mxu0 0
        %844 = vmatpush1.bf16.msra.mxu0 %v834
        %845 = vmatprep.subr.bf16.mxu0 0
        %846 = vmatpush1.bf16.msra.mxu0 %v833
        %847 = vmatprep.subr.bf16.mxu0 0
        %848 = vmatpush1.bf16.msra.mxu0 %v832
        %849 = vmatprep.subr.bf16.mxu0 0
        %850 = vmatpush1.bf16.msra.mxu0 %v831
        %851 = vmatprep.subr.bf16.mxu0 0
        %852 = vmatpush1.bf16.msra.mxu0 %v830
        %853 = vmatprep.subr.bf16.mxu0 0
        %854 = vmatpush1.bf16.msra.mxu0 %v829
        %855 = vmatprep.subr.bf16.mxu0 0
        %856 = vmatpush1.bf16.msra.mxu0 %v828
        %857 = vmatprep.subr.bf16.mxu0 0
        %858 = vmatpush1.bf16.msra.mxu0 %v827
        %859 = vmatprep.subr.bf16.mxu0 0
        %860 = vmatpush2.bf16.msra.mxu0 0
        %861 = vmatprep.subr.bf16.mxu0 0
        %862 = vmatpush2.bf16.msra.mxu0 0
        %863 = vmatprep.subr.bf16.mxu0 0
        %864 = vmatpush2.bf16.msra.mxu0 0
        %865 = vmatprep.subr.bf16.mxu0 0
        %866 = vmatpush2.bf16.msra.mxu0 0
        %867 = vmatprep.subr.bf16.mxu0 0
        %868 = vmatpush2.bf16.msra.mxu0 0
        %869 = vmatprep.subr.bf16.mxu0 0
        %870 = vmatpush2.bf16.msra.mxu0 0
        %871 = vmatprep.subr.bf16.mxu0 0
        %872 = vmatpush2.bf16.msra.mxu0 0
        %873 = vmatprep.subr.bf16.mxu0 0
        %874 = vmatpush2.bf16.msra.mxu0 0
        %875 = vmatprep.mubr.bf16.mxu0 0
        %876 = vmatmul.mubr.bf16.gmra.mxu0 %v769
        %v877 = vpop.f32.mrf.mxu0
        %v878 = vadd.f32 %v794, %v877
        %v879 = vpop.f32.mrf.mxu0
        %v880 = vpop.f32.mrf.mxu0
        %v881 = vadd.f32 %v794, %v880
        %v882 = vpop.f32.mrf.mxu0
        %883 = vmatprep.mubr.bf16.mxu0 0
        %884 = vmatmul.mubr.bf16.gmra.mxu0 %v770
        %v885 = vpop.f32.mrf.mxu0
        %v886 = vadd.f32 %v794, %v885
        %v887 = vpop.f32.mrf.mxu0
        %v888 = vpop.f32.mrf.mxu0
        %v889 = vadd.f32 %v794, %v888
        %v890 = vpop.f32.mrf.mxu0
        %891 = vdwg.mxu0
        %v892 = vld [vmem:[%s601] sm:$0xf]
        %v893 = vld [vmem:[%s601 + $0x4] sm:$0xf]
        %v894 = vld [vmem:[%s601 + $0x8] sm:$0xf]
        %v895 = vld [vmem:[%s601 + $0xc] sm:$0xf]
        %v896 = vld [vmem:[%s601 + $0x10] sm:$0xf]
        %v897 = vld [vmem:[%s601 + $0x14] sm:$0xf]
        %v898 = vld [vmem:[%s601 + $0x18] sm:$0xf]
        %v899 = vld [vmem:[%s601 + $0x1c] sm:$0xf]
        %v900 = vld [vmem:[%s601 + $0x20] sm:$0xf]
        %v901 = vld [vmem:[%s601 + $0x24] sm:$0xf]
        %v902 = vld [vmem:[%s601 + $0x28] sm:$0xf]
        %v903 = vld [vmem:[%s601 + $0x2c] sm:$0xf]
        %v904 = vld [vmem:[%s601 + $0x30] sm:$0xf]
        %v905 = vld [vmem:[%s601 + $0x34] sm:$0xf]
        %v906 = vld [vmem:[%s601 + $0x38] sm:$0xf]
        %v907 = vld [vmem:[%s601 + $0x3c] sm:$0xf]
        %v908 = vlaneseq
        %v909 = vshrl.u32 %v908, 7
        %v910 = vsub.s32 1, %v909
        %v911 = vrot.slane %v762, %v910
        %v916 = vunpack.c.l.b16 %v771
        %v917 = vunpack.c.l.b16 %v772
        %v918 = vunpack.c.l.b16 %v773
        %v919 = vunpack.c.l.b16 %v774
        %v920 = vpack.c.b16 %v917, %v916
        %v921 = vpack.c.b16 %v919, %v918
        %v940 = vunpack.c.l.b16 %v892
        %v941 = vunpack.c.l.b16 %v893
        %v942 = vunpack.c.l.b16 %v894
        %v943 = vunpack.c.l.b16 %v895
        %v944 = vunpack.c.l.b16 %v896
        %v945 = vunpack.c.l.b16 %v897
        %v946 = vunpack.c.l.b16 %v898
        %v947 = vunpack.c.l.b16 %v899
        %v948 = vunpack.c.l.b16 %v900
        %v949 = vunpack.c.l.b16 %v901
        %v950 = vunpack.c.l.b16 %v902
        %v951 = vunpack.c.l.b16 %v903
        %v952 = vunpack.c.l.b16 %v904
        %v953 = vunpack.c.l.b16 %v905
        %v954 = vunpack.c.l.b16 %v906
        %v955 = vunpack.c.l.b16 %v907
        %v956 = vpack.c.b16 %v941, %v940
        %v957 = vpack.c.b16 %v943, %v942
        %v958 = vpack.c.b16 %v945, %v944
        %v959 = vpack.c.b16 %v947, %v946
        %v960 = vpack.c.b16 %v949, %v948
        %v961 = vpack.c.b16 %v951, %v950
        %v962 = vpack.c.b16 %v953, %v952
        %v963 = vpack.c.b16 %v955, %v954
        %972 = vmatprep.subr.bf16.mxu0 0
        %973 = vmatpush1.bf16.msra.mxu0 %v963
        %974 = vmatprep.subr.bf16.mxu0 0
        %975 = vmatpush1.bf16.msra.mxu0 %v962
        %976 = vmatprep.subr.bf16.mxu0 0
        %977 = vmatpush1.bf16.msra.mxu0 %v961
        %978 = vmatprep.subr.bf16.mxu0 0
        %979 = vmatpush1.bf16.msra.mxu0 %v960
        %980 = vmatprep.subr.bf16.mxu0 0
        %981 = vmatpush1.bf16.msra.mxu0 %v959
        %982 = vmatprep.subr.bf16.mxu0 0
        %983 = vmatpush1.bf16.msra.mxu0 %v958
        %984 = vmatprep.subr.bf16.mxu0 0
        %985 = vmatpush1.bf16.msra.mxu0 %v957
        %986 = vmatprep.subr.bf16.mxu0 0
        %987 = vmatpush1.bf16.msra.mxu0 %v956
        %988 = vmatprep.subr.bf16.mxu0 0
        %989 = vmatpush2.bf16.msra.mxu0 0
        %990 = vmatprep.subr.bf16.mxu0 0
        %991 = vmatpush2.bf16.msra.mxu0 0
        %992 = vmatprep.subr.bf16.mxu0 0
        %993 = vmatpush2.bf16.msra.mxu0 0
        %994 = vmatprep.subr.bf16.mxu0 0
        %995 = vmatpush2.bf16.msra.mxu0 0
        %996 = vmatprep.subr.bf16.mxu0 0
        %997 = vmatpush2.bf16.msra.mxu0 0
        %998 = vmatprep.subr.bf16.mxu0 0
        %999 = vmatpush2.bf16.msra.mxu0 0
        %1000 = vmatprep.subr.bf16.mxu0 0
        %1001 = vmatpush2.bf16.msra.mxu0 0
        %1002 = vmatprep.subr.bf16.mxu0 0
        %1003 = vmatpush2.bf16.msra.mxu0 0
        %1004 = vmatprep.mubr.bf16.mxu0 0
        %1005 = vmatmul.mubr.bf16.gmra.mxu0 %v920
        %v1006 = vpop.f32.mrf.mxu0
        %v1007 = vadd.f32 %v911, %v1006
        %v1008 = vpop.f32.mrf.mxu0
        %v1009 = vpop.f32.mrf.mxu0
        %v1010 = vadd.f32 %v911, %v1009
        %v1011 = vpop.f32.mrf.mxu0
        %1012 = vmatprep.mubr.bf16.mxu0 0
        %1013 = vmatmul.mubr.bf16.gmra.mxu0 %v921
        %v1014 = vpop.f32.mrf.mxu0
        %v1015 = vadd.f32 %v911, %v1014
        %v1016 = vpop.f32.mrf.mxu0
        %v1017 = vpop.f32.mrf.mxu0
        %v1018 = vadd.f32 %v911, %v1017
        %v1019 = vpop.f32.mrf.mxu0
        %1020 = vdwg.mxu0
        %v1021 = vld [vmem:[%s610] sm:$0xf]
        %v1022 = vld [vmem:[%s610 + $0x4] sm:$0xf]
        %v1023 = vld [vmem:[%s610 + $0x8] sm:$0xf]
        %v1024 = vld [vmem:[%s610 + $0xc] sm:$0xf]
        %v1025 = vld [vmem:[%s610 + $0x10] sm:$0xf]
        %v1026 = vld [vmem:[%s610 + $0x14] sm:$0xf]
        %v1027 = vld [vmem:[%s610 + $0x18] sm:$0xf]
        %v1028 = vld [vmem:[%s610 + $0x1c] sm:$0xf]
        %v1029 = vld [vmem:[%s610 + $0x20] sm:$0xf]
        %v1030 = vld [vmem:[%s610 + $0x24] sm:$0xf]
        %v1031 = vld [vmem:[%s610 + $0x28] sm:$0xf]
        %v1032 = vld [vmem:[%s610 + $0x2c] sm:$0xf]
        %v1033 = vld [vmem:[%s610 + $0x30] sm:$0xf]
        %v1034 = vld [vmem:[%s610 + $0x34] sm:$0xf]
        %v1035 = vld [vmem:[%s610 + $0x38] sm:$0xf]
        %v1036 = vld [vmem:[%s610 + $0x3c] sm:$0xf]
        %v1037 = vlaneseq
        %v1038 = vshrl.u32 %v1037, 7
        %v1039 = vsub.s32 2, %v1038
        %v1040 = vrot.slane %v762, %v1039
        %v1057 = vunpack.c.l.b16 %v1021
        %v1058 = vunpack.c.l.b16 %v1022
        %v1059 = vunpack.c.l.b16 %v1023
        %v1060 = vunpack.c.l.b16 %v1024
        %v1061 = vunpack.c.l.b16 %v1025
        %v1062 = vunpack.c.l.b16 %v1026
        %v1063 = vunpack.c.l.b16 %v1027
        %v1064 = vunpack.c.l.b16 %v1028
        %v1065 = vunpack.c.l.b16 %v1029
        %v1066 = vunpack.c.l.b16 %v1030
        %v1067 = vunpack.c.l.b16 %v1031
        %v1068 = vunpack.c.l.b16 %v1032
        %v1069 = vunpack.c.l.b16 %v1033
        %v1070 = vunpack.c.l.b16 %v1034
        %v1071 = vunpack.c.l.b16 %v1035
        %v1072 = vunpack.c.l.b16 %v1036
        %v1073 = vpack.c.b16 %v1058, %v1057
        %v1074 = vpack.c.b16 %v1060, %v1059
        %v1075 = vpack.c.b16 %v1062, %v1061
        %v1076 = vpack.c.b16 %v1064, %v1063
        %v1077 = vpack.c.b16 %v1066, %v1065
        %v1078 = vpack.c.b16 %v1068, %v1067
        %v1079 = vpack.c.b16 %v1070, %v1069
        %v1080 = vpack.c.b16 %v1072, %v1071
        %1089 = vmatprep.subr.bf16.mxu0 0
        %1090 = vmatpush1.bf16.msra.mxu0 %v1080
        %1091 = vmatprep.subr.bf16.mxu0 0
        %1092 = vmatpush1.bf16.msra.mxu0 %v1079
        %1093 = vmatprep.subr.bf16.mxu0 0
        %1094 = vmatpush1.bf16.msra.mxu0 %v1078
        %1095 = vmatprep.subr.bf16.mxu0 0
        %1096 = vmatpush1.bf16.msra.mxu0 %v1077
        %1097 = vmatprep.subr.bf16.mxu0 0
        %1098 = vmatpush1.bf16.msra.mxu0 %v1076
        %1099 = vmatprep.subr.bf16.mxu0 0
        %1100 = vmatpush1.bf16.msra.mxu0 %v1075
        %1101 = vmatprep.subr.bf16.mxu0 0
        %1102 = vmatpush1.bf16.msra.mxu0 %v1074
        %1103 = vmatprep.subr.bf16.mxu0 0
        %1104 = vmatpush1.bf16.msra.mxu0 %v1073
        %1105 = vmatprep.subr.bf16.mxu0 0
        %1106 = vmatpush2.bf16.msra.mxu0 0
        %1107 = vmatprep.subr.bf16.mxu0 0
        %1108 = vmatpush2.bf16.msra.mxu0 0
        %1109 = vmatprep.subr.bf16.mxu0 0
        %1110 = vmatpush2.bf16.msra.mxu0 0
        %1111 = vmatprep.subr.bf16.mxu0 0
        %1112 = vmatpush2.bf16.msra.mxu0 0
        %1113 = vmatprep.subr.bf16.mxu0 0
        %1114 = vmatpush2.bf16.msra.mxu0 0
        %1115 = vmatprep.subr.bf16.mxu0 0
        %1116 = vmatpush2.bf16.msra.mxu0 0
        %1117 = vmatprep.subr.bf16.mxu0 0
        %1118 = vmatpush2.bf16.msra.mxu0 0
        %1119 = vmatprep.subr.bf16.mxu0 0
        %1120 = vmatpush2.bf16.msra.mxu0 0
        %1121 = vmatprep.mubr.bf16.mxu0 0
        %1122 = vmatmul.mubr.bf16.gmra.mxu0 %v920
        %v1123 = vpop.f32.mrf.mxu0
        %v1124 = vadd.f32 %v1040, %v1123
        %v1125 = vpop.f32.mrf.mxu0
        %v1126 = vpop.f32.mrf.mxu0
        %v1127 = vadd.f32 %v1040, %v1126
        %v1128 = vpop.f32.mrf.mxu0
        %1129 = vmatprep.mubr.bf16.mxu0 0
        %1130 = vmatmul.mubr.bf16.gmra.mxu0 %v921
        %v1131 = vpop.f32.mrf.mxu0
        %v1132 = vadd.f32 %v1040, %v1131
        %v1133 = vpop.f32.mrf.mxu0
        %v1134 = vpop.f32.mrf.mxu0
        %v1135 = vadd.f32 %v1040, %v1134
        %v1136 = vpop.f32.mrf.mxu0
        %1137 = vdwg.mxu0
        %v1138 = vpack.c.bf16 %v881, %v878
        %v1139 = vpack.c.bf16 %v889, %v886
        %v1140 = vpack.c.bf16 %v1010, %v1007
        %v1141 = vpack.c.bf16 %v1018, %v1015
        %v1142 = vpack.c.bf16 %v1127, %v1124
        %v1143 = vpack.c.bf16 %v1135, %v1132
        %1144 = vmatprep.subr.bf16.mxu0 0
        %1145 = vmatpush1.bf16.xpose.msra.mxu0 0
        %1146 = vmatprep.subr.bf16.mxu0 0
        %1147 = vmatpush1.bf16.xpose.msra.mxu0 0
        %1148 = vmatprep.subr.bf16.mxu0 0
        %1149 = vmatpush1.bf16.xpose.msra.mxu0 0
        %1150 = vmatprep.subr.bf16.mxu0 0
        %1151 = vmatpush1.bf16.xpose.msra.mxu0 0
        %1152 = vmatprep.subr.bf16.mxu0 0
        %1153 = vmatpush1.bf16.xpose.msra.mxu0 0
        %1154 = vmatprep.subr.bf16.mxu0 0
        %1155 = vmatpush1.bf16.xpose.msra.mxu0 0
        %1156 = vmatprep.subr.bf16.mxu0 0
        %1157 = vmatpush1.bf16.xpose.msra.mxu0 0
        %1158 = vmatprep.subr.bf16.mxu0 0
        %1159 = vmatpush1.bf16.xpose.msra.mxu0 %v1140
        %1160 = vmatprep.subr.bf16.mxu0 0
        %1161 = vmatpush2.bf16.xpose.msra.mxu0 0
        %1162 = vmatprep.subr.bf16.mxu0 0
        %1163 = vmatpush2.bf16.xpose.msra.mxu0 0
        %1164 = vmatprep.subr.bf16.mxu0 0
        %1165 = vmatpush2.bf16.xpose.msra.mxu0 0
        %1166 = vmatprep.subr.bf16.mxu0 0
        %1167 = vmatpush2.bf16.xpose.msra.mxu0 0
        %1168 = vmatprep.subr.bf16.mxu0 0
        %1169 = vmatpush2.bf16.xpose.msra.mxu0 0
        %1170 = vmatprep.subr.bf16.mxu0 0
        %1171 = vmatpush2.bf16.xpose.msra.mxu0 0
        %1172 = vmatprep.subr.bf16.mxu0 0
        %1173 = vmatpush2.bf16.xpose.msra.mxu0 0
        %1174 = vmatprep.subr.bf16.mxu0 0
        %1175 = vmatpush2.bf16.xpose.msra.mxu0 0
        %1176 = vmatprep.mubr.bf16.mxu0 0
        %1177 = vmatmul.mubr.bf16.gmra.mxu0 %v1138
        %v1178 = vpop.f32.mrf.mxu0
        %v1179 = vadd.f32 %v758, %v1178
        %v1180 = vpop.f32.mrf.mxu0
        %v1181 = vpop.f32.mrf.mxu0
        %v1182 = vadd.f32 %v759, %v1181
        %v1183 = vpop.f32.mrf.mxu0
        %1184 = vdwg.mxu0
        %1185 = vmatprep.subr.bf16.mxu0 0
        %1186 = vmatpush1.bf16.xpose.msra.mxu0 0
        %1187 = vmatprep.subr.bf16.mxu0 0
        %1188 = vmatpush1.bf16.xpose.msra.mxu0 0
        %1189 = vmatprep.subr.bf16.mxu0 0
        %1190 = vmatpush1.bf16.xpose.msra.mxu0 0
        %1191 = vmatprep.subr.bf16.mxu0 0
        %1192 = vmatpush1.bf16.xpose.msra.mxu0 0
        %1193 = vmatprep.subr.bf16.mxu0 0
        %1194 = vmatpush1.bf16.xpose.msra.mxu0 0
        %1195 = vmatprep.subr.bf16.mxu0 0
        %1196 = vmatpush1.bf16.xpose.msra.mxu0 0
        %1197 = vmatprep.subr.bf16.mxu0 0
        %1198 = vmatpush1.bf16.xpose.msra.mxu0 0
        %1199 = vmatprep.subr.bf16.mxu0 0
        %1200 = vmatpush1.bf16.xpose.msra.mxu0 %v1141
        %1201 = vmatprep.subr.bf16.mxu0 0
        %1202 = vmatpush2.bf16.xpose.msra.mxu0 0
        %1203 = vmatprep.subr.bf16.mxu0 0
        %1204 = vmatpush2.bf16.xpose.msra.mxu0 0
        %1205 = vmatprep.subr.bf16.mxu0 0
        %1206 = vmatpush2.bf16.xpose.msra.mxu0 0
        %1207 = vmatprep.subr.bf16.mxu0 0
        %1208 = vmatpush2.bf16.xpose.msra.mxu0 0
        %1209 = vmatprep.subr.bf16.mxu0 0
        %1210 = vmatpush2.bf16.xpose.msra.mxu0 0
        %1211 = vmatprep.subr.bf16.mxu0 0
        %1212 = vmatpush2.bf16.xpose.msra.mxu0 0
        %1213 = vmatprep.subr.bf16.mxu0 0
        %1214 = vmatpush2.bf16.xpose.msra.mxu0 0
        %1215 = vmatprep.subr.bf16.mxu0 0
        %1216 = vmatpush2.bf16.xpose.msra.mxu0 0
        %1217 = vmatprep.mubr.bf16.mxu0 0
        %1218 = vmatmul.mubr.bf16.gmra.mxu0 %v1139
        %v1219 = vpop.f32.mrf.mxu0
        %v1220 = vadd.f32 %v760, %v1219
        %v1221 = vpop.f32.mrf.mxu0
        %v1222 = vpop.f32.mrf.mxu0
        %v1223 = vadd.f32 %v761, %v1222
        %v1224 = vpop.f32.mrf.mxu0
        %1225 = vdwg.mxu0
        %vm1226 = vcmask 130048
        %v1227 = vsel %vm1226, %v1179, -inf
        %1228 = vmax.xlane.f32.xlu0 %v1227
        %v1229 = vpop.xlane.xlu0 %1228
        %v1230 = vsel %vm1226, %v1182, -inf
        %1231 = vmax.xlane.f32.xlu0 %v1230
        %v1232 = vpop.xlane.xlu0 %1231
        %v1233 = vsel %vm1226, %v1220, -inf
        %1234 = vmax.xlane.f32.xlu0 %v1233
        %v1235 = vpop.xlane.xlu0 %1234
        %v1236 = vsel %vm1226, %v1223, -inf
        %1237 = vmax.xlane.f32.xlu0 %v1236
        %v1238 = vpop.xlane.xlu0 %1237
        %v1239 = vsub.f32 %v1179, %v1229
        %v1240 = vsub.f32 %v1182, %v1232
        %v1241 = vsub.f32 %v1220, %v1235
        %v1242 = vsub.f32 %v1223, %v1238
        %v1243 = vmul.f32 %v1239, 1.442695
        %v1244 = vpow.pop %v1243
        %v1245 = vmul.f32 %v1240, 1.442695
        %v1246 = vpow.pop %v1245
        %v1247 = vmul.f32 %v1241, 1.442695
        %v1248 = vpow.pop %v1247
        %v1249 = vmul.f32 %v1242, 1.442695
        %v1250 = vpow.pop %v1249
        %v1251 = vsel %vm1226, %v1244, 0.0
        %1252 = vadd.xlane.f32.xlu0 %v1251
        %v1253 = vpop.xlane.xlu0 %1252
        %v1254 = vsel %vm1226, %v1246, 0.0
        %1255 = vadd.xlane.f32.xlu0 %v1254
        %v1256 = vpop.xlane.xlu0 %1255
        %v1257 = vsel %vm1226, %v1248, 0.0
        %1258 = vadd.xlane.f32.xlu0 %v1257
        %v1259 = vpop.xlane.xlu0 %1258
        %v1260 = vsel %vm1226, %v1250, 0.0
        %1261 = vadd.xlane.f32.xlu0 %v1260
        %v1262 = vpop.xlane.xlu0 %1261
        %v1263 = vrcp.pop %v1253
        %v1264 = vrcp.pop %v1256
        %v1265 = vrcp.pop %v1259
        %v1266 = vrcp.pop %v1262
        %v1267 = vmul.f32 %v1244, %v1263
        %v1268 = vmul.f32 %v1246, %v1264
        %v1269 = vmul.f32 %v1248, %v1265
        %v1270 = vmul.f32 %v1250, %v1266
        %v1271 = vpack.c.bf16 %v1268, %v1267
        %v1272 = vpack.c.bf16 %v1270, %v1269
        %v1274 = vsel %vm1226, %v1271, 0
        %1276 = vmatprep.subr.bf16.mxu0 0
        %1277 = vmatpush1.bf16.msra.mxu0 0
        %1278 = vmatprep.subr.bf16.mxu0 0
        %1279 = vmatpush1.bf16.msra.mxu0 0
        %1280 = vmatprep.subr.bf16.mxu0 0
        %1281 = vmatpush1.bf16.msra.mxu0 0
        %1282 = vmatprep.subr.bf16.mxu0 0
        %1283 = vmatpush1.bf16.msra.mxu0 0
        %1284 = vmatprep.subr.bf16.mxu0 0
        %1285 = vmatpush1.bf16.msra.mxu0 0
        %1286 = vmatprep.subr.bf16.mxu0 0
        %1287 = vmatpush1.bf16.msra.mxu0 0
        %1288 = vmatprep.subr.bf16.mxu0 0
        %1289 = vmatpush1.bf16.msra.mxu0 0
        %1290 = vmatprep.subr.bf16.mxu0 0
        %1291 = vmatpush1.bf16.msra.mxu0 %v1142
        %1292 = vmatprep.subr.bf16.mxu0 0
        %1293 = vmatpush2.bf16.msra.mxu0 0
        %1294 = vmatprep.subr.bf16.mxu0 0
        %1295 = vmatpush2.bf16.msra.mxu0 0
        %1296 = vmatprep.subr.bf16.mxu0 0
        %1297 = vmatpush2.bf16.msra.mxu0 0
        %1298 = vmatprep.subr.bf16.mxu0 0
        %1299 = vmatpush2.bf16.msra.mxu0 0
        %1300 = vmatprep.subr.bf16.mxu0 0
        %1301 = vmatpush2.bf16.msra.mxu0 0
        %1302 = vmatprep.subr.bf16.mxu0 0
        %1303 = vmatpush2.bf16.msra.mxu0 0
        %1304 = vmatprep.subr.bf16.mxu0 0
        %1305 = vmatpush2.bf16.msra.mxu0 0
        %1306 = vmatprep.subr.bf16.mxu0 0
        %1307 = vmatpush2.bf16.msra.mxu0 0
        %1308 = vmatprep.mubr.bf16.mxu0 0
        %1309 = vmatmul.mubr.bf16.gmra.mxu0 %v1274
        %v1310 = vpop.f32.mrf.mxu0
        %v1311 = vadd.f32 0.0, %v1310
        %v1312 = vpop.f32.mrf.mxu0
        %v1313 = vpop.f32.mrf.mxu0
        %v1314 = vadd.f32 0.0, %v1313
        %v1315 = vpop.f32.mrf.mxu0
        %1316 = vdwg.mxu0
        %v1318 = vsel %vm1226, %v1272, 0
        %1320 = vmatprep.subr.bf16.mxu0 0
        %1321 = vmatpush1.bf16.msra.mxu0 0
        %1322 = vmatprep.subr.bf16.mxu0 0
        %1323 = vmatpush1.bf16.msra.mxu0 0
        %1324 = vmatprep.subr.bf16.mxu0 0
        %1325 = vmatpush1.bf16.msra.mxu0 0
        %1326 = vmatprep.subr.bf16.mxu0 0
        %1327 = vmatpush1.bf16.msra.mxu0 0
        %1328 = vmatprep.subr.bf16.mxu0 0
        %1329 = vmatpush1.bf16.msra.mxu0 0
        %1330 = vmatprep.subr.bf16.mxu0 0
        %1331 = vmatpush1.bf16.msra.mxu0 0
        %1332 = vmatprep.subr.bf16.mxu0 0
        %1333 = vmatpush1.bf16.msra.mxu0 0
        %1334 = vmatprep.subr.bf16.mxu0 0
        %1335 = vmatpush1.bf16.msra.mxu0 %v1143
        %1336 = vmatprep.subr.bf16.mxu0 0
        %1337 = vmatpush2.bf16.msra.mxu0 0
        %1338 = vmatprep.subr.bf16.mxu0 0
        %1339 = vmatpush2.bf16.msra.mxu0 0
        %1340 = vmatprep.subr.bf16.mxu0 0
        %1341 = vmatpush2.bf16.msra.mxu0 0
        %1342 = vmatprep.subr.bf16.mxu0 0
        %1343 = vmatpush2.bf16.msra.mxu0 0
        %1344 = vmatprep.subr.bf16.mxu0 0
        %1345 = vmatpush2.bf16.msra.mxu0 0
        %1346 = vmatprep.subr.bf16.mxu0 0
        %1347 = vmatpush2.bf16.msra.mxu0 0
        %1348 = vmatprep.subr.bf16.mxu0 0
        %1349 = vmatpush2.bf16.msra.mxu0 0
        %1350 = vmatprep.subr.bf16.mxu0 0
        %1351 = vmatpush2.bf16.msra.mxu0 0
        %1352 = vmatprep.mubr.bf16.mxu0 0
        %1353 = vmatmul.mubr.bf16.gmra.mxu0 %v1318
        %v1354 = vpop.f32.mrf.mxu0
        %v1355 = vadd.f32 0.0, %v1354
        %v1356 = vpop.f32.mrf.mxu0
        %v1357 = vpop.f32.mrf.mxu0
        %v1358 = vadd.f32 0.0, %v1357
        %v1359 = vpop.f32.mrf.mxu0
        %1360 = vdwg.mxu0
        %v1361 = vpack.c.bf16 %v1314, %v1311
        %v1362 = vpack.c.bf16 %v1358, %v1355
        %v1363 = vld [vmem:[%s619] sm:$0xf]
        %v1364 = vld [vmem:[%s619 + $0x4] sm:$0xf]
        %v1365 = vld [vmem:[%s619 + $0x8] sm:$0xf]
        %v1366 = vld [vmem:[%s619 + $0xc] sm:$0xf]
        %v1367 = vld [vmem:[%s619 + $0x10] sm:$0xf]
        %v1368 = vld [vmem:[%s619 + $0x14] sm:$0xf]
        %v1369 = vld [vmem:[%s619 + $0x18] sm:$0xf]
        %v1370 = vld [vmem:[%s619 + $0x1c] sm:$0xf]
        %v1371 = vld [vmem:[%s619 + $0x20] sm:$0xf]
        %v1372 = vld [vmem:[%s619 + $0x24] sm:$0xf]
        %v1373 = vld [vmem:[%s619 + $0x28] sm:$0xf]
        %v1374 = vld [vmem:[%s619 + $0x2c] sm:$0xf]
        %v1375 = vld [vmem:[%s619 + $0x30] sm:$0xf]
        %v1376 = vld [vmem:[%s619 + $0x34] sm:$0xf]
        %v1377 = vld [vmem:[%s619 + $0x38] sm:$0xf]
        %v1378 = vld [vmem:[%s619 + $0x3c] sm:$0xf]
        %v1379 = vlaneseq
        %v1380 = vshrl.u32 %v1379, 7
        %v1381 = vsub.s32 3, %v1380
        %v1382 = vrot.slane %v762, %v1381
        %v1399 = vunpack.c.l.b16 %v1363
        %v1400 = vunpack.c.l.b16 %v1364
        %v1401 = vunpack.c.l.b16 %v1365
        %v1402 = vunpack.c.l.b16 %v1366
        %v1403 = vunpack.c.l.b16 %v1367
        %v1404 = vunpack.c.l.b16 %v1368
        %v1405 = vunpack.c.l.b16 %v1369
        %v1406 = vunpack.c.l.b16 %v1370
        %v1407 = vunpack.c.l.b16 %v1371
        %v1408 = vunpack.c.l.b16 %v1372
        %v1409 = vunpack.c.l.b16 %v1373
        %v1410 = vunpack.c.l.b16 %v1374
        %v1411 = vunpack.c.l.b16 %v1375
        %v1412 = vunpack.c.l.b16 %v1376
        %v1413 = vunpack.c.l.b16 %v1377
        %v1414 = vunpack.c.l.b16 %v1378
        %v1415 = vpack.c.b16 %v1400, %v1399
        %v1416 = vpack.c.b16 %v1402, %v1401
        %v1417 = vpack.c.b16 %v1404, %v1403
        %v1418 = vpack.c.b16 %v1406, %v1405
        %v1419 = vpack.c.b16 %v1408, %v1407
        %v1420 = vpack.c.b16 %v1410, %v1409
        %v1421 = vpack.c.b16 %v1412, %v1411
        %v1422 = vpack.c.b16 %v1414, %v1413
        %1431 = vmatprep.subr.bf16.mxu0 0
        %1432 = vmatpush1.bf16.msra.mxu0 %v1422
        %1433 = vmatprep.subr.bf16.mxu0 0
        %1434 = vmatpush1.bf16.msra.mxu0 %v1421
        %1435 = vmatprep.subr.bf16.mxu0 0
        %1436 = vmatpush1.bf16.msra.mxu0 %v1420
        %1437 = vmatprep.subr.bf16.mxu0 0
        %1438 = vmatpush1.bf16.msra.mxu0 %v1419
        %1439 = vmatprep.subr.bf16.mxu0 0
        %1440 = vmatpush1.bf16.msra.mxu0 %v1418
        %1441 = vmatprep.subr.bf16.mxu0 0
        %1442 = vmatpush1.bf16.msra.mxu0 %v1417
        %1443 = vmatprep.subr.bf16.mxu0 0
        %1444 = vmatpush1.bf16.msra.mxu0 %v1416
        %1445 = vmatprep.subr.bf16.mxu0 0
        %1446 = vmatpush1.bf16.msra.mxu0 %v1415
        %1447 = vmatprep.subr.bf16.mxu0 0
        %1448 = vmatpush2.bf16.msra.mxu0 0
        %1449 = vmatprep.subr.bf16.mxu0 0
        %1450 = vmatpush2.bf16.msra.mxu0 0
        %1451 = vmatprep.subr.bf16.mxu0 0
        %1452 = vmatpush2.bf16.msra.mxu0 0
        %1453 = vmatprep.subr.bf16.mxu0 0
        %1454 = vmatpush2.bf16.msra.mxu0 0
        %1455 = vmatprep.subr.bf16.mxu0 0
        %1456 = vmatpush2.bf16.msra.mxu0 0
        %1457 = vmatprep.subr.bf16.mxu0 0
        %1458 = vmatpush2.bf16.msra.mxu0 0
        %1459 = vmatprep.subr.bf16.mxu0 0
        %1460 = vmatpush2.bf16.msra.mxu0 0
        %1461 = vmatprep.subr.bf16.mxu0 0
        %1462 = vmatpush2.bf16.msra.mxu0 0
        %1463 = vmatprep.mubr.bf16.mxu0 0
        %1464 = vmatmul.mubr.bf16.gmra.mxu0 %v1361
        %v1465 = vpop.f32.mrf.mxu0
        %v1466 = vadd.f32 %v1382, %v1465
        %v1467 = vpop.f32.mrf.mxu0
        %v1468 = vpop.f32.mrf.mxu0
        %v1469 = vadd.f32 %v1382, %v1468
        %v1470 = vpop.f32.mrf.mxu0
        %1471 = vmatprep.mubr.bf16.mxu0 0
        %1472 = vmatmul.mubr.bf16.gmra.mxu0 %v1362
        %v1473 = vpop.f32.mrf.mxu0
        %v1474 = vadd.f32 %v1382, %v1473
        %v1475 = vpop.f32.mrf.mxu0
        %v1476 = vpop.f32.mrf.mxu0
        %v1477 = vadd.f32 %v1382, %v1476
        %v1478 = vpop.f32.mrf.mxu0
        %1479 = vdwg.mxu0
        %v1480 = vadd.f32 %v748, %v1466
        %v1481 = vadd.f32 %v749, %v1469
        %v1482 = vadd.f32 %v750, %v1474
        %v1483 = vadd.f32 %v751, %v1477
        %1484 = vadd.xlane.f32.xlu0 %v1480
        %v1485 = vpop.xlane.xlu0 %1484
        %1486 = vadd.xlane.f32.xlu0 %v1481
        %v1487 = vpop.xlane.xlu0 %1486
        %1488 = vadd.xlane.f32.xlu0 %v1482
        %v1489 = vpop.xlane.xlu0 %1488
        %1490 = vadd.xlane.f32.xlu0 %v1483
        %v1491 = vpop.xlane.xlu0 %1490
        %v1492 = vrcp.pop 128.0
        %v1493 = vmul.f32 %v1485, %v1492
        %v1494 = vmul.f32 %v1487, %v1492
        %v1495 = vmul.f32 %v1489, %v1492
        %v1496 = vmul.f32 %v1491, %v1492
        %v1497 = vmul.f32 %v1480, %v1480
        %v1498 = vmul.f32 %v1481, %v1481
        %v1499 = vmul.f32 %v1482, %v1482
        %v1500 = vmul.f32 %v1483, %v1483
        %1501 = vadd.xlane.f32.xlu0 %v1497
        %v1502 = vpop.xlane.xlu0 %1501
        %1503 = vadd.xlane.f32.xlu0 %v1498
        %v1504 = vpop.xlane.xlu0 %1503
        %1505 = vadd.xlane.f32.xlu0 %v1499
        %v1506 = vpop.xlane.xlu0 %1505
        %1507 = vadd.xlane.f32.xlu0 %v1500
        %v1508 = vpop.xlane.xlu0 %1507
        %v1509 = vmul.f32 %v1502, %v1492
        %v1510 = vmul.f32 %v1504, %v1492
        %v1511 = vmul.f32 %v1506, %v1492
        %v1512 = vmul.f32 %v1508, %v1492
        %v1513 = vmul.f32 %v1493, %v1493
        %v1514 = vmul.f32 %v1494, %v1494
        %v1515 = vmul.f32 %v1495, %v1495
        %v1516 = vmul.f32 %v1496, %v1496
        %v1517 = vsub.f32 %v1509, %v1513
        %v1518 = vsub.f32 %v1510, %v1514
        %v1519 = vsub.f32 %v1511, %v1515
        %v1520 = vsub.f32 %v1512, %v1516
        %v1521 = vmax.f32 %v1517, 0.0
        %v1522 = vmax.f32 %v1518, 0.0
        %v1523 = vmax.f32 %v1519, 0.0
        %v1524 = vmax.f32 %v1520, 0.0
        %v1525 = vsub.f32 %v1480, %v1493
        %v1526 = vsub.f32 %v1481, %v1494
        %v1527 = vsub.f32 %v1482, %v1495
        %v1528 = vsub.f32 %v1483, %v1496
        %v1529 = vadd.f32 %v1521, 1e-05
        %v1530 = vadd.f32 %v1522, 1e-05
        %v1531 = vadd.f32 %v1523, 1e-05
        %v1532 = vadd.f32 %v1524, 1e-05
        %v1533 = vrsqrt.pop %v1529
        %v1534 = vrsqrt.pop %v1530
        %v1535 = vrsqrt.pop %v1531
        %v1536 = vrsqrt.pop %v1532
        %v1537 = vmul.f32 %v1525, %v1533
        %v1538 = vmul.f32 %v1526, %v1534
        %v1539 = vmul.f32 %v1527, %v1535
        %v1540 = vmul.f32 %v1528, %v1536
        %v1541 = vlaneseq
        %v1542 = vshrl.u32 %v1541, 7
        %v1543 = vsub.s32 4, %v1542
        %v1544 = vrot.slane %v762, %v1543
        %v1545 = vmul.f32 %v1537, %v1544
        %v1546 = vmul.f32 %v1538, %v1544
        %v1547 = vmul.f32 %v1539, %v1544
        %v1548 = vmul.f32 %v1540, %v1544
        %v1549 = vlaneseq
        %v1550 = vshrl.u32 %v1549, 7
        %v1551 = vsub.s32 5, %v1550
        %v1552 = vrot.slane %v762, %v1551
        %v1553 = vadd.f32 %v1545, %v1552
        %v1554 = vadd.f32 %v1546, %v1552
        %v1555 = vadd.f32 %v1547, %v1552
        %v1556 = vadd.f32 %v1548, %v1552
        %v1557 = vpack.c.bf16 %v1554, %v1553
        %v1558 = vpack.c.bf16 %v1556, %v1555
        %v1559 = vld [vmem:[%s628] sm:$0xff]
        %v1560 = vld [vmem:[%s628 + $0x8] sm:$0xff]
        %v1561 = vld [vmem:[%s628 + $0x10] sm:$0xff]
        %v1562 = vld [vmem:[%s628 + $0x18] sm:$0xff]
        %v1563 = vld [vmem:[%s628 + $0x20] sm:$0xff]
        %v1564 = vld [vmem:[%s628 + $0x28] sm:$0xff]
        %v1565 = vld [vmem:[%s628 + $0x30] sm:$0xff]
        %v1566 = vld [vmem:[%s628 + $0x38] sm:$0xff]
        %v1567 = vld [vmem:[%s628 + $0x40] sm:$0xff]
        %v1568 = vld [vmem:[%s628 + $0x48] sm:$0xff]
        %v1569 = vld [vmem:[%s628 + $0x50] sm:$0xff]
        %v1570 = vld [vmem:[%s628 + $0x58] sm:$0xff]
        %v1571 = vld [vmem:[%s628 + $0x60] sm:$0xff]
        %v1572 = vld [vmem:[%s628 + $0x68] sm:$0xff]
        %v1573 = vld [vmem:[%s628 + $0x70] sm:$0xff]
        %v1574 = vld [vmem:[%s628 + $0x78] sm:$0xff]
        %v1576 = vlaneseq
        %v1577 = vshrl.u32 %v1576, 7
        %v1578 = vsub.s32 0, %v1577
        %v1579 = vrot.slane %v764, %v1578
        %v1580 = vlaneseq
        %v1581 = vshrl.u32 %v1580, 7
        %v1582 = vsub.s32 1, %v1581
        %v1583 = vrot.slane %v764, %v1582
        %v1602 = vunpack.c.l.b16 %v1559
        %v1603 = vunpack.c.h.b16 %v1559
        %v1604 = vunpack.c.l.b16 %v1560
        %v1605 = vunpack.c.h.b16 %v1560
        %v1606 = vunpack.c.l.b16 %v1561
        %v1607 = vunpack.c.h.b16 %v1561
        %v1608 = vunpack.c.l.b16 %v1562
        %v1609 = vunpack.c.h.b16 %v1562
        %v1610 = vunpack.c.l.b16 %v1563
        %v1611 = vunpack.c.h.b16 %v1563
        %v1612 = vunpack.c.l.b16 %v1564
        %v1613 = vunpack.c.h.b16 %v1564
        %v1614 = vunpack.c.l.b16 %v1565
        %v1615 = vunpack.c.h.b16 %v1565
        %v1616 = vunpack.c.l.b16 %v1566
        %v1617 = vunpack.c.h.b16 %v1566
        %v1618 = vunpack.c.l.b16 %v1567
        %v1619 = vunpack.c.h.b16 %v1567
        %v1620 = vunpack.c.l.b16 %v1568
        %v1621 = vunpack.c.h.b16 %v1568
        %v1622 = vunpack.c.l.b16 %v1569
        %v1623 = vunpack.c.h.b16 %v1569
        %v1624 = vunpack.c.l.b16 %v1570
        %v1625 = vunpack.c.h.b16 %v1570
        %v1626 = vunpack.c.l.b16 %v1571
        %v1627 = vunpack.c.h.b16 %v1571
        %v1628 = vunpack.c.l.b16 %v1572
        %v1629 = vunpack.c.h.b16 %v1572
        %v1630 = vunpack.c.l.b16 %v1573
        %v1631 = vunpack.c.h.b16 %v1573
        %v1632 = vunpack.c.l.b16 %v1574
        %v1633 = vunpack.c.h.b16 %v1574
        %v1634 = vpack.c.b16 %v1604, %v1602
        %v1635 = vpack.c.b16 %v1605, %v1603
        %v1636 = vpack.c.b16 %v1608, %v1606
        %v1637 = vpack.c.b16 %v1609, %v1607
        %v1638 = vpack.c.b16 %v1612, %v1610
        %v1639 = vpack.c.b16 %v1613, %v1611
        %v1640 = vpack.c.b16 %v1616, %v1614
        %v1641 = vpack.c.b16 %v1617, %v1615
        %v1642 = vpack.c.b16 %v1620, %v1618
        %v1643 = vpack.c.b16 %v1621, %v1619
        %v1644 = vpack.c.b16 %v1624, %v1622
        %v1645 = vpack.c.b16 %v1625, %v1623
        %v1646 = vpack.c.b16 %v1628, %v1626
        %v1647 = vpack.c.b16 %v1629, %v1627
        %v1648 = vpack.c.b16 %v1632, %v1630
        %v1649 = vpack.c.b16 %v1633, %v1631
        %1666 = vmatprep.subr.bf16.mxu0 %v1649
        %1667 = vmatpush1.bf16.msra.mxu0 %v1648
        %1668 = vmatprep.subr.bf16.mxu0 %v1647
        %1669 = vmatpush1.bf16.msra.mxu0 %v1646
        %1670 = vmatprep.subr.bf16.mxu0 %v1645
        %1671 = vmatpush1.bf16.msra.mxu0 %v1644
        %1672 = vmatprep.subr.bf16.mxu0 %v1643
        %1673 = vmatpush1.bf16.msra.mxu0 %v1642
        %1674 = vmatprep.subr.bf16.mxu0 %v1641
        %1675 = vmatpush1.bf16.msra.mxu0 %v1640
        %1676 = vmatprep.subr.bf16.mxu0 %v1639
        %1677 = vmatpush1.bf16.msra.mxu0 %v1638
        %1678 = vmatprep.subr.bf16.mxu0 %v1637
        %1679 = vmatpush1.bf16.msra.mxu0 %v1636
        %1680 = vmatprep.subr.bf16.mxu0 %v1635
        %1681 = vmatpush1.bf16.msra.mxu0 %v1634
        %1682 = vmatprep.subr.bf16.mxu0 0
        %1683 = vmatpush2.bf16.msra.mxu0 0
        %1684 = vmatprep.subr.bf16.mxu0 0
        %1685 = vmatpush2.bf16.msra.mxu0 0
        %1686 = vmatprep.subr.bf16.mxu0 0
        %1687 = vmatpush2.bf16.msra.mxu0 0
        %1688 = vmatprep.subr.bf16.mxu0 0
        %1689 = vmatpush2.bf16.msra.mxu0 0
        %1690 = vmatprep.subr.bf16.mxu0 0
        %1691 = vmatpush2.bf16.msra.mxu0 0
        %1692 = vmatprep.subr.bf16.mxu0 0
        %1693 = vmatpush2.bf16.msra.mxu0 0
        %1694 = vmatprep.subr.bf16.mxu0 0
        %1695 = vmatpush2.bf16.msra.mxu0 0
        %1696 = vmatprep.subr.bf16.mxu0 0
        %1697 = vmatpush2.bf16.msra.mxu0 0
        %1698 = vmatprep.mubr.bf16.mxu0 0
        %1699 = vmatmul.mubr.bf16.gmra.mxu0 %v1557
        %v1700 = vpop.f32.mrf.mxu0
        %v1701 = vadd.f32 %v1579, %v1700
        %v1702 = vpop.f32.mrf.mxu0
        %v1703 = vadd.f32 %v1583, %v1702
        %v1704 = vpop.f32.mrf.mxu0
        %v1705 = vadd.f32 %v1579, %v1704
        %v1706 = vpop.f32.mrf.mxu0
        %v1707 = vadd.f32 %v1583, %v1706
        %1708 = vmatprep.mubr.bf16.mxu0 0
        %1709 = vmatmul.mubr.bf16.gmra.mxu0 %v1558
        %v1710 = vpop.f32.mrf.mxu0
        %v1711 = vadd.f32 %v1579, %v1710
        %v1712 = vpop.f32.mrf.mxu0
        %v1713 = vadd.f32 %v1583, %v1712
        %v1714 = vpop.f32.mrf.mxu0
        %v1715 = vadd.f32 %v1579, %v1714
        %v1716 = vpop.f32.mrf.mxu0
        %v1717 = vadd.f32 %v1583, %v1716
        %1718 = vdwg.mxu0
        %v1719 = vmax.f32 %v1701, 0.0
        %v1720 = vmax.f32 %v1703, 0.0
        %v1721 = vmax.f32 %v1705, 0.0
        %v1722 = vmax.f32 %v1707, 0.0
        %v1723 = vmax.f32 %v1711, 0.0
        %v1724 = vmax.f32 %v1713, 0.0
        %v1725 = vmax.f32 %v1715, 0.0
        %v1726 = vmax.f32 %v1717, 0.0
        %v1727 = vpack.c.bf16 %v1721, %v1719
        %v1728 = vpack.c.bf16 %v1722, %v1720
        %v1729 = vpack.c.bf16 %v1725, %v1723
        %v1730 = vpack.c.bf16 %v1726, %v1724
        %v1731 = vld [vmem:[%s637] sm:$0xf]
        %v1732 = vld [vmem:[%s637 + $0x4] sm:$0xf]
        %v1733 = vld [vmem:[%s637 + $0x8] sm:$0xf]
        %v1734 = vld [vmem:[%s637 + $0xc] sm:$0xf]
        %v1735 = vld [vmem:[%s637 + $0x10] sm:$0xf]
        %v1736 = vld [vmem:[%s637 + $0x14] sm:$0xf]
        %v1737 = vld [vmem:[%s637 + $0x18] sm:$0xf]
        %v1738 = vld [vmem:[%s637 + $0x1c] sm:$0xf]
        %v1739 = vld [vmem:[%s637 + $0x20] sm:$0xf]
        %v1740 = vld [vmem:[%s637 + $0x24] sm:$0xf]
        %v1741 = vld [vmem:[%s637 + $0x28] sm:$0xf]
        %v1742 = vld [vmem:[%s637 + $0x2c] sm:$0xf]
        %v1743 = vld [vmem:[%s637 + $0x30] sm:$0xf]
        %v1744 = vld [vmem:[%s637 + $0x34] sm:$0xf]
        %v1745 = vld [vmem:[%s637 + $0x38] sm:$0xf]
        %v1746 = vld [vmem:[%s637 + $0x3c] sm:$0xf]
        %v1747 = vld [vmem:[%s637 + $0x40] sm:$0xf]
        %v1748 = vld [vmem:[%s637 + $0x44] sm:$0xf]
        %v1749 = vld [vmem:[%s637 + $0x48] sm:$0xf]
        %v1750 = vld [vmem:[%s637 + $0x4c] sm:$0xf]
        %v1751 = vld [vmem:[%s637 + $0x50] sm:$0xf]
        %v1752 = vld [vmem:[%s637 + $0x54] sm:$0xf]
        %v1753 = vld [vmem:[%s637 + $0x58] sm:$0xf]
        %v1754 = vld [vmem:[%s637 + $0x5c] sm:$0xf]
        %v1755 = vld [vmem:[%s637 + $0x60] sm:$0xf]
        %v1756 = vld [vmem:[%s637 + $0x64] sm:$0xf]
        %v1757 = vld [vmem:[%s637 + $0x68] sm:$0xf]
        %v1758 = vld [vmem:[%s637 + $0x6c] sm:$0xf]
        %v1759 = vld [vmem:[%s637 + $0x70] sm:$0xf]
        %v1760 = vld [vmem:[%s637 + $0x74] sm:$0xf]
        %v1761 = vld [vmem:[%s637 + $0x78] sm:$0xf]
        %v1762 = vld [vmem:[%s637 + $0x7c] sm:$0xf]
        %v1763 = vlaneseq
        %v1764 = vshrl.u32 %v1763, 7
        %v1765 = vsub.s32 6, %v1764
        %v1766 = vrot.slane %v762, %v1765
        %v1799 = vunpack.c.l.b16 %v1731
        %v1800 = vunpack.c.l.b16 %v1732
        %v1801 = vunpack.c.l.b16 %v1733
        %v1802 = vunpack.c.l.b16 %v1734
        %v1803 = vunpack.c.l.b16 %v1735
        %v1804 = vunpack.c.l.b16 %v1736
        %v1805 = vunpack.c.l.b16 %v1737
        %v1806 = vunpack.c.l.b16 %v1738
        %v1807 = vunpack.c.l.b16 %v1739
        %v1808 = vunpack.c.l.b16 %v1740
        %v1809 = vunpack.c.l.b16 %v1741
        %v1810 = vunpack.c.l.b16 %v1742
        %v1811 = vunpack.c.l.b16 %v1743
        %v1812 = vunpack.c.l.b16 %v1744
        %v1813 = vunpack.c.l.b16 %v1745
        %v1814 = vunpack.c.l.b16 %v1746
        %v1815 = vunpack.c.l.b16 %v1747
        %v1816 = vunpack.c.l.b16 %v1748
        %v1817 = vunpack.c.l.b16 %v1749
        %v1818 = vunpack.c.l.b16 %v1750
        %v1819 = vunpack.c.l.b16 %v1751
        %v1820 = vunpack.c.l.b16 %v1752
        %v1821 = vunpack.c.l.b16 %v1753
        %v1822 = vunpack.c.l.b16 %v1754
        %v1823 = vunpack.c.l.b16 %v1755
        %v1824 = vunpack.c.l.b16 %v1756
        %v1825 = vunpack.c.l.b16 %v1757
        %v1826 = vunpack.c.l.b16 %v1758
        %v1827 = vunpack.c.l.b16 %v1759
        %v1828 = vunpack.c.l.b16 %v1760
        %v1829 = vunpack.c.l.b16 %v1761
        %v1830 = vunpack.c.l.b16 %v1762
        %v1831 = vpack.c.b16 %v1800, %v1799
        %v1832 = vpack.c.b16 %v1802, %v1801
        %v1833 = vpack.c.b16 %v1804, %v1803
        %v1834 = vpack.c.b16 %v1806, %v1805
        %v1835 = vpack.c.b16 %v1808, %v1807
        %v1836 = vpack.c.b16 %v1810, %v1809
        %v1837 = vpack.c.b16 %v1812, %v1811
        %v1838 = vpack.c.b16 %v1814, %v1813
        %v1839 = vpack.c.b16 %v1816, %v1815
        %v1840 = vpack.c.b16 %v1818, %v1817
        %v1841 = vpack.c.b16 %v1820, %v1819
        %v1842 = vpack.c.b16 %v1822, %v1821
        %v1843 = vpack.c.b16 %v1824, %v1823
        %v1844 = vpack.c.b16 %v1826, %v1825
        %v1845 = vpack.c.b16 %v1828, %v1827
        %v1846 = vpack.c.b16 %v1830, %v1829
        %1863 = vmatprep.subr.bf16.mxu0 0
        %1864 = vmatpush1.bf16.msra.mxu0 %v1838
        %1865 = vmatprep.subr.bf16.mxu0 0
        %1866 = vmatpush1.bf16.msra.mxu0 %v1837
        %1867 = vmatprep.subr.bf16.mxu0 0
        %1868 = vmatpush1.bf16.msra.mxu0 %v1836
        %1869 = vmatprep.subr.bf16.mxu0 0
        %1870 = vmatpush1.bf16.msra.mxu0 %v1835
        %1871 = vmatprep.subr.bf16.mxu0 0
        %1872 = vmatpush1.bf16.msra.mxu0 %v1834
        %1873 = vmatprep.subr.bf16.mxu0 0
        %1874 = vmatpush1.bf16.msra.mxu0 %v1833
        %1875 = vmatprep.subr.bf16.mxu0 0
        %1876 = vmatpush1.bf16.msra.mxu0 %v1832
        %1877 = vmatprep.subr.bf16.mxu0 0
        %1878 = vmatpush1.bf16.msra.mxu0 %v1831
        %1879 = vmatprep.subr.bf16.mxu0 0
        %1880 = vmatpush2.bf16.msra.mxu0 %v1846
        %1881 = vmatprep.subr.bf16.mxu0 0
        %1882 = vmatpush2.bf16.msra.mxu0 %v1845
        %1883 = vmatprep.subr.bf16.mxu0 0
        %1884 = vmatpush2.bf16.msra.mxu0 %v1844
        %1885 = vmatprep.subr.bf16.mxu0 0
        %1886 = vmatpush2.bf16.msra.mxu0 %v1843
        %1887 = vmatprep.subr.bf16.mxu0 0
        %1888 = vmatpush2.bf16.msra.mxu0 %v1842
        %1889 = vmatprep.subr.bf16.mxu0 0
        %1890 = vmatpush2.bf16.msra.mxu0 %v1841
        %1891 = vmatprep.subr.bf16.mxu0 0
        %1892 = vmatpush2.bf16.msra.mxu0 %v1840
        %1893 = vmatprep.subr.bf16.mxu0 0
        %1894 = vmatpush2.bf16.msra.mxu0 %v1839
        %1895 = vmatprep.mubr.bf16.mxu0 %v1728
        %1896 = vmatmul.mubr.bf16.gmra.mxu0 %v1727
        %v1897 = vpop.f32.mrf.mxu0
        %v1898 = vadd.f32 %v1766, %v1897
        %v1899 = vpop.f32.mrf.mxu0
        %v1900 = vpop.f32.mrf.mxu0
        %v1901 = vadd.f32 %v1766, %v1900
        %v1902 = vpop.f32.mrf.mxu0
        %1903 = vmatprep.mubr.bf16.mxu0 %v1730
        %1904 = vmatmul.mubr.bf16.gmra.mxu0 %v1729
        %v1905 = vpop.f32.mrf.mxu0
        %v1906 = vadd.f32 %v1766, %v1905
        %v1907 = vpop.f32.mrf.mxu0
        %v1908 = vpop.f32.mrf.mxu0
        %v1909 = vadd.f32 %v1766, %v1908
        %v1910 = vpop.f32.mrf.mxu0
        %1911 = vdwg.mxu0
        %v1912 = vadd.f32 %v1553, %v1898
        %v1913 = vadd.f32 %v1554, %v1901
        %v1914 = vadd.f32 %v1555, %v1906
        %v1915 = vadd.f32 %v1556, %v1909
        %1916 = vadd.xlane.f32.xlu0 %v1912
        %v1917 = vpop.xlane.xlu0 %1916
        %1918 = vadd.xlane.f32.xlu0 %v1913
        %v1919 = vpop.xlane.xlu0 %1918
        %1920 = vadd.xlane.f32.xlu0 %v1914
        %v1921 = vpop.xlane.xlu0 %1920
        %1922 = vadd.xlane.f32.xlu0 %v1915
        %v1923 = vpop.xlane.xlu0 %1922
        %v1924 = vmul.f32 %v1917, %v1492
        %v1925 = vmul.f32 %v1919, %v1492
        %v1926 = vmul.f32 %v1921, %v1492
        %v1927 = vmul.f32 %v1923, %v1492
        %v1928 = vmul.f32 %v1912, %v1912
        %v1929 = vmul.f32 %v1913, %v1913
        %v1930 = vmul.f32 %v1914, %v1914
        %v1931 = vmul.f32 %v1915, %v1915
        %1932 = vadd.xlane.f32.xlu0 %v1928
        %v1933 = vpop.xlane.xlu0 %1932
        %1934 = vadd.xlane.f32.xlu0 %v1929
        %v1935 = vpop.xlane.xlu0 %1934
        %1936 = vadd.xlane.f32.xlu0 %v1930
        %v1937 = vpop.xlane.xlu0 %1936
        %1938 = vadd.xlane.f32.xlu0 %v1931
        %v1939 = vpop.xlane.xlu0 %1938
        %v1940 = vmul.f32 %v1933, %v1492
        %v1941 = vmul.f32 %v1935, %v1492
        %v1942 = vmul.f32 %v1937, %v1492
        %v1943 = vmul.f32 %v1939, %v1492
        %v1944 = vmul.f32 %v1924, %v1924
        %v1945 = vmul.f32 %v1925, %v1925
        %v1946 = vmul.f32 %v1926, %v1926
        %v1947 = vmul.f32 %v1927, %v1927
        %v1948 = vsub.f32 %v1940, %v1944
        %v1949 = vsub.f32 %v1941, %v1945
        %v1950 = vsub.f32 %v1942, %v1946
        %v1951 = vsub.f32 %v1943, %v1947
        %v1952 = vmax.f32 %v1948, 0.0
        %v1953 = vmax.f32 %v1949, 0.0
        %v1954 = vmax.f32 %v1950, 0.0
        %v1955 = vmax.f32 %v1951, 0.0
        %v1956 = vsub.f32 %v1912, %v1924
        %v1957 = vsub.f32 %v1913, %v1925
        %v1958 = vsub.f32 %v1914, %v1926
        %v1959 = vsub.f32 %v1915, %v1927
        %v1960 = vadd.f32 %v1952, 1e-05
        %v1961 = vadd.f32 %v1953, 1e-05
        %v1962 = vadd.f32 %v1954, 1e-05
        %v1963 = vadd.f32 %v1955, 1e-05
        %v1964 = vrsqrt.pop %v1960
        %v1965 = vrsqrt.pop %v1961
        %v1966 = vrsqrt.pop %v1962
        %v1967 = vrsqrt.pop %v1963
        %v1968 = vmul.f32 %v1956, %v1964
        %v1969 = vmul.f32 %v1957, %v1965
        %v1970 = vmul.f32 %v1958, %v1966
        %v1971 = vmul.f32 %v1959, %v1967
        %v1972 = vlaneseq
        %v1973 = vshrl.u32 %v1972, 7
        %v1974 = vsub.s32 7, %v1973
        %v1975 = vrot.slane %v762, %v1974
        %v1976 = vmul.f32 %v1968, %v1975
        %v1977 = vmul.f32 %v1969, %v1975
        %v1978 = vmul.f32 %v1970, %v1975
        %v1979 = vmul.f32 %v1971, %v1975
        %v1980 = vlaneseq
        %v1981 = vshrl.u32 %v1980, 7
        %v1982 = vsub.s32 0, %v1981
        %v1983 = vrot.slane %v763, %v1982
        %v1984 = vadd.f32 %v1976, %v1983
        %v1985 = vadd.f32 %v1977, %v1983
        %v1986 = vadd.f32 %v1978, %v1983
        %v1987 = vadd.f32 %v1979, %v1983
        %1988 = vst [vmem:[#allocation16] sm:$0xff] %v1984
        %1989 = vst [vmem:[#allocation16 + $0x8] sm:$0xff] %v1985
        %1990 = vst [vmem:[#allocation16 + $0x10] sm:$0xff] %v1986
        %1991 = vst [vmem:[#allocation16 + $0x18] sm:$0xff] %v1987
        // Predicated region
        $region105: #{tpu_custom_call.1} parent=67 // pred_check
          %p1992 = pneg %p369
        $region106: #{tpu_custom_call.1} parent=67 // pred_check_branch
          %1994 = sbr.rel (%p1992) target = $region108
        $region107: #{tpu_custom_call.1} parent=67 // pred_region
          %s1995 = smul.u32 2, %s41
          %s1997 = ssub.s32 512, 512
          %1998 = vsyncadd [#allocation4], %s1997
          %s1999 = smul.addr %s1995, 2
          %s2000 = smul.addr %s1999, 128
          %s2001 = scalar_lea.hbm %s12, %s2000
          %s2002 = sshll.u32 [#allocation16], 4
          %s2003 = int_to_ptr.vmem [resolvable:$true] %s2002
          %2008 = dma.vmem_to_hbm [thread:$0]  %s2003, 512, %s2001, [#allocation4], 128, 128, 8
        $region108: #{tpu_custom_call.1} parent=67 // pred_fallthru
          _
        // Predicated region
        $region109: #{tpu_custom_call.1} parent=67 // pred_check
          %p2009 = pneg %p369
        $region110: #{tpu_custom_call.1} parent=67 // pred_check_branch
          %2011 = sbr.rel (%p2009) target = $region112
        $region111: #{tpu_custom_call.1} parent=67 // pred_region
          %2012 = dma.done [#allocation4], 512
        $region112: #{tpu_custom_call.1} parent=67 // pred_fallthru
          _
      $region68: #{tpu_custom_call.1} parent=5 // pred_fallthru
        _
      %p2013 = scmp.le.s32.totalorder 2, %s32
      // Predicated region
      $region113: #{tpu_custom_call.1} parent=5 // pred_check
        %p2014 = pneg %p2013
      $region114: #{tpu_custom_call.1} parent=5 // pred_check_branch
        %2016 = sbr.rel (%p2014) target = $region116
      $region115: #{tpu_custom_call.1} parent=5 // pred_region
        %s2017 = ssub.s32 %s32, 2
      $region116: #{tpu_custom_call.1} parent=5 // pred_fallthru
        _
    $region6: #{tpu_custom_call.1} parent=1 // loop_footer
      %s36 = sadd.s32 1, %s32
    $region7: #{tpu_custom_call.1} parent=1 // loop_footer_branch
      %31 = sbr.rel target = $region3
    $region8: #{tpu_custom_call.1} parent=1 // loop_exit
      _
    %2018 = vsyncpa [#allocation3], 1
    %s2019 = scalar_lea.sflag [#allocation3], 1
    %2020 = vsyncpa %s2019, 1
    %2021 = vsyncpa [#allocation6], 1
    %s2022 = scalar_lea.sflag [#allocation6], 1
    %2023 = vsyncpa %s2022, 1
    %2024 = vsyncpa [#allocation9], 1
    %s2025 = scalar_lea.sflag [#allocation9], 1
    %2026 = vsyncpa %s2025, 1
    %2027 = vsyncpa [#allocation12], 1
    %s2028 = scalar_lea.sflag [#allocation12], 1
    %2029 = vsyncpa %s2028, 1
    %2030 = vsyncpa [#allocation15], 1
    %s2031 = scalar_lea.sflag [#allocation15], 1
    %2032 = vsyncpa %s2031, 1
    %2033 = vsyncpa [#allocation4], 1
    %s2034 = scalar_lea.sflag [#allocation4], 1
    %2035 = vsyncpa %s2034, 1

// kernel: tpu_custom_call.1
$region0: #{tpu_custom_call.1}
  #allocation0 [shape = 'u32[]', space=smem, size = 0x4, offset = 0x4, fixed_abs, tag = 'smem constant byte address 0x4 - core index']
  #allocation1 [shape = 'u32[144,128]{1,0:T(1,128)}', space=vmem, size = 0x12000, scoped, tag = 'internal scratch']
  %s0 = inlined_call_operand.vmem [shape: f32[16,128], index: 0, kind: input, shape index: {}]
  %s1 = inlined_call_operand.vmem [shape: f32[16,128], index: 1, kind: input, shape index: {}]
  %s2 = inlined_call_operand.vmem [shape: bf16[2,16,128], index: 2, kind: input, shape index: {}]
  %s3 = inlined_call_operand.hbm [shape: bf16[2,16,16], index: 3, kind: input, shape index: {}]
  %s4 = inlined_call_operand.hbm [shape: bf16[2,128,128], index: 4, kind: input, shape index: {}]
  %s5 = inlined_call_operand.hbm [shape: bf16[2,128,128], index: 5, kind: input, shape index: {}]
  %s6 = inlined_call_operand.hbm [shape: bf16[2,128,128], index: 6, kind: input, shape index: {}]
  %s7 = inlined_call_operand.hbm [shape: bf16[2,128,128], index: 7, kind: input, shape index: {}]
  %s8 = inlined_call_operand.hbm [shape: bf16[2,128,256], index: 8, kind: input, shape index: {}]
  %s9 = inlined_call_operand.hbm [shape: bf16[2,256,128], index: 9, kind: input, shape index: {}]
  %s10 = inlined_call_operand.vmem [shape: f32[2,9,128], index: 10, kind: input, shape index: {}]
  %s11 = inlined_call_operand.hbm [shape: f32[2,1,256], index: 11, kind: input, shape index: {}]
  %s12 = inlined_call_operand.hbm [shape: f32[2,16,128], index: 12, kind: output, shape index: {}]
  %s13 = sld [smem:[#allocation0]]
  $region117: #{tpu_custom_call.1} parent=0
    _
  %s15 = ssub.s32 1, %s13
  %s16 = scalar_select 0, %s15, %s13
  $region1: #{tpu_custom_call.1} parent=0
    #allocation2 [shape = 'u8[8192]{0}', space=vmem, size = 0x2000, scoped, tag = 'input window, operand 3, single buffered']
    #allocation3 [shape = 's32[2]{0}', space=sflag, size = 0x8, scoped, tag = 'scoped memory for tpu_custom_call.1']
    #allocation4 [shape = 's32[2]{0}', space=sflag, size = 0x8, scoped, tag = 'scoped memory for tpu_custom_call.1']
    #allocation5 [shape = 'u8[65536]{0}', space=vmem, size = 0x10000, scoped, tag = 'input window, operand 4']
    #allocation6 [shape = 's32[2]{0}', space=sflag, size = 0x8, scoped, tag = 'scoped memory for tpu_custom_call.1']
    #allocation7 [shape = 'u8[65536]{0}', space=vmem, size = 0x10000, scoped, tag = 'input window, operand 5']
    #allocation8 [shape = 'u8[65536]{0}', space=vmem, size = 0x10000, scoped, tag = 'input window, operand 6']
    #allocation9 [shape = 's32[2]{0}', space=sflag, size = 0x8, scoped, tag = 'scoped memory for tpu_custom_call.1']
    #allocation10 [shape = 'u8[65536]{0}', space=vmem, size = 0x10000, scoped, tag = 'input window, operand 7']
    #allocation11 [shape = 'u8[131072]{0}', space=vmem, size = 0x20000, scoped, tag = 'input window, operand 8']
    #allocation12 [shape = 's32[2]{0}', space=sflag, size = 0x8, scoped, tag = 'scoped memory for tpu_custom_call.1']
    #allocation13 [shape = 'u8[131072]{0}', space=vmem, size = 0x20000, scoped, tag = 'input window, operand 9']
    #allocation14 [shape = 'u8[2048]{0}', space=vmem, size = 0x800, scoped, tag = 'input window, operand 11']
    #allocation15 [shape = 's32[2]{0}', space=sflag, size = 0x8, scoped, tag = 'scoped memory for tpu_custom_call.1']
    #allocation16 [shape = 'u8[16384]{0}', space=vmem, size = 0x4000, scoped, tag = 'output window, operand 0, single buffered']
    %17 = vsyncpa [#allocation3], 0
    %18 = vsyncpa [#allocation6], 0
    %s19 = scalar_lea.sflag [#allocation6], 1
    %20 = vsyncpa %s19, 0
    %21 = vsyncpa [#allocation9], 0
    %s22 = scalar_lea.sflag [#allocation9], 1
    %23 = vsyncpa %s22, 0
    %24 = vsyncpa [#allocation12], 0
    %s25 = scalar_lea.sflag [#allocation12], 1
    %26 = vsyncpa %s25, 0
    %27 = vsyncpa [#allocation15], 0
    %s28 = scalar_lea.sflag [#allocation15], 1
    %29 = vsyncpa %s28, 0
    %30 = vsyncpa [#allocation4], 0
    loop: start=0, step=1, limit=4
    $region2: #{tpu_custom_call.1} parent=1 // loop_pre_header
      _
    $region3: #{tpu_custom_call.1} parent=1 // loop_header
      %s32 = sphi 0, %s36
      %p33 = scmp.ge.s32.totalorder %s32, 4
      %s39 = sphi 0, %s51
      %s40 = sphi 0, %s47
      %s41 = sphi 0, %s39
      %s42 = sphi 0, %s40
      %s43 = sphi 0, %s41
      %s44 = sphi 0, %s42
      %s52 = sphi 0, %s52
      %s54 = sphi 0, %s52
      %s55 = sphi 0, %s54
      %s69 = sphi 0, %s55
      %s73 = sphi 0, %s73
      %s75 = sphi 0, %s73
      %s76 = sphi 0, %s75
      %s90 = sphi 0, %s76
      %s96 = sphi 0, %s98
      %s99 = sphi 0, %s96
      %s100 = sphi 0, %s99
      %s116 = sphi 0, %s100
      %s122 = sphi 0, %s124
      %s125 = sphi 0, %s122
      %s126 = sphi 0, %s125
      %s142 = sphi 0, %s126
      %s148 = sphi 0, %s150
      %s151 = sphi 0, %s148
      %s152 = sphi 0, %s151
      %s168 = sphi 0, %s152
      %s174 = sphi 0, %s176
      %s177 = sphi 0, %s174
      %s178 = sphi 0, %s177
      %s194 = sphi 0, %s178
      %s200 = sphi 0, %s202
      %s203 = sphi 0, %s200
      %s204 = sphi 0, %s203
      %s220 = sphi 0, %s204
      %s226 = sphi 0, %s228
      %s229 = sphi 0, %s226
      %s230 = sphi 0, %s229
      %s246 = sphi 0, %s230
      %s252 = sphi 0, %s254
      %s255 = sphi 0, %s252
      %s256 = sphi 0, %s255
      %s272 = sphi 0, %s256
      %s278 = sphi 0, %s280
      %s281 = sphi 0, %s278
      %s282 = sphi 0, %s281
      %s298 = sphi 0, %s282
      %s304 = sphi 0, %s306
      %s307 = sphi 0, %s304
      %s308 = sphi 0, %s307
      %s324 = sphi 0, %s308
      %s330 = sphi 0, %s332
      %s333 = sphi 0, %s330
      %s334 = sphi 0, %s333
      %s350 = sphi 0, %s334
      %s356 = sphi 0, %s358
      %s359 = sphi 0, %s356
      %s360 = sphi 0, %s359
      %s376 = sphi 0, %s360
    $region4: #{tpu_custom_call.1} parent=1 // loop_header_branch
      %35 = sbr.rel (%p33) target = $region8
    $region5: #{tpu_custom_call.1} parent=1 // loop_body
      %s37 = ssub.s32 %s32, 1
      %s38 = ssub.s32 %s32, 2
      %s45 = sadd.s32 1, %s40
      %p46 = scmp.ge.s32.totalorder %s45, 2
      %s47 = scalar_select %p46, 0, %s45
      %s48 = sadd.s32 1, %s39
      %s49 = scalar_select %p46, %s48, %s39
      %p50 = scmp.ge.s32.totalorder %s49, 1
      %s51 = scalar_select %p50, 0, %s49
      %s53 = sadd.s32 %s52, 1
      %p56 = scmp.eq.s32.totalorder %s32, 1
      %p57 = scmp.ne.s32.totalorder %s52, %s54
      %p58 = scmp.eq.s32.totalorder %s32, 0
      %p59 = por %p57, %p58
      %p60 = scmp.ne.s32.totalorder %s52, %s54
      %p61 = scmp.eq.s32.totalorder %s37, 1
      %p62 = por %p60, %p61
      %p63 = scmp.ne.s32.totalorder %s54, %s55
      %p64 = scmp.eq.s32.totalorder %s37, 0
      %p65 = por %p63, %p64
      %p66 = scmp.ne.s32.totalorder %s54, %s55
      %p67 = scmp.eq.s32.totalorder %s38, 1
      %p68 = por %p66, %p67
      %p70 = scmp.ne.s32.totalorder %s55, %s69
      %p71 = scmp.eq.s32.totalorder %s38, 0
      %p72 = por %p70, %p71
      %s74 = sadd.s32 %s73, 1
      %p77 = scmp.eq.s32.totalorder %s32, 1
      %p78 = scmp.ne.s32.totalorder %s73, %s75
      %p79 = scmp.eq.s32.totalorder %s32, 0
      %p80 = por %p78, %p79
      %p81 = scmp.ne.s32.totalorder %s73, %s75
      %p82 = scmp.eq.s32.totalorder %s37, 1
      %p83 = por %p81, %p82
      %p84 = scmp.ne.s32.totalorder %s75, %s76
      %p85 = scmp.eq.s32.totalorder %s37, 0
      %p86 = por %p84, %p85
      %p87 = scmp.ne.s32.totalorder %s75, %s76
      %p88 = scmp.eq.s32.totalorder %s38, 1
      %p89 = por %p87, %p88
      %p91 = scmp.ne.s32.totalorder %s76, %s90
      %p92 = scmp.eq.s32.totalorder %s38, 0
      %p93 = por %p91, %p92
      %s94 = ssub.s32 %s39, %s51
      %p95 = scmp.eq.s32.totalorder %s94, 0
      %s97 = sadd.s32 %s96, 1
      %s98 = scalar_select %p95, %s96, %s97
      %p101 = pneg %p95
      %p102 = scmp.eq.s32.totalorder %s32, 1
      %p103 = por %p101, %p102
      %p104 = scmp.ne.s32.totalorder %s96, %s99
      %p105 = scmp.eq.s32.totalorder %s32, 0
      %p106 = por %p104, %p105
      %p107 = scmp.ne.s32.totalorder %s96, %s99
      %p108 = scmp.eq.s32.totalorder %s37, 1
      %p109 = por %p107, %p108
      %p110 = scmp.ne.s32.totalorder %s99, %s100
      %p111 = scmp.eq.s32.totalorder %s37, 0
      %p112 = por %p110, %p111
      %p113 = scmp.ne.s32.totalorder %s99, %s100
      %p114 = scmp.eq.s32.totalorder %s38, 1
      %p115 = por %p113, %p114
      %p117 = scmp.ne.s32.totalorder %s100, %s116
      %p118 = scmp.eq.s32.totalorder %s38, 0
      %p119 = por %p117, %p118
      %s120 = ssub.s32 %s39, %s51
      %p121 = scmp.eq.s32.totalorder %s120, 0
      %s123 = sadd.s32 %s122, 1
      %s124 = scalar_select %p121, %s122, %s123
      %p127 = pneg %p121
      %p128 = scmp.eq.s32.totalorder %s32, 1
      %p129 = por %p127, %p128
      %p130 = scmp.ne.s32.totalorder %s122, %s125
      %p131 = scmp.eq.s32.totalorder %s32, 0
      %p132 = por %p130, %p131
      %p133 = scmp.ne.s32.totalorder %s122, %s125
      %p134 = scmp.eq.s32.totalorder %s37, 1
      %p135 = por %p133, %p134
      %p136 = scmp.ne.s32.totalorder %s125, %s126
      %p137 = scmp.eq.s32.totalorder %s37, 0
      %p138 = por %p136, %p137
      %p139 = scmp.ne.s32.totalorder %s125, %s126
      %p140 = scmp.eq.s32.totalorder %s38, 1
      %p141 = por %p139, %p140
      %p143 = scmp.ne.s32.totalorder %s126, %s142
      %p144 = scmp.eq.s32.totalorder %s38, 0
      %p145 = por %p143, %p144
      %s146 = ssub.s32 %s40, %s47
      %p147 = scmp.eq.s32.totalorder %s146, 0
      %s149 = sadd.s32 %s148, 1
      %s150 = scalar_select %p147, %s148, %s149
      %p153 = pneg %p147
      %p154 = scmp.eq.s32.totalorder %s32, 1
      %p155 = por %p153, %p154
      %p156 = scmp.ne.s32.totalorder %s148, %s151
      %p157 = scmp.eq.s32.totalorder %s32, 0
      %p158 = por %p156, %p157
      %p159 = scmp.ne.s32.totalorder %s148, %s151
      %p160 = scmp.eq.s32.totalorder %s37, 1
      %p161 = por %p159, %p160
      %p162 = scmp.ne.s32.totalorder %s151, %s152
      %p163 = scmp.eq.s32.totalorder %s37, 0
      %p164 = por %p162, %p163
      %p165 = scmp.ne.s32.totalorder %s151, %s152
      %p166 = scmp.eq.s32.totalorder %s38, 1
      %p167 = por %p165, %p166
      %p169 = scmp.ne.s32.totalorder %s152, %s168
      %p170 = scmp.eq.s32.totalorder %s38, 0
      %p171 = por %p169, %p170
      %s172 = ssub.s32 %s40, %s47
      %p173 = scmp.eq.s32.totalorder %s172, 0
      %s175 = sadd.s32 %s174, 1
      %s176 = scalar_select %p173, %s174, %s175
      %p179 = pneg %p173
      %p180 = scmp.eq.s32.totalorder %s32, 1
      %p181 = por %p179, %p180
      %p182 = scmp.ne.s32.totalorder %s174, %s177
      %p183 = scmp.eq.s32.totalorder %s32, 0
      %p184 = por %p182, %p183
      %p185 = scmp.ne.s32.totalorder %s174, %s177
      %p186 = scmp.eq.s32.totalorder %s37, 1
      %p187 = por %p185, %p186
      %p188 = scmp.ne.s32.totalorder %s177, %s178
      %p189 = scmp.eq.s32.totalorder %s37, 0
      %p190 = por %p188, %p189
      %p191 = scmp.ne.s32.totalorder %s177, %s178
      %p192 = scmp.eq.s32.totalorder %s38, 1
      %p193 = por %p191, %p192
      %p195 = scmp.ne.s32.totalorder %s178, %s194
      %p196 = scmp.eq.s32.totalorder %s38, 0
      %p197 = por %p195, %p196
      %s198 = ssub.s32 %s40, %s47
      %p199 = scmp.eq.s32.totalorder %s198, 0
      %s201 = sadd.s32 %s200, 1
      %s202 = scalar_select %p199, %s200, %s201
      %p205 = pneg %p199
      %p206 = scmp.eq.s32.totalorder %s32, 1
      %p207 = por %p205, %p206
      %p208 = scmp.ne.s32.totalorder %s200, %s203
      %p209 = scmp.eq.s32.totalorder %s32, 0
      %p210 = por %p208, %p209
      %p211 = scmp.ne.s32.totalorder %s200, %s203
      %p212 = scmp.eq.s32.totalorder %s37, 1
      %p213 = por %p211, %p212
      %p214 = scmp.ne.s32.totalorder %s203, %s204
      %p215 = scmp.eq.s32.totalorder %s37, 0
      %p216 = por %p214, %p215
      %p217 = scmp.ne.s32.totalorder %s203, %s204
      %p218 = scmp.eq.s32.totalorder %s38, 1
      %p219 = por %p217, %p218
      %p221 = scmp.ne.s32.totalorder %s204, %s220
      %p222 = scmp.eq.s32.totalorder %s38, 0
      %p223 = por %p221, %p222
      %s224 = ssub.s32 %s40, %s47
      %p225 = scmp.eq.s32.totalorder %s224, 0
      %s227 = sadd.s32 %s226, 1
      %s228 = scalar_select %p225, %s226, %s227
      %p231 = pneg %p225
      %p232 = scmp.eq.s32.totalorder %s32, 1
      %p233 = por %p231, %p232
      %p234 = scmp.ne.s32.totalorder %s226, %s229
      %p235 = scmp.eq.s32.totalorder %s32, 0
      %p236 = por %p234, %p235
      %p237 = scmp.ne.s32.totalorder %s226, %s229
      %p238 = scmp.eq.s32.totalorder %s37, 1
      %p239 = por %p237, %p238
      %p240 = scmp.ne.s32.totalorder %s229, %s230
      %p241 = scmp.eq.s32.totalorder %s37, 0
      %p242 = por %p240, %p241
      %p243 = scmp.ne.s32.totalorder %s229, %s230
      %p244 = scmp.eq.s32.totalorder %s38, 1
      %p245 = por %p243, %p244
      %p247 = scmp.ne.s32.totalorder %s230, %s246
      %p248 = scmp.eq.s32.totalorder %s38, 0
      %p249 = por %p247, %p248
      %s250 = ssub.s32 %s40, %s47
      %p251 = scmp.eq.s32.totalorder %s250, 0
      %s253 = sadd.s32 %s252, 1
      %s254 = scalar_select %p251, %s252, %s253
      %p257 = pneg %p251
      %p258 = scmp.eq.s32.totalorder %s32, 1
      %p259 = por %p257, %p258
      %p260 = scmp.ne.s32.totalorder %s252, %s255
      %p261 = scmp.eq.s32.totalorder %s32, 0
      %p262 = por %p260, %p261
      %p263 = scmp.ne.s32.totalorder %s252, %s255
      %p264 = scmp.eq.s32.totalorder %s37, 1
      %p265 = por %p263, %p264
      %p266 = scmp.ne.s32.totalorder %s255, %s256
      %p267 = scmp.eq.s32.totalorder %s37, 0
      %p268 = por %p266, %p267
      %p269 = scmp.ne.s32.totalorder %s255, %s256
      %p270 = scmp.eq.s32.totalorder %s38, 1
      %p271 = por %p269, %p270
      %p273 = scmp.ne.s32.totalorder %s256, %s272
      %p274 = scmp.eq.s32.totalorder %s38, 0
      %p275 = por %p273, %p274
      %s276 = ssub.s32 %s40, %s47
      %p277 = scmp.eq.s32.totalorder %s276, 0
      %s279 = sadd.s32 %s278, 1
      %s280 = scalar_select %p277, %s278, %s279
      %p283 = pneg %p277
      %p284 = scmp.eq.s32.totalorder %s32, 1
      %p285 = por %p283, %p284
      %p286 = scmp.ne.s32.totalorder %s278, %s281
      %p287 = scmp.eq.s32.totalorder %s32, 0
      %p288 = por %p286, %p287
      %p289 = scmp.ne.s32.totalorder %s278, %s281
      %p290 = scmp.eq.s32.totalorder %s37, 1
      %p291 = por %p289, %p290
      %p292 = scmp.ne.s32.totalorder %s281, %s282
      %p293 = scmp.eq.s32.totalorder %s37, 0
      %p294 = por %p292, %p293
      %p295 = scmp.ne.s32.totalorder %s281, %s282
      %p296 = scmp.eq.s32.totalorder %s38, 1
      %p297 = por %p295, %p296
      %p299 = scmp.ne.s32.totalorder %s282, %s298
      %p300 = scmp.eq.s32.totalorder %s38, 0
      %p301 = por %p299, %p300
      %s302 = ssub.s32 %s40, %s47
      %p303 = scmp.eq.s32.totalorder %s302, 0
      %s305 = sadd.s32 %s304, 1
      %s306 = scalar_select %p303, %s304, %s305
      %p309 = pneg %p303
      %p310 = scmp.eq.s32.totalorder %s32, 1
      %p311 = por %p309, %p310
      %p312 = scmp.ne.s32.totalorder %s304, %s307
      %p313 = scmp.eq.s32.totalorder %s32, 0
      %p314 = por %p312, %p313
      %p315 = scmp.ne.s32.totalorder %s304, %s307
      %p316 = scmp.eq.s32.totalorder %s37, 1
      %p317 = por %p315, %p316
      %p318 = scmp.ne.s32.totalorder %s307, %s308
      %p319 = scmp.eq.s32.totalorder %s37, 0
      %p320 = por %p318, %p319
      %p321 = scmp.ne.s32.totalorder %s307, %s308
      %p322 = scmp.eq.s32.totalorder %s38, 1
      %p323 = por %p321, %p322
      %p325 = scmp.ne.s32.totalorder %s308, %s324
      %p326 = scmp.eq.s32.totalorder %s38, 0
      %p327 = por %p325, %p326
      %s328 = ssub.s32 %s40, %s47
      %p329 = scmp.eq.s32.totalorder %s328, 0
      %s331 = sadd.s32 %s330, 1
      %s332 = scalar_select %p329, %s330, %s331
      %p335 = pneg %p329
      %p336 = scmp.eq.s32.totalorder %s32, 1
      %p337 = por %p335, %p336
      %p338 = scmp.ne.s32.totalorder %s330, %s333
      %p339 = scmp.eq.s32.totalorder %s32, 0
      %p340 = por %p338, %p339
      %p341 = scmp.ne.s32.totalorder %s330, %s333
      %p342 = scmp.eq.s32.totalorder %s37, 1
      %p343 = por %p341, %p342
      %p344 = scmp.ne.s32.totalorder %s333, %s334
      %p345 = scmp.eq.s32.totalorder %s37, 0
      %p346 = por %p344, %p345
      %p347 = scmp.ne.s32.totalorder %s333, %s334
      %p348 = scmp.eq.s32.totalorder %s38, 1
      %p349 = por %p347, %p348
      %p351 = scmp.ne.s32.totalorder %s334, %s350
      %p352 = scmp.eq.s32.totalorder %s38, 0
      %p353 = por %p351, %p352
      %s354 = ssub.s32 %s39, %s51
      %p355 = scmp.eq.s32.totalorder %s354, 0
      %s357 = sadd.s32 %s356, 1
      %s358 = scalar_select %p355, %s356, %s357
      %p361 = pneg %p355
      %p362 = scmp.eq.s32.totalorder %s32, 1
      %p363 = por %p361, %p362
      %p364 = scmp.ne.s32.totalorder %s356, %s359
      %p365 = scmp.eq.s32.totalorder %s32, 0
      %p366 = por %p364, %p365
      %p367 = scmp.ne.s32.totalorder %s356, %s359
      %p368 = scmp.eq.s32.totalorder %s37, 1
      %p369 = por %p367, %p368
      %p370 = scmp.ne.s32.totalorder %s359, %s360
      %p371 = scmp.eq.s32.totalorder %s37, 0
      %p372 = por %p370, %p371
      %p373 = scmp.ne.s32.totalorder %s359, %s360
      %p374 = scmp.eq.s32.totalorder %s38, 1
      %p375 = por %p373, %p374
      %p377 = scmp.ne.s32.totalorder %s360, %s376
      %p378 = scmp.eq.s32.totalorder %s38, 0
      %p379 = por %p377, %p378
      %p380 = scmp.le.s32.totalorder 1, %s32
      %p381 = scmp.lt.s32.totalorder %s32, 3
      %p382 = pnand %p380, %p381
      %p383 = pneg %p382
      // Predicated region
      $region9: #{tpu_custom_call.1} parent=5 // pred_check
        _
      $region10: #{tpu_custom_call.1} parent=5 // pred_check_branch
        %385 = sbr.rel (%p382) target = $region12
      $region11: #{tpu_custom_call.1} parent=5 // pred_region
        %s386 = ssub.s32 %s32, 1
        // Predicated region
        $region13: #{tpu_custom_call.1} parent=11 // pred_check
          %p387 = pneg %p65
        $region14: #{tpu_custom_call.1} parent=11 // pred_check_branch
          %389 = sbr.rel (%p387) target = $region16
        $region15: #{tpu_custom_call.1} parent=11 // pred_region
          _
        $region16: #{tpu_custom_call.1} parent=11 // pred_fallthru
          _
        // Predicated region
        $region17: #{tpu_custom_call.1} parent=11 // pred_check
          %p390 = pneg %p86
        $region18: #{tpu_custom_call.1} parent=11 // pred_check_branch
          %392 = sbr.rel (%p390) target = $region20
        $region19: #{tpu_custom_call.1} parent=11 // pred_region
          _
        $region20: #{tpu_custom_call.1} parent=11 // pred_fallthru
          _
        // Predicated region
        $region21: #{tpu_custom_call.1} parent=11 // pred_check
          %p393 = pneg %p112
        $region22: #{tpu_custom_call.1} parent=11 // pred_check_branch
          %395 = sbr.rel (%p393) target = $region24
        $region23: #{tpu_custom_call.1} parent=11 // pred_region
          %s396 = smul.u32 2, %s41
          %p397 = scmp.lt.s32.totalorder %s396, 1
          %s398 = scalar_select %p397, %s396, 1
          %s399 = smul.addr %s398, 2
          %s400 = smul.addr %s399, 4
          %s401 = scalar_lea.vmem %s2, %s400
          %s402 = smul.u32 2, %s41
        $region24: #{tpu_custom_call.1} parent=11 // pred_fallthru
          _
        // Predicated region
        $region25: #{tpu_custom_call.1} parent=11 // pred_check
          %p403 = pneg %p138
        $region26: #{tpu_custom_call.1} parent=11 // pred_check_branch
          %405 = sbr.rel (%p403) target = $region28
        $region27: #{tpu_custom_call.1} parent=11 // pred_region
          %s406 = smul.u32 2, %s41
          %s408 = ssub.s32 256, 256
          %409 = vsyncadd [#allocation3], %s408
          %s410 = smul.addr %s406, 2
          %s411 = smul.addr %s410, 64
          %s412 = scalar_lea.hbm %s3, %s411
          %s413 = sshll.u32 [#allocation2], 4
          %s414 = int_to_ptr.vmem [resolvable:$true] %s413
          %419 = dma.hbm_to_vmem [thread:$0]  %s412, 256, %s414, [#allocation3], 64, 64, 4
        $region28: #{tpu_custom_call.1} parent=11 // pred_fallthru
          _
      $region12: #{tpu_custom_call.1} parent=5 // pred_fallthru
        _
      %p420 = scmp.lt.s32.totalorder %s32, 2
      // Predicated region
      $region29: #{tpu_custom_call.1} parent=5 // pred_check
        %p421 = pneg %p420
      $region30: #{tpu_custom_call.1} parent=5 // pred_check_branch
        %423 = sbr.rel (%p421) target = $region32
      $region31: #{tpu_custom_call.1} parent=5 // pred_region
        // Predicated region
        $region33: #{tpu_custom_call.1} parent=31 // pred_check
          %p424 = pneg %p158
        $region34: #{tpu_custom_call.1} parent=31 // pred_check_branch
          %426 = sbr.rel (%p424) target = $region36
        $region35: #{tpu_custom_call.1} parent=31 // pred_region
          %s427 = sand.u32 %s32, 1
          %s428 = scalar_lea.sflag [#allocation6], %s427
          %s429 = sand.u32 %s148, 1
          %s430 = smul.addr %s429, 64
          %s431 = scalar_lea.vmem [#allocation5], %s430
          %s433 = ssub.s32 1024, 1024
          %434 = vsyncadd %s428, %s433
          %s435 = smul.addr %s40, 16
          %s436 = smul.addr %s435, 64
          %s437 = scalar_lea.hbm %s4, %s436
          %s438 = sshll.u32 %s431, 4
          %s439 = int_to_ptr.vmem [resolvable:$true] %s438
          %444 = dma.hbm_to_vmem [thread:$0]  %s437, 1024, %s439, %s428, 64, 64, 4
        $region36: #{tpu_custom_call.1} parent=31 // pred_fallthru
          _
        // Predicated region
        $region37: #{tpu_custom_call.1} parent=31 // pred_check
          %p445 = pneg %p184
        $region38: #{tpu_custom_call.1} parent=31 // pred_check_branch
          %447 = sbr.rel (%p445) target = $region40
        $region39: #{tpu_custom_call.1} parent=31 // pred_region
          %s448 = sand.u32 %s32, 1
          %s449 = scalar_lea.sflag [#allocation6], %s448
          %s450 = sand.u32 %s174, 1
          %s451 = smul.addr %s450, 64
          %s452 = scalar_lea.vmem [#allocation7], %s451
          %s454 = ssub.s32 1024, 1024
          %455 = vsyncadd %s449, %s454
          %s456 = smul.addr %s40, 16
          %s457 = smul.addr %s456, 64
          %s458 = scalar_lea.hbm %s5, %s457
          %s459 = sshll.u32 %s452, 4
          %s460 = int_to_ptr.vmem [resolvable:$true] %s459
          %465 = dma.hbm_to_vmem [thread:$0]  %s458, 1024, %s460, %s449, 64, 64, 4
        $region40: #{tpu_custom_call.1} parent=31 // pred_fallthru
          _
        // Predicated region
        $region41: #{tpu_custom_call.1} parent=31 // pred_check
          %p466 = pneg %p210
        $region42: #{tpu_custom_call.1} parent=31 // pred_check_branch
          %468 = sbr.rel (%p466) target = $region44
        $region43: #{tpu_custom_call.1} parent=31 // pred_region
          %s469 = sand.u32 %s32, 1
          %s470 = scalar_lea.sflag [#allocation9], %s469
          %s471 = sand.u32 %s200, 1
          %s472 = smul.addr %s471, 64
          %s473 = scalar_lea.vmem [#allocation8], %s472
          %s475 = ssub.s32 1024, 1024
          %476 = vsyncadd %s470, %s475
          %s477 = smul.addr %s40, 16
          %s478 = smul.addr %s477, 64
          %s479 = scalar_lea.hbm %s6, %s478
          %s480 = sshll.u32 %s473, 4
          %s481 = int_to_ptr.vmem [resolvable:$true] %s480
          %486 = dma.hbm_to_vmem [thread:$0]  %s479, 1024, %s481, %s470, 64, 64, 4
        $region44: #{tpu_custom_call.1} parent=31 // pred_fallthru
          _
        // Predicated region
        $region45: #{tpu_custom_call.1} parent=31 // pred_check
          %p487 = pneg %p236
        $region46: #{tpu_custom_call.1} parent=31 // pred_check_branch
          %489 = sbr.rel (%p487) target = $region48
        $region47: #{tpu_custom_call.1} parent=31 // pred_region
          %s490 = sand.u32 %s32, 1
          %s491 = scalar_lea.sflag [#allocation9], %s490
          %s492 = sand.u32 %s226, 1
          %s493 = smul.addr %s492, 64
          %s494 = scalar_lea.vmem [#allocation10], %s493
          %s496 = ssub.s32 1024, 1024
          %497 = vsyncadd %s491, %s496
          %s498 = smul.addr %s40, 16
          %s499 = smul.addr %s498, 64
          %s500 = scalar_lea.hbm %s7, %s499
          %s501 = sshll.u32 %s494, 4
          %s502 = int_to_ptr.vmem [resolvable:$true] %s501
          %507 = dma.hbm_to_vmem [thread:$0]  %s500, 1024, %s502, %s491, 64, 64, 4
        $region48: #{tpu_custom_call.1} parent=31 // pred_fallthru
          _
        // Predicated region
        $region49: #{tpu_custom_call.1} parent=31 // pred_check
          %p508 = pneg %p262
        $region50: #{tpu_custom_call.1} parent=31 // pred_check_branch
          %510 = sbr.rel (%p508) target = $region52
        $region51: #{tpu_custom_call.1} parent=31 // pred_region
          %s511 = sand.u32 %s32, 1
          %s512 = scalar_lea.sflag [#allocation12], %s511
          %s513 = sand.u32 %s252, 1
          %s514 = smul.addr %s513, 128
          %s515 = scalar_lea.vmem [#allocation11], %s514
          %s517 = ssub.s32 2048, 2048
          %518 = vsyncadd %s512, %s517
          %s519 = smul.addr %s40, 32
          %s520 = smul.addr %s519, 64
          %s521 = scalar_lea.hbm %s8, %s520
          %s522 = sshll.u32 %s515, 4
          %s523 = int_to_ptr.vmem [resolvable:$true] %s522
          %528 = dma.hbm_to_vmem [thread:$0]  %s521, 2048, %s523, %s512, 128, 128, 8
        $region52: #{tpu_custom_call.1} parent=31 // pred_fallthru
          _
        // Predicated region
        $region53: #{tpu_custom_call.1} parent=31 // pred_check
          %p529 = pneg %p288
        $region54: #{tpu_custom_call.1} parent=31 // pred_check_branch
          %531 = sbr.rel (%p529) target = $region56
        $region55: #{tpu_custom_call.1} parent=31 // pred_region
          %s532 = sand.u32 %s32, 1
          %s533 = scalar_lea.sflag [#allocation12], %s532
          %s534 = sand.u32 %s278, 1
          %s535 = smul.addr %s534, 128
          %s536 = scalar_lea.vmem [#allocation13], %s535
          %s538 = ssub.s32 2048, 2048
          %539 = vsyncadd %s533, %s538
          %s540 = smul.addr %s40, 32
          %s541 = smul.addr %s540, 64
          %s542 = scalar_lea.hbm %s9, %s541
          %s543 = sshll.u32 %s536, 4
          %s544 = int_to_ptr.vmem [resolvable:$true] %s543
          %549 = dma.hbm_to_vmem [thread:$0]  %s542, 2048, %s544, %s533, 64, 64, 4
        $region56: #{tpu_custom_call.1} parent=31 // pred_fallthru
          _
        // Predicated region
        $region57: #{tpu_custom_call.1} parent=31 // pred_check
          %p550 = pneg %p314
        $region58: #{tpu_custom_call.1} parent=31 // pred_check_branch
          %552 = sbr.rel (%p550) target = $region60
        $region59: #{tpu_custom_call.1} parent=31 // pred_region
          %p553 = scmp.lt.s32.totalorder %s40, 1
          %s554 = scalar_select %p553, %s40, 1
          %s555 = smul.addr %s554, 2
          %s556 = smul.addr %s555, 8
          %s557 = scalar_lea.vmem %s10, %s556
        $region60: #{tpu_custom_call.1} parent=31 // pred_fallthru
          _
        // Predicated region
        $region61: #{tpu_custom_call.1} parent=31 // pred_check
          %p558 = pneg %p340
        $region62: #{tpu_custom_call.1} parent=31 // pred_check_branch
          %560 = sbr.rel (%p558) target = $region64
        $region63: #{tpu_custom_call.1} parent=31 // pred_region
          %s561 = sand.u32 %s330, 1
          %s562 = scalar_lea.sflag [#allocation15], %s561
          %s563 = sand.u32 %s330, 1
          %s564 = smul.addr %s563, 2
          %s565 = scalar_lea.vmem [#allocation14], %s564
          %s567 = ssub.s32 32, 32
          %568 = vsyncadd %s562, %s567
          %s569 = smul.addr %s40, 2
          %s570 = smul.addr %s569, 16
          %s571 = scalar_lea.hbm %s11, %s570
          %s573 = sshll.u32 %s565, 4
          %s574 = int_to_ptr.vmem [resolvable:$true] %s573
          %576 = dma.hbm_to_vmem [thread:$0]  %s571, 32, %s574, %s562
        $region64: #{tpu_custom_call.1} parent=31 // pred_fallthru
          _
      $region32: #{tpu_custom_call.1} parent=5 // pred_fallthru
        _
      %p577 = scmp.le.s32.totalorder 1, %s32
      %p578 = scmp.lt.s32.totalorder %s32, 3
      %p579 = pnand %p577, %p578
      %p580 = pneg %p579
      // Predicated region
      $region65: #{tpu_custom_call.1} parent=5 // pred_check
        _
      $region66: #{tpu_custom_call.1} parent=5 // pred_check_branch
        %582 = sbr.rel (%p579) target = $region68
      $region67: #{tpu_custom_call.1} parent=5 // pred_region
        %s583 = ssub.s32 %s32, 1
        // Predicated region
        $region69: #{tpu_custom_call.1} parent=67 // pred_check
          %p584 = pneg %p138
        $region70: #{tpu_custom_call.1} parent=67 // pred_check_branch
          %586 = sbr.rel (%p584) target = $region72
        $region71: #{tpu_custom_call.1} parent=67 // pred_region
          %587 = dma.done [#allocation3], 256
        $region72: #{tpu_custom_call.1} parent=67 // pred_fallthru
          _
        %s588 = sand.u32 %s37, 1
        %s589 = scalar_lea.sflag [#allocation6], %s588
        %s590 = sand.u32 %s151, 1
        %s591 = smul.addr %s590, 64
        %s592 = scalar_lea.vmem [#allocation5], %s591
        // Predicated region
        $region73: #{tpu_custom_call.1} parent=67 // pred_check
          %p593 = pneg %p164
        $region74: #{tpu_custom_call.1} parent=67 // pred_check_branch
          %595 = sbr.rel (%p593) target = $region76
        $region75: #{tpu_custom_call.1} parent=67 // pred_region
          %596 = dma.done %s589, 1024
        $region76: #{tpu_custom_call.1} parent=67 // pred_fallthru
          _
        %s597 = sand.u32 %s37, 1
        %s598 = scalar_lea.sflag [#allocation6], %s597
        %s599 = sand.u32 %s177, 1
        %s600 = smul.addr %s599, 64
        %s601 = scalar_lea.vmem [#allocation7], %s600
        // Predicated region
        $region77: #{tpu_custom_call.1} parent=67 // pred_check
          %p602 = pneg %p190
        $region78: #{tpu_custom_call.1} parent=67 // pred_check_branch
          %604 = sbr.rel (%p602) target = $region80
        $region79: #{tpu_custom_call.1} parent=67 // pred_region
          %605 = dma.done %s598, 1024
        $region80: #{tpu_custom_call.1} parent=67 // pred_fallthru
          _
        %s606 = sand.u32 %s37, 1
        %s607 = scalar_lea.sflag [#allocation9], %s606
        %s608 = sand.u32 %s203, 1
        %s609 = smul.addr %s608, 64
        %s610 = scalar_lea.vmem [#allocation8], %s609
        // Predicated region
        $region81: #{tpu_custom_call.1} parent=67 // pred_check
          %p611 = pneg %p216
        $region82: #{tpu_custom_call.1} parent=67 // pred_check_branch
          %613 = sbr.rel (%p611) target = $region84
        $region83: #{tpu_custom_call.1} parent=67 // pred_region
          %614 = dma.done %s607, 1024
        $region84: #{tpu_custom_call.1} parent=67 // pred_fallthru
          _
        %s615 = sand.u32 %s37, 1
        %s616 = scalar_lea.sflag [#allocation9], %s615
        %s617 = sand.u32 %s229, 1
        %s618 = smul.addr %s617, 64
        %s619 = scalar_lea.vmem [#allocation10], %s618
        // Predicated region
        $region85: #{tpu_custom_call.1} parent=67 // pred_check
          %p620 = pneg %p242
        $region86: #{tpu_custom_call.1} parent=67 // pred_check_branch
          %622 = sbr.rel (%p620) target = $region88
        $region87: #{tpu_custom_call.1} parent=67 // pred_region
          %623 = dma.done %s616, 1024
        $region88: #{tpu_custom_call.1} parent=67 // pred_fallthru
          _
        %s624 = sand.u32 %s37, 1
        %s625 = scalar_lea.sflag [#allocation12], %s624
        %s626 = sand.u32 %s255, 1
        %s627 = smul.addr %s626, 128
        %s628 = scalar_lea.vmem [#allocation11], %s627
        // Predicated region
        $region89: #{tpu_custom_call.1} parent=67 // pred_check
          %p629 = pneg %p268
        $region90: #{tpu_custom_call.1} parent=67 // pred_check_branch
          %631 = sbr.rel (%p629) target = $region92
        $region91: #{tpu_custom_call.1} parent=67 // pred_region
          %632 = dma.done %s625, 2048
        $region92: #{tpu_custom_call.1} parent=67 // pred_fallthru
          _
        %s633 = sand.u32 %s37, 1
        %s634 = scalar_lea.sflag [#allocation12], %s633
        %s635 = sand.u32 %s281, 1
        %s636 = smul.addr %s635, 128
        %s637 = scalar_lea.vmem [#allocation13], %s636
        // Predicated region
        $region93: #{tpu_custom_call.1} parent=67 // pred_check
          %p638 = pneg %p294
        $region94: #{tpu_custom_call.1} parent=67 // pred_check_branch
          %640 = sbr.rel (%p638) target = $region96
        $region95: #{tpu_custom_call.1} parent=67 // pred_region
          %641 = dma.done %s634, 2048
        $region96: #{tpu_custom_call.1} parent=67 // pred_fallthru
          _
        %s642 = sand.u32 %s333, 1
        %s643 = scalar_lea.sflag [#allocation15], %s642
        %s644 = sand.u32 %s333, 1
        %s645 = smul.addr %s644, 2
        %s646 = scalar_lea.vmem [#allocation14], %s645
        // Predicated region
        $region97: #{tpu_custom_call.1} parent=67 // pred_check
          %p647 = pneg %p346
        $region98: #{tpu_custom_call.1} parent=67 // pred_check_branch
          %649 = sbr.rel (%p647) target = $region100
        $region99: #{tpu_custom_call.1} parent=67 // pred_region
          %650 = dma.done %s643, 32
        $region100: #{tpu_custom_call.1} parent=67 // pred_fallthru
          _
        %p651 = pneg %p65
        %p652 = pneg %p62
        %p653 = pneg %p86
        %p654 = pneg %p83
        %s655 = smul.u32 2, %s41
        %p656 = scmp.lt.s32.totalorder %s655, 1
        %s657 = scalar_select %p656, %s655, 1
        %s658 = smul.addr %s657, 2
        %s659 = smul.addr %s658, 4
        %s660 = scalar_lea.vmem %s2, %s659
        %p661 = pneg %p112
        %p662 = pneg %p109
        %p663 = pneg %p138
        %p664 = pneg %p135
        %s665 = sand.u32 %s37, 1
        %s666 = scalar_lea.sflag [#allocation6], %s665
        %s667 = sand.u32 %s151, 1
        %s668 = smul.addr %s667, 64
        %s669 = scalar_lea.vmem [#allocation5], %s668
        %p670 = pneg %p164
        %p671 = pneg %p161
        %s672 = sand.u32 %s37, 1
        %s673 = scalar_lea.sflag [#allocation6], %s672
        %s674 = sand.u32 %s177, 1
        %s675 = smul.addr %s674, 64
        %s676 = scalar_lea.vmem [#allocation7], %s675
        %p677 = pneg %p190
        %p678 = pneg %p187
        %s679 = sand.u32 %s37, 1
        %s680 = scalar_lea.sflag [#allocation9], %s679
        %s681 = sand.u32 %s203, 1
        %s682 = smul.addr %s681, 64
        %s683 = scalar_lea.vmem [#allocation8], %s682
        %p684 = pneg %p216
        %p685 = pneg %p213
        %s686 = sand.u32 %s37, 1
        %s687 = scalar_lea.sflag [#allocation9], %s686
        %s688 = sand.u32 %s229, 1
        %s689 = smul.addr %s688, 64
        %s690 = scalar_lea.vmem [#allocation10], %s689
        %p691 = pneg %p242
        %p692 = pneg %p239
        %s693 = sand.u32 %s37, 1
        %s694 = scalar_lea.sflag [#allocation12], %s693
        %s695 = sand.u32 %s255, 1
        %s696 = smul.addr %s695, 128
        %s697 = scalar_lea.vmem [#allocation11], %s696
        %p698 = pneg %p268
        %p699 = pneg %p265
        %s700 = sand.u32 %s37, 1
        %s701 = scalar_lea.sflag [#allocation12], %s700
        %s702 = sand.u32 %s281, 1
        %s703 = smul.addr %s702, 128
        %s704 = scalar_lea.vmem [#allocation13], %s703
        %p705 = pneg %p294
        %p706 = pneg %p291
        %p707 = scmp.lt.s32.totalorder %s42, 1
        %s708 = scalar_select %p707, %s42, 1
        %s709 = smul.addr %s708, 2
        %s710 = smul.addr %s709, 8
        %s711 = scalar_lea.vmem %s10, %s710
        %p712 = pneg %p320
        %p713 = pneg %p317
        %s714 = sand.u32 %s333, 1
        %s715 = scalar_lea.sflag [#allocation15], %s714
        %s716 = sand.u32 %s333, 1
        %s717 = smul.addr %s716, 2
        %s718 = scalar_lea.vmem [#allocation14], %s717
        %p719 = pneg %p346
        %p720 = pneg %p343
        %p721 = pneg %p372
        %p722 = pneg %p369
        %s723 = smul.u32 2, %s41
        %p724 = scmp.lt.s32.totalorder %s723, 1
        %s725 = scalar_select %p724, %s723, 1
        %s726 = smul.addr %s725, 2
        %s727 = smul.addr %s726, 4
        %s728 = scalar_lea.vmem %s2, %s727
        %s729 = smul.u32 2, %s41
        %s730 = smul.u32 2, %s41
        %p731 = scmp.lt.s32.totalorder %s42, 1
        %s732 = scalar_select %p731, %s42, 1
        %s733 = smul.addr %s732, 2
        %s734 = smul.addr %s733, 8
        %s735 = scalar_lea.vmem %s10, %s734
        %s736 = smul.u32 2, %s41
        %p738 = scmp.eq.s32.totalorder %s42, 0
        // Predicated region
        $region101: #{tpu_custom_call.1} parent=67 // pred_check
          %p739 = pneg %p738
        $region102: #{tpu_custom_call.1} parent=67 // pred_check_branch
          %741 = sbr.rel (%p739) target = $region104
        $region103: #{tpu_custom_call.1} parent=67 // pred_region
          %v742 = vld [vmem:[%s0] sm:$0xff]
          %v743 = vld [vmem:[%s0 + $0x8] sm:$0xff]
          %744 = vst [vmem:[#allocation16] sm:$0xff] %v742
          %745 = vst [vmem:[#allocation16 + $0x8] sm:$0xff] %v743
          %746 = vst [vmem:[#allocation16 + $0x10] sm:$0xff] %v742
          %747 = vst [vmem:[#allocation16 + $0x18] sm:$0xff] %v743
        $region104: #{tpu_custom_call.1} parent=67 // pred_fallthru
          _
        %v748 = vld [vmem:[#allocation16] sm:$0xff]
        %v749 = vld [vmem:[#allocation16 + $0x8] sm:$0xff]
        %v750 = vld [vmem:[#allocation16 + $0x10] sm:$0xff]
        %v751 = vld [vmem:[#allocation16 + $0x18] sm:$0xff]
        %v752 = vld [vmem:[%s1] sm:$0xff]
        %v753 = vld [vmem:[%s1 + $0x8] sm:$0xff]
        %v754 = vld [vmem:[#allocation2] sm:$0xf]
        %v755 = vld [vmem:[#allocation2 + $0x4] sm:$0xf]
        %v756 = vld [vmem:[#allocation2 + $0x8] sm:$0xf]
        %v757 = vld [vmem:[#allocation2 + $0xc] sm:$0xf]
        %v758 = vunpack.c.l.bf16 %v754
        %v759 = vunpack.c.l.bf16 %v755
        %v760 = vunpack.c.l.bf16 %v756
        %v761 = vunpack.c.l.bf16 %v757
        %v762 = vld [vmem:[%s735] sm:$0xff]
        %v763 = vld [vmem:[%s735 + $0x8] sm:$0x1]
        %v764 = vld [vmem:[%s646] sm:$0x3]
        %v765 = vadd.f32 %v748, %v752
        %v766 = vadd.f32 %v749, %v753
        %v767 = vadd.f32 %v750, %v752
        %v768 = vadd.f32 %v751, %v753
        %v769 = vpack.c.bf16 %v766, %v765
        %v770 = vpack.c.bf16 %v768, %v767
        %v771 = vld [vmem:[%s728] sm:$0xf]
        %v772 = vld [vmem:[%s728 + $0x4] sm:$0xf]
        %v773 = vld [vmem:[%s728 + $0x8] sm:$0xf]
        %v774 = vld [vmem:[%s728 + $0xc] sm:$0xf]
        %v775 = vld [vmem:[%s592] sm:$0xf]
        %v776 = vld [vmem:[%s592 + $0x4] sm:$0xf]
        %v777 = vld [vmem:[%s592 + $0x8] sm:$0xf]
        %v778 = vld [vmem:[%s592 + $0xc] sm:$0xf]
        %v779 = vld [vmem:[%s592 + $0x10] sm:$0xf]
        %v780 = vld [vmem:[%s592 + $0x14] sm:$0xf]
        %v781 = vld [vmem:[%s592 + $0x18] sm:$0xf]
        %v782 = vld [vmem:[%s592 + $0x1c] sm:$0xf]
        %v783 = vld [vmem:[%s592 + $0x20] sm:$0xf]
        %v784 = vld [vmem:[%s592 + $0x24] sm:$0xf]
        %v785 = vld [vmem:[%s592 + $0x28] sm:$0xf]
        %v786 = vld [vmem:[%s592 + $0x2c] sm:$0xf]
        %v787 = vld [vmem:[%s592 + $0x30] sm:$0xf]
        %v788 = vld [vmem:[%s592 + $0x34] sm:$0xf]
        %v789 = vld [vmem:[%s592 + $0x38] sm:$0xf]
        %v790 = vld [vmem:[%s592 + $0x3c] sm:$0xf]
        %v791 = vlaneseq
        %v792 = vshrl.u32 %v791, 7
        %v793 = vsub.s32 0, %v792
        %v794 = vrot.slane %v762, %v793
        %v811 = vunpack.c.l.b16 %v775
        %v812 = vunpack.c.l.b16 %v776
        %v813 = vunpack.c.l.b16 %v777
        %v814 = vunpack.c.l.b16 %v778
        %v815 = vunpack.c.l.b16 %v779
        %v816 = vunpack.c.l.b16 %v780
        %v817 = vunpack.c.l.b16 %v781
        %v818 = vunpack.c.l.b16 %v782
        %v819 = vunpack.c.l.b16 %v783
        %v820 = vunpack.c.l.b16 %v784
        %v821 = vunpack.c.l.b16 %v785
        %v822 = vunpack.c.l.b16 %v786
        %v823 = vunpack.c.l.b16 %v787
        %v824 = vunpack.c.l.b16 %v788
        %v825 = vunpack.c.l.b16 %v789
        %v826 = vunpack.c.l.b16 %v790
        %v827 = vpack.c.b16 %v812, %v811
        %v828 = vpack.c.b16 %v814, %v813
        %v829 = vpack.c.b16 %v816, %v815
        %v830 = vpack.c.b16 %v818, %v817
        %v831 = vpack.c.b16 %v820, %v819
        %v832 = vpack.c.b16 %v822, %v821
        %v833 = vpack.c.b16 %v824, %v823
        %v834 = vpack.c.b16 %v826, %v825
        %843 = vmatprep.subr.bf16.mxu0 0
        %844 = vmatpush1.bf16.msra.mxu0 %v834
        %845 = vmatprep.subr.bf16.mxu0 0
        %846 = vmatpush1.bf16.msra.mxu0 %v833
        %847 = vmatprep.subr.bf16.mxu0 0
        %848 = vmatpush1.bf16.msra.mxu0 %v832
        %849 = vmatprep.subr.bf16.mxu0 0
        %850 = vmatpush1.bf16.msra.mxu0 %v831
        %851 = vmatprep.subr.bf16.mxu0 0
        %852 = vmatpush1.bf16.msra.mxu0 %v830
        %853 = vmatprep.subr.bf16.mxu0 0
        %854 = vmatpush1.bf16.msra.mxu0 %v829
        %855 = vmatprep.subr.bf16.mxu0 0
        %856 = vmatpush1.bf16.msra.mxu0 %v828
        %857 = vmatprep.subr.bf16.mxu0 0
        %858 = vmatpush1.bf16.msra.mxu0 %v827
        %859 = vmatprep.subr.bf16.mxu0 0
        %860 = vmatpush2.bf16.msra.mxu0 0
        %861 = vmatprep.subr.bf16.mxu0 0
        %862 = vmatpush2.bf16.msra.mxu0 0
        %863 = vmatprep.subr.bf16.mxu0 0
        %864 = vmatpush2.bf16.msra.mxu0 0
        %865 = vmatprep.subr.bf16.mxu0 0
        %866 = vmatpush2.bf16.msra.mxu0 0
        %867 = vmatprep.subr.bf16.mxu0 0
        %868 = vmatpush2.bf16.msra.mxu0 0
        %869 = vmatprep.subr.bf16.mxu0 0
        %870 = vmatpush2.bf16.msra.mxu0 0
        %871 = vmatprep.subr.bf16.mxu0 0
        %872 = vmatpush2.bf16.msra.mxu0 0
        %873 = vmatprep.subr.bf16.mxu0 0
        %874 = vmatpush2.bf16.msra.mxu0 0
        %875 = vmatprep.mubr.bf16.mxu0 0
        %876 = vmatmul.mubr.bf16.gmra.mxu0 %v769
        %v877 = vpop.f32.mrf.mxu0
        %v878 = vadd.f32 %v794, %v877
        %v879 = vpop.f32.mrf.mxu0
        %v880 = vpop.f32.mrf.mxu0
        %v881 = vadd.f32 %v794, %v880
        %v882 = vpop.f32.mrf.mxu0
        %883 = vmatprep.mubr.bf16.mxu0 0
        %884 = vmatmul.mubr.bf16.gmra.mxu0 %v770
        %v885 = vpop.f32.mrf.mxu0
        %v886 = vadd.f32 %v794, %v885
        %v887 = vpop.f32.mrf.mxu0
        %v888 = vpop.f32.mrf.mxu0
        %v889 = vadd.f32 %v794, %v888
        %v890 = vpop.f32.mrf.mxu0
        %891 = vdwg.mxu0
        %v892 = vld [vmem:[%s601] sm:$0xf]
        %v893 = vld [vmem:[%s601 + $0x4] sm:$0xf]
        %v894 = vld [vmem:[%s601 + $0x8] sm:$0xf]
        %v895 = vld [vmem:[%s601 + $0xc] sm:$0xf]
        %v896 = vld [vmem:[%s601 + $0x10] sm:$0xf]
        %v897 = vld [vmem:[%s601 + $0x14] sm:$0xf]
        %v898 = vld [vmem:[%s601 + $0x18] sm:$0xf]
        %v899 = vld [vmem:[%s601 + $0x1c] sm:$0xf]
        %v900 = vld [vmem:[%s601 + $0x20] sm:$0xf]
        %v901 = vld [vmem:[%s601 + $0x24] sm:$0xf]
        %v902 = vld [vmem:[%s601 + $0x28] sm:$0xf]
        %v903 = vld [vmem:[%s601 + $0x2c] sm:$0xf]
        %v904 = vld [vmem:[%s601 + $0x30] sm:$0xf]
        %v905 = vld [vmem:[%s601 + $0x34] sm:$0xf]
        %v906 = vld [vmem:[%s601 + $0x38] sm:$0xf]
        %v907 = vld [vmem:[%s601 + $0x3c] sm:$0xf]
        %v908 = vlaneseq
        %v909 = vshrl.u32 %v908, 7
        %v910 = vsub.s32 1, %v909
        %v911 = vrot.slane %v762, %v910
        %v916 = vunpack.c.l.b16 %v771
        %v917 = vunpack.c.l.b16 %v772
        %v918 = vunpack.c.l.b16 %v773
        %v919 = vunpack.c.l.b16 %v774
        %v920 = vpack.c.b16 %v917, %v916
        %v921 = vpack.c.b16 %v919, %v918
        %v940 = vunpack.c.l.b16 %v892
        %v941 = vunpack.c.l.b16 %v893
        %v942 = vunpack.c.l.b16 %v894
        %v943 = vunpack.c.l.b16 %v895
        %v944 = vunpack.c.l.b16 %v896
        %v945 = vunpack.c.l.b16 %v897
        %v946 = vunpack.c.l.b16 %v898
        %v947 = vunpack.c.l.b16 %v899
        %v948 = vunpack.c.l.b16 %v900
        %v949 = vunpack.c.l.b16 %v901
        %v950 = vunpack.c.l.b16 %v902
        %v951 = vunpack.c.l.b16 %v903
        %v952 = vunpack.c.l.b16 %v904
        %v953 = vunpack.c.l.b16 %v905
        %v954 = vunpack.c.l.b16 %v906
        %v955 = vunpack.c.l.b16 %v907
        %v956 = vpack.c.b16 %v941, %v940
        %v957 = vpack.c.b16 %v943, %v942
        %v958 = vpack.c.b16 %v945, %v944
        %v959 = vpack.c.b16 %v947, %v946
        %v960 = vpack.c.b16 %v949, %v948
        %v961 = vpack.c.b16 %v951, %v950
        %v962 = vpack.c.b16 %v953, %v952
        %v963 = vpack.c.b16 %v955, %v954
        %972 = vmatprep.subr.bf16.mxu0 0
        %973 = vmatpush1.bf16.msra.mxu0 %v963
        %974 = vmatprep.subr.bf16.mxu0 0
        %975 = vmatpush1.bf16.msra.mxu0 %v962
        %976 = vmatprep.subr.bf16.mxu0 0
        %977 = vmatpush1.bf16.msra.mxu0 %v961
        %978 = vmatprep.subr.bf16.mxu0 0
        %979 = vmatpush1.bf16.msra.mxu0 %v960
        %980 = vmatprep.subr.bf16.mxu0 0
        %981 = vmatpush1.bf16.msra.mxu0 %v959
        %982 = vmatprep.subr.bf16.mxu0 0
        %983 = vmatpush1.bf16.msra.mxu0 %v958
        %984 = vmatprep.subr.bf16.mxu0 0
        %985 = vmatpush1.bf16.msra.mxu0 %v957
        %986 = vmatprep.subr.bf16.mxu0 0
        %987 = vmatpush1.bf16.msra.mxu0 %v956
        %988 = vmatprep.subr.bf16.mxu0 0
        %989 = vmatpush2.bf16.msra.mxu0 0
        %990 = vmatprep.subr.bf16.mxu0 0
        %991 = vmatpush2.bf16.msra.mxu0 0
        %992 = vmatprep.subr.bf16.mxu0 0
        %993 = vmatpush2.bf16.msra.mxu0 0
        %994 = vmatprep.subr.bf16.mxu0 0
        %995 = vmatpush2.bf16.msra.mxu0 0
        %996 = vmatprep.subr.bf16.mxu0 0
        %997 = vmatpush2.bf16.msra.mxu0 0
        %998 = vmatprep.subr.bf16.mxu0 0
        %999 = vmatpush2.bf16.msra.mxu0 0
        %1000 = vmatprep.subr.bf16.mxu0 0
        %1001 = vmatpush2.bf16.msra.mxu0 0
        %1002 = vmatprep.subr.bf16.mxu0 0
        %1003 = vmatpush2.bf16.msra.mxu0 0
        %1004 = vmatprep.mubr.bf16.mxu0 0
        %1005 = vmatmul.mubr.bf16.gmra.mxu0 %v920
        %v1006 = vpop.f32.mrf.mxu0
        %v1007 = vadd.f32 %v911, %v1006
        %v1008 = vpop.f32.mrf.mxu0
        %v1009 = vpop.f32.mrf.mxu0
        %v1010 = vadd.f32 %v911, %v1009
        %v1011 = vpop.f32.mrf.mxu0
        %1012 = vmatprep.mubr.bf16.mxu0 0
        %1013 = vmatmul.mubr.bf16.gmra.mxu0 %v921
        %v1014 = vpop.f32.mrf.mxu0
        %v1015 = vadd.f32 %v911, %v1014
        %v1016 = vpop.f32.mrf.mxu0
        %v1017 = vpop.f32.mrf.mxu0
        %v1018 = vadd.f32 %v911, %v1017
        %v1019 = vpop.f32.mrf.mxu0
        %1020 = vdwg.mxu0
        %v1021 = vld [vmem:[%s610] sm:$0xf]
        %v1022 = vld [vmem:[%s610 + $0x4] sm:$0xf]
        %v1023 = vld [vmem:[%s610 + $0x8] sm:$0xf]
        %v1024 = vld [vmem:[%s610 + $0xc] sm:$0xf]
        %v1025 = vld [vmem:[%s610 + $0x10] sm:$0xf]
        %v1026 = vld [vmem:[%s610 + $0x14] sm:$0xf]
        %v1027 = vld [vmem:[%s610 + $0x18] sm:$0xf]
        %v1028 = vld [vmem:[%s610 + $0x1c] sm:$0xf]
        %v1029 = vld [vmem:[%s610 + $0x20] sm:$0xf]
        %v1030 = vld [vmem:[%s610 + $0x24] sm:$0xf]
        %v1031 = vld [vmem:[%s610 + $0x28] sm:$0xf]
        %v1032 = vld [vmem:[%s610 + $0x2c] sm:$0xf]
        %v1033 = vld [vmem:[%s610 + $0x30] sm:$0xf]
        %v1034 = vld [vmem:[%s610 + $0x34] sm:$0xf]
        %v1035 = vld [vmem:[%s610 + $0x38] sm:$0xf]
        %v1036 = vld [vmem:[%s610 + $0x3c] sm:$0xf]
        %v1037 = vlaneseq
        %v1038 = vshrl.u32 %v1037, 7
        %v1039 = vsub.s32 2, %v1038
        %v1040 = vrot.slane %v762, %v1039
        %v1057 = vunpack.c.l.b16 %v1021
        %v1058 = vunpack.c.l.b16 %v1022
        %v1059 = vunpack.c.l.b16 %v1023
        %v1060 = vunpack.c.l.b16 %v1024
        %v1061 = vunpack.c.l.b16 %v1025
        %v1062 = vunpack.c.l.b16 %v1026
        %v1063 = vunpack.c.l.b16 %v1027
        %v1064 = vunpack.c.l.b16 %v1028
        %v1065 = vunpack.c.l.b16 %v1029
        %v1066 = vunpack.c.l.b16 %v1030
        %v1067 = vunpack.c.l.b16 %v1031
        %v1068 = vunpack.c.l.b16 %v1032
        %v1069 = vunpack.c.l.b16 %v1033
        %v1070 = vunpack.c.l.b16 %v1034
        %v1071 = vunpack.c.l.b16 %v1035
        %v1072 = vunpack.c.l.b16 %v1036
        %v1073 = vpack.c.b16 %v1058, %v1057
        %v1074 = vpack.c.b16 %v1060, %v1059
        %v1075 = vpack.c.b16 %v1062, %v1061
        %v1076 = vpack.c.b16 %v1064, %v1063
        %v1077 = vpack.c.b16 %v1066, %v1065
        %v1078 = vpack.c.b16 %v1068, %v1067
        %v1079 = vpack.c.b16 %v1070, %v1069
        %v1080 = vpack.c.b16 %v1072, %v1071
        %1089 = vmatprep.subr.bf16.mxu0 0
        %1090 = vmatpush1.bf16.msra.mxu0 %v1080
        %1091 = vmatprep.subr.bf16.mxu0 0
        %1092 = vmatpush1.bf16.msra.mxu0 %v1079
        %1093 = vmatprep.subr.bf16.mxu0 0
        %1094 = vmatpush1.bf16.msra.mxu0 %v1078
        %1095 = vmatprep.subr.bf16.mxu0 0
        %1096 = vmatpush1.bf16.msra.mxu0 %v1077
        %1097 = vmatprep.subr.bf16.mxu0 0
        %1098 = vmatpush1.bf16.msra.mxu0 %v1076
        %1099 = vmatprep.subr.bf16.mxu0 0
        %1100 = vmatpush1.bf16.msra.mxu0 %v1075
        %1101 = vmatprep.subr.bf16.mxu0 0
        %1102 = vmatpush1.bf16.msra.mxu0 %v1074
        %1103 = vmatprep.subr.bf16.mxu0 0
        %1104 = vmatpush1.bf16.msra.mxu0 %v1073
        %1105 = vmatprep.subr.bf16.mxu0 0
        %1106 = vmatpush2.bf16.msra.mxu0 0
        %1107 = vmatprep.subr.bf16.mxu0 0
        %1108 = vmatpush2.bf16.msra.mxu0 0
        %1109 = vmatprep.subr.bf16.mxu0 0
        %1110 = vmatpush2.bf16.msra.mxu0 0
        %1111 = vmatprep.subr.bf16.mxu0 0
        %1112 = vmatpush2.bf16.msra.mxu0 0
        %1113 = vmatprep.subr.bf16.mxu0 0
        %1114 = vmatpush2.bf16.msra.mxu0 0
        %1115 = vmatprep.subr.bf16.mxu0 0
        %1116 = vmatpush2.bf16.msra.mxu0 0
        %1117 = vmatprep.subr.bf16.mxu0 0
        %1118 = vmatpush2.bf16.msra.mxu0 0
        %1119 = vmatprep.subr.bf16.mxu0 0
        %1120 = vmatpush2.bf16.msra.mxu0 0
        %1121 = vmatprep.mubr.bf16.mxu0 0
        %1122 = vmatmul.mubr.bf16.gmra.mxu0 %v920
        %v1123 = vpop.f32.mrf.mxu0
        %v1124 = vadd.f32 %v1040, %v1123
        %v1125 = vpop.f32.mrf.mxu0
        %v1126 = vpop.f32.mrf.mxu0
        %v1127 = vadd.f32 %v1040, %v1126
        %v1128 = vpop.f32.mrf.mxu0
        %1129 = vmatprep.mubr.bf16.mxu0 0
        %1130 = vmatmul.mubr.bf16.gmra.mxu0 %v921
        %v1131 = vpop.f32.mrf.mxu0
        %v1132 = vadd.f32 %v1040, %v1131
        %v1133 = vpop.f32.mrf.mxu0
        %v1134 = vpop.f32.mrf.mxu0
        %v1135 = vadd.f32 %v1040, %v1134
        %v1136 = vpop.f32.mrf.mxu0
        %1137 = vdwg.mxu0
        %v1138 = vpack.c.bf16 %v881, %v878
        %v1139 = vpack.c.bf16 %v889, %v886
        %v1140 = vpack.c.bf16 %v1010, %v1007
        %v1141 = vpack.c.bf16 %v1018, %v1015
        %v1142 = vpack.c.bf16 %v1127, %v1124
        %v1143 = vpack.c.bf16 %v1135, %v1132
        %1144 = vmatprep.subr.bf16.mxu0 0
        %1145 = vmatpush1.bf16.xpose.msra.mxu0 0
        %1146 = vmatprep.subr.bf16.mxu0 0
        %1147 = vmatpush1.bf16.xpose.msra.mxu0 0
        %1148 = vmatprep.subr.bf16.mxu0 0
        %1149 = vmatpush1.bf16.xpose.msra.mxu0 0
        %1150 = vmatprep.subr.bf16.mxu0 0
        %1151 = vmatpush1.bf16.xpose.msra.mxu0 0
        %1152 = vmatprep.subr.bf16.mxu0 0
        %1153 = vmatpush1.bf16.xpose.msra.mxu0 0
        %1154 = vmatprep.subr.bf16.mxu0 0
        %1155 = vmatpush1.bf16.xpose.msra.mxu0 0
        %1156 = vmatprep.subr.bf16.mxu0 0
        %1157 = vmatpush1.bf16.xpose.msra.mxu0 0
        %1158 = vmatprep.subr.bf16.mxu0 0
        %1159 = vmatpush1.bf16.xpose.msra.mxu0 %v1140
        %1160 = vmatprep.subr.bf16.mxu0 0
        %1161 = vmatpush2.bf16.xpose.msra.mxu0 0
        %1162 = vmatprep.subr.bf16.mxu0 0
        %1163 = vmatpush2.bf16.xpose.msra.mxu0 0
        %1164 = vmatprep.subr.bf16.mxu0 0
        %1165 = vmatpush2.bf16.xpose.msra.mxu0 0
        %1166 = vmatprep.subr.bf16.mxu0 0
        %1167 = vmatpush2.bf16.xpose.msra.mxu0 0
        %1168 = vmatprep.subr.bf16.mxu0 0
        %1169 = vmatpush2.bf16.xpose.msra.mxu0 0
        %1170 = vmatprep.subr.bf16.mxu0 0
        %1171 = vmatpush2.bf16.xpose.msra.mxu0 0
        %1172 = vmatprep.subr.bf16.mxu0 0
        %1173 = vmatpush2.bf16.xpose.msra.mxu0 0
        %1174 = vmatprep.subr.bf16.mxu0 0
        %1175 = vmatpush2.bf16.xpose.msra.mxu0 0
        %1176 = vmatprep.mubr.bf16.mxu0 0
        %1177 = vmatmul.mubr.bf16.gmra.mxu0 %v1138
        %v1178 = vpop.f32.mrf.mxu0
        %v1179 = vadd.f32 %v758, %v1178
        %v1180 = vpop.f32.mrf.mxu0
        %v1181 = vpop.f32.mrf.mxu0
        %v1182 = vadd.f32 %v759, %v1181
        %v1183 = vpop.f32.mrf.mxu0
        %1184 = vdwg.mxu0
        %1185 = vmatprep.subr.bf16.mxu0 0
        %1186 = vmatpush1.bf16.xpose.msra.mxu0 0
        %1187 = vmatprep.subr.bf16.mxu0 0
        %1188 = vmatpush1.bf16.xpose.msra.mxu0 0
        %1189 = vmatprep.subr.bf16.mxu0 0
        %1190 = vmatpush1.bf16.xpose.msra.mxu0 0
        %1191 = vmatprep.subr.bf16.mxu0 0
        %1192 = vmatpush1.bf16.xpose.msra.mxu0 0
        %1193 = vmatprep.subr.bf16.mxu0 0
        %1194 = vmatpush1.bf16.xpose.msra.mxu0 0
        %1195 = vmatprep.subr.bf16.mxu0 0
        %1196 = vmatpush1.bf16.xpose.msra.mxu0 0
        %1197 = vmatprep.subr.bf16.mxu0 0
        %1198 = vmatpush1.bf16.xpose.msra.mxu0 0
        %1199 = vmatprep.subr.bf16.mxu0 0
        %1200 = vmatpush1.bf16.xpose.msra.mxu0 %v1141
        %1201 = vmatprep.subr.bf16.mxu0 0
        %1202 = vmatpush2.bf16.xpose.msra.mxu0 0
        %1203 = vmatprep.subr.bf16.mxu0 0
        %1204 = vmatpush2.bf16.xpose.msra.mxu0 0
        %1205 = vmatprep.subr.bf16.mxu0 0
        %1206 = vmatpush2.bf16.xpose.msra.mxu0 0
        %1207 = vmatprep.subr.bf16.mxu0 0
        %1208 = vmatpush2.bf16.xpose.msra.mxu0 0
        %1209 = vmatprep.subr.bf16.mxu0 0
        %1210 = vmatpush2.bf16.xpose.msra.mxu0 0
        %1211 = vmatprep.subr.bf16.mxu0 0
        %1212 = vmatpush2.bf16.xpose.msra.mxu0 0
        %1213 = vmatprep.subr.bf16.mxu0 0
        %1214 = vmatpush2.bf16.xpose.msra.mxu0 0
        %1215 = vmatprep.subr.bf16.mxu0 0
        %1216 = vmatpush2.bf16.xpose.msra.mxu0 0
        %1217 = vmatprep.mubr.bf16.mxu0 0
        %1218 = vmatmul.mubr.bf16.gmra.mxu0 %v1139
        %v1219 = vpop.f32.mrf.mxu0
        %v1220 = vadd.f32 %v760, %v1219
        %v1221 = vpop.f32.mrf.mxu0
        %v1222 = vpop.f32.mrf.mxu0
        %v1223 = vadd.f32 %v761, %v1222
        %v1224 = vpop.f32.mrf.mxu0
        %1225 = vdwg.mxu0
        %vm1226 = vcmask 130048
        %v1227 = vsel %vm1226, %v1179, -inf
        %1228 = vmax.xlane.f32.xlu0 %v1227
        %v1229 = vpop.xlane.xlu0 %1228
        %v1230 = vsel %vm1226, %v1182, -inf
        %1231 = vmax.xlane.f32.xlu0 %v1230
        %v1232 = vpop.xlane.xlu0 %1231
        %v1233 = vsel %vm1226, %v1220, -inf
        %1234 = vmax.xlane.f32.xlu0 %v1233
        %v1235 = vpop.xlane.xlu0 %1234
        %v1236 = vsel %vm1226, %v1223, -inf
        %1237 = vmax.xlane.f32.xlu0 %v1236
        %v1238 = vpop.xlane.xlu0 %1237
        %v1239 = vsub.f32 %v1179, %v1229
        %v1240 = vsub.f32 %v1182, %v1232
        %v1241 = vsub.f32 %v1220, %v1235
        %v1242 = vsub.f32 %v1223, %v1238
        %v1243 = vmul.f32 %v1239, 1.442695
        %v1244 = vpow.pop %v1243
        %v1245 = vmul.f32 %v1240, 1.442695
        %v1246 = vpow.pop %v1245
        %v1247 = vmul.f32 %v1241, 1.442695
        %v1248 = vpow.pop %v1247
        %v1249 = vmul.f32 %v1242, 1.442695
        %v1250 = vpow.pop %v1249
        %v1251 = vsel %vm1226, %v1244, 0.0
        %1252 = vadd.xlane.f32.xlu0 %v1251
        %v1253 = vpop.xlane.xlu0 %1252
        %v1254 = vsel %vm1226, %v1246, 0.0
        %1255 = vadd.xlane.f32.xlu0 %v1254
        %v1256 = vpop.xlane.xlu0 %1255
        %v1257 = vsel %vm1226, %v1248, 0.0
        %1258 = vadd.xlane.f32.xlu0 %v1257
        %v1259 = vpop.xlane.xlu0 %1258
        %v1260 = vsel %vm1226, %v1250, 0.0
        %1261 = vadd.xlane.f32.xlu0 %v1260
        %v1262 = vpop.xlane.xlu0 %1261
        %v1263 = vrcp.pop %v1253
        %v1264 = vrcp.pop %v1256
        %v1265 = vrcp.pop %v1259
        %v1266 = vrcp.pop %v1262
        %v1267 = vmul.f32 %v1244, %v1263
        %v1268 = vmul.f32 %v1246, %v1264
        %v1269 = vmul.f32 %v1248, %v1265
        %v1270 = vmul.f32 %v1250, %v1266
        %v1271 = vpack.c.bf16 %v1268, %v1267
        %v1272 = vpack.c.bf16 %v1270, %v1269
        %v1274 = vsel %vm1226, %v1271, 0
        %1276 = vmatprep.subr.bf16.mxu0 0
        %1277 = vmatpush1.bf16.msra.mxu0 0
        %1278 = vmatprep.subr.bf16.mxu0 0
        %1279 = vmatpush1.bf16.msra.mxu0 0
        %1280 = vmatprep.subr.bf16.mxu0 0
        %1281 = vmatpush1.bf16.msra.mxu0 0
        %1282 = vmatprep.subr.bf16.mxu0 0
        %1283 = vmatpush1.bf16.msra.mxu0 0
        %1284 = vmatprep.subr.bf16.mxu0 0
        %1285 = vmatpush1.bf16.msra.mxu0 0
        %1286 = vmatprep.subr.bf16.mxu0 0
        %1287 = vmatpush1.bf16.msra.mxu0 0
        %1288 = vmatprep.subr.bf16.mxu0 0
        %1289 = vmatpush1.bf16.msra.mxu0 0
        %1290 = vmatprep.subr.bf16.mxu0 0
        %1291 = vmatpush1.bf16.msra.mxu0 %v1142
        %1292 = vmatprep.subr.bf16.mxu0 0
        %1293 = vmatpush2.bf16.msra.mxu0 0
        %1294 = vmatprep.subr.bf16.mxu0 0
        %1295 = vmatpush2.bf16.msra.mxu0 0
        %1296 = vmatprep.subr.bf16.mxu0 0
        %1297 = vmatpush2.bf16.msra.mxu0 0
        %1298 = vmatprep.subr.bf16.mxu0 0
        %1299 = vmatpush2.bf16.msra.mxu0 0
        %1300 = vmatprep.subr.bf16.mxu0 0
        %1301 = vmatpush2.bf16.msra.mxu0 0
        %1302 = vmatprep.subr.bf16.mxu0 0
        %1303 = vmatpush2.bf16.msra.mxu0 0
        %1304 = vmatprep.subr.bf16.mxu0 0
        %1305 = vmatpush2.bf16.msra.mxu0 0
        %1306 = vmatprep.subr.bf16.mxu0 0
        %1307 = vmatpush2.bf16.msra.mxu0 0
        %1308 = vmatprep.mubr.bf16.mxu0 0
        %1309 = vmatmul.mubr.bf16.gmra.mxu0 %v1274
        %v1310 = vpop.f32.mrf.mxu0
        %v1311 = vadd.f32 0.0, %v1310
        %v1312 = vpop.f32.mrf.mxu0
        %v1313 = vpop.f32.mrf.mxu0
        %v1314 = vadd.f32 0.0, %v1313
        %v1315 = vpop.f32.mrf.mxu0
        %1316 = vdwg.mxu0
        %v1318 = vsel %vm1226, %v1272, 0
        %1320 = vmatprep.subr.bf16.mxu0 0
        %1321 = vmatpush1.bf16.msra.mxu0 0
        %1322 = vmatprep.subr.bf16.mxu0 0
        %1323 = vmatpush1.bf16.msra.mxu0 0
        %1324 = vmatprep.subr.bf16.mxu0 0
        %1325 = vmatpush1.bf16.msra.mxu0 0
        %1326 = vmatprep.subr.bf16.mxu0 0
        %1327 = vmatpush1.bf16.msra.mxu0 0
        %1328 = vmatprep.subr.bf16.mxu0 0
        %1329 = vmatpush1.bf16.msra.mxu0 0
        %1330 = vmatprep.subr.bf16.mxu0 0
        %1331 = vmatpush1.bf16.msra.mxu0 0
        %1332 = vmatprep.subr.bf16.mxu0 0
        %1333 = vmatpush1.bf16.msra.mxu0 0
        %1334 = vmatprep.subr.bf16.mxu0 0
        %1335 = vmatpush1.bf16.msra.mxu0 %v1143
        %1336 = vmatprep.subr.bf16.mxu0 0
        %1337 = vmatpush2.bf16.msra.mxu0 0
        %1338 = vmatprep.subr.bf16.mxu0 0
        %1339 = vmatpush2.bf16.msra.mxu0 0
        %1340 = vmatprep.subr.bf16.mxu0 0
        %1341 = vmatpush2.bf16.msra.mxu0 0
        %1342 = vmatprep.subr.bf16.mxu0 0
        %1343 = vmatpush2.bf16.msra.mxu0 0
        %1344 = vmatprep.subr.bf16.mxu0 0
        %1345 = vmatpush2.bf16.msra.mxu0 0
        %1346 = vmatprep.subr.bf16.mxu0 0
        %1347 = vmatpush2.bf16.msra.mxu0 0
        %1348 = vmatprep.subr.bf16.mxu0 0
        %1349 = vmatpush2.bf16.msra.mxu0 0
        %1350 = vmatprep.subr.bf16.mxu0 0
        %1351 = vmatpush2.bf16.msra.mxu0 0
        %1352 = vmatprep.mubr.bf16.mxu0 0
        %1353 = vmatmul.mubr.bf16.gmra.mxu0 %v1318
        %v1354 = vpop.f32.mrf.mxu0
        %v1355 = vadd.f32 0.0, %v1354
        %v1356 = vpop.f32.mrf.mxu0
        %v1357 = vpop.f32.mrf.mxu0
        %v1358 = vadd.f32 0.0, %v1357
        %v1359 = vpop.f32.mrf.mxu0
        %1360 = vdwg.mxu0
        %v1361 = vpack.c.bf16 %v1314, %v1311
        %v1362 = vpack.c.bf16 %v1358, %v1355
        %v1363 = vld [vmem:[%s619] sm:$0xf]
        %v1364 = vld [vmem:[%s619 + $0x4] sm:$0xf]
        %v1365 = vld [vmem:[%s619 + $0x8] sm:$0xf]
        %v1366 = vld [vmem:[%s619 + $0xc] sm:$0xf]
        %v1367 = vld [vmem:[%s619 + $0x10] sm:$0xf]
        %v1368 = vld [vmem:[%s619 + $0x14] sm:$0xf]
        %v1369 = vld [vmem:[%s619 + $0x18] sm:$0xf]
        %v1370 = vld [vmem:[%s619 + $0x1c] sm:$0xf]
        %v1371 = vld [vmem:[%s619 + $0x20] sm:$0xf]
        %v1372 = vld [vmem:[%s619 + $0x24] sm:$0xf]
        %v1373 = vld [vmem:[%s619 + $0x28] sm:$0xf]
        %v1374 = vld [vmem:[%s619 + $0x2c] sm:$0xf]
        %v1375 = vld [vmem:[%s619 + $0x30] sm:$0xf]
        %v1376 = vld [vmem:[%s619 + $0x34] sm:$0xf]
        %v1377 = vld [vmem:[%s619 + $0x38] sm:$0xf]
        %v1378 = vld [vmem:[%s619 + $0x3c] sm:$0xf]
        %v1379 = vlaneseq
        %v1380 = vshrl.u32 %v1379, 7
        %v1381 = vsub.s32 3, %v1380
        %v1382 = vrot.slane %v762, %v1381
        %v1399 = vunpack.c.l.b16 %v1363
        %v1400 = vunpack.c.l.b16 %v1364
        %v1401 = vunpack.c.l.b16 %v1365
        %v1402 = vunpack.c.l.b16 %v1366
        %v1403 = vunpack.c.l.b16 %v1367
        %v1404 = vunpack.c.l.b16 %v1368
        %v1405 = vunpack.c.l.b16 %v1369
        %v1406 = vunpack.c.l.b16 %v1370
        %v1407 = vunpack.c.l.b16 %v1371
        %v1408 = vunpack.c.l.b16 %v1372
        %v1409 = vunpack.c.l.b16 %v1373
        %v1410 = vunpack.c.l.b16 %v1374
        %v1411 = vunpack.c.l.b16 %v1375
        %v1412 = vunpack.c.l.b16 %v1376
        %v1413 = vunpack.c.l.b16 %v1377
        %v1414 = vunpack.c.l.b16 %v1378
        %v1415 = vpack.c.b16 %v1400, %v1399
        %v1416 = vpack.c.b16 %v1402, %v1401
        %v1417 = vpack.c.b16 %v1404, %v1403
        %v1418 = vpack.c.b16 %v1406, %v1405
        %v1419 = vpack.c.b16 %v1408, %v1407
        %v1420 = vpack.c.b16 %v1410, %v1409
        %v1421 = vpack.c.b16 %v1412, %v1411
        %v1422 = vpack.c.b16 %v1414, %v1413
        %1431 = vmatprep.subr.bf16.mxu0 0
        %1432 = vmatpush1.bf16.msra.mxu0 %v1422
        %1433 = vmatprep.subr.bf16.mxu0 0
        %1434 = vmatpush1.bf16.msra.mxu0 %v1421
        %1435 = vmatprep.subr.bf16.mxu0 0
        %1436 = vmatpush1.bf16.msra.mxu0 %v1420
        %1437 = vmatprep.subr.bf16.mxu0 0
        %1438 = vmatpush1.bf16.msra.mxu0 %v1419
        %1439 = vmatprep.subr.bf16.mxu0 0
        %1440 = vmatpush1.bf16.msra.mxu0 %v1418
        %1441 = vmatprep.subr.bf16.mxu0 0
        %1442 = vmatpush1.bf16.msra.mxu0 %v1417
        %1443 = vmatprep.subr.bf16.mxu0 0
        %1444 = vmatpush1.bf16.msra.mxu0 %v1416
        %1445 = vmatprep.subr.bf16.mxu0 0
        %1446 = vmatpush1.bf16.msra.mxu0 %v1415
        %1447 = vmatprep.subr.bf16.mxu0 0
        %1448 = vmatpush2.bf16.msra.mxu0 0
        %1449 = vmatprep.subr.bf16.mxu0 0
        %1450 = vmatpush2.bf16.msra.mxu0 0
        %1451 = vmatprep.subr.bf16.mxu0 0
        %1452 = vmatpush2.bf16.msra.mxu0 0
        %1453 = vmatprep.subr.bf16.mxu0 0
        %1454 = vmatpush2.bf16.msra.mxu0 0
        %1455 = vmatprep.subr.bf16.mxu0 0
        %1456 = vmatpush2.bf16.msra.mxu0 0
        %1457 = vmatprep.subr.bf16.mxu0 0
        %1458 = vmatpush2.bf16.msra.mxu0 0
        %1459 = vmatprep.subr.bf16.mxu0 0
        %1460 = vmatpush2.bf16.msra.mxu0 0
        %1461 = vmatprep.subr.bf16.mxu0 0
        %1462 = vmatpush2.bf16.msra.mxu0 0
        %1463 = vmatprep.mubr.bf16.mxu0 0
        %1464 = vmatmul.mubr.bf16.gmra.mxu0 %v1361
        %v1465 = vpop.f32.mrf.mxu0
        %v1466 = vadd.f32 %v1382, %v1465
        %v1467 = vpop.f32.mrf.mxu0
        %v1468 = vpop.f32.mrf.mxu0
        %v1469 = vadd.f32 %v1382, %v1468
        %v1470 = vpop.f32.mrf.mxu0
        %1471 = vmatprep.mubr.bf16.mxu0 0
        %1472 = vmatmul.mubr.bf16.gmra.mxu0 %v1362
        %v1473 = vpop.f32.mrf.mxu0
        %v1474 = vadd.f32 %v1382, %v1473
        %v1475 = vpop.f32.mrf.mxu0
        %v1476 = vpop.f32.mrf.mxu0
        %v1477 = vadd.f32 %v1382, %v1476
        %v1478 = vpop.f32.mrf.mxu0
        %1479 = vdwg.mxu0
        %v1480 = vadd.f32 %v748, %v1466
        %v1481 = vadd.f32 %v749, %v1469
        %v1482 = vadd.f32 %v750, %v1474
        %v1483 = vadd.f32 %v751, %v1477
        %1484 = vadd.xlane.f32.xlu0 %v1480
        %v1485 = vpop.xlane.xlu0 %1484
        %1486 = vadd.xlane.f32.xlu0 %v1481
        %v1487 = vpop.xlane.xlu0 %1486
        %1488 = vadd.xlane.f32.xlu0 %v1482
        %v1489 = vpop.xlane.xlu0 %1488
        %1490 = vadd.xlane.f32.xlu0 %v1483
        %v1491 = vpop.xlane.xlu0 %1490
        %v1492 = vrcp.pop 128.0
        %v1493 = vmul.f32 %v1485, %v1492
        %v1494 = vmul.f32 %v1487, %v1492
        %v1495 = vmul.f32 %v1489, %v1492
        %v1496 = vmul.f32 %v1491, %v1492
        %v1497 = vmul.f32 %v1480, %v1480
        %v1498 = vmul.f32 %v1481, %v1481
        %v1499 = vmul.f32 %v1482, %v1482
        %v1500 = vmul.f32 %v1483, %v1483
        %1501 = vadd.xlane.f32.xlu0 %v1497
        %v1502 = vpop.xlane.xlu0 %1501
        %1503 = vadd.xlane.f32.xlu0 %v1498
        %v1504 = vpop.xlane.xlu0 %1503
        %1505 = vadd.xlane.f32.xlu0 %v1499
        %v1506 = vpop.xlane.xlu0 %1505
        %1507 = vadd.xlane.f32.xlu0 %v1500
        %v1508 = vpop.xlane.xlu0 %1507
        %v1509 = vmul.f32 %v1502, %v1492
        %v1510 = vmul.f32 %v1504, %v1492
        %v1511 = vmul.f32 %v1506, %v1492
        %v1512 = vmul.f32 %v1508, %v1492
        %v1513 = vmul.f32 %v1493, %v1493
        %v1514 = vmul.f32 %v1494, %v1494
        %v1515 = vmul.f32 %v1495, %v1495
        %v1516 = vmul.f32 %v1496, %v1496
        %v1517 = vsub.f32 %v1509, %v1513
        %v1518 = vsub.f32 %v1510, %v1514
        %v1519 = vsub.f32 %v1511, %v1515
        %v1520 = vsub.f32 %v1512, %v1516
        %v1521 = vmax.f32 %v1517, 0.0
        %v1522 = vmax.f32 %v1518, 0.0
        %v1523 = vmax.f32 %v1519, 0.0
        %v1524 = vmax.f32 %v1520, 0.0
        %v1525 = vsub.f32 %v1480, %v1493
        %v1526 = vsub.f32 %v1481, %v1494
        %v1527 = vsub.f32 %v1482, %v1495
        %v1528 = vsub.f32 %v1483, %v1496
        %v1529 = vadd.f32 %v1521, 1e-05
        %v1530 = vadd.f32 %v1522, 1e-05
        %v1531 = vadd.f32 %v1523, 1e-05
        %v1532 = vadd.f32 %v1524, 1e-05
        %v1533 = vrsqrt.pop %v1529
        %v1534 = vrsqrt.pop %v1530
        %v1535 = vrsqrt.pop %v1531
        %v1536 = vrsqrt.pop %v1532
        %v1537 = vmul.f32 %v1525, %v1533
        %v1538 = vmul.f32 %v1526, %v1534
        %v1539 = vmul.f32 %v1527, %v1535
        %v1540 = vmul.f32 %v1528, %v1536
        %v1541 = vlaneseq
        %v1542 = vshrl.u32 %v1541, 7
        %v1543 = vsub.s32 4, %v1542
        %v1544 = vrot.slane %v762, %v1543
        %v1545 = vmul.f32 %v1537, %v1544
        %v1546 = vmul.f32 %v1538, %v1544
        %v1547 = vmul.f32 %v1539, %v1544
        %v1548 = vmul.f32 %v1540, %v1544
        %v1549 = vlaneseq
        %v1550 = vshrl.u32 %v1549, 7
        %v1551 = vsub.s32 5, %v1550
        %v1552 = vrot.slane %v762, %v1551
        %v1553 = vadd.f32 %v1545, %v1552
        %v1554 = vadd.f32 %v1546, %v1552
        %v1555 = vadd.f32 %v1547, %v1552
        %v1556 = vadd.f32 %v1548, %v1552
        %v1557 = vpack.c.bf16 %v1554, %v1553
        %v1558 = vpack.c.bf16 %v1556, %v1555
        %v1559 = vld [vmem:[%s628] sm:$0xff]
        %v1560 = vld [vmem:[%s628 + $0x8] sm:$0xff]
        %v1561 = vld [vmem:[%s628 + $0x10] sm:$0xff]
        %v1562 = vld [vmem:[%s628 + $0x18] sm:$0xff]
        %v1563 = vld [vmem:[%s628 + $0x20] sm:$0xff]
        %v1564 = vld [vmem:[%s628 + $0x28] sm:$0xff]
        %v1565 = vld [vmem:[%s628 + $0x30] sm:$0xff]
        %v1566 = vld [vmem:[%s628 + $0x38] sm:$0xff]
        %v1567 = vld [vmem:[%s628 + $0x40] sm:$0xff]
        %v1568 = vld [vmem:[%s628 + $0x48] sm:$0xff]
        %v1569 = vld [vmem:[%s628 + $0x50] sm:$0xff]
        %v1570 = vld [vmem:[%s628 + $0x58] sm:$0xff]
        %v1571 = vld [vmem:[%s628 + $0x60] sm:$0xff]
        %v1572 = vld [vmem:[%s628 + $0x68] sm:$0xff]
        %v1573 = vld [vmem:[%s628 + $0x70] sm:$0xff]
        %v1574 = vld [vmem:[%s628 + $0x78] sm:$0xff]
        %v1576 = vlaneseq
        %v1577 = vshrl.u32 %v1576, 7
        %v1578 = vsub.s32 0, %v1577
        %v1579 = vrot.slane %v764, %v1578
        %v1580 = vlaneseq
        %v1581 = vshrl.u32 %v1580, 7
        %v1582 = vsub.s32 1, %v1581
        %v1583 = vrot.slane %v764, %v1582
        %v1602 = vunpack.c.l.b16 %v1559
        %v1603 = vunpack.c.h.b16 %v1559
        %v1604 = vunpack.c.l.b16 %v1560
        %v1605 = vunpack.c.h.b16 %v1560
        %v1606 = vunpack.c.l.b16 %v1561
        %v1607 = vunpack.c.h.b16 %v1561
        %v1608 = vunpack.c.l.b16 %v1562
        %v1609 = vunpack.c.h.b16 %v1562
        %v1610 = vunpack.c.l.b16 %v1563
        %v1611 = vunpack.c.h.b16 %v1563
        %v1612 = vunpack.c.l.b16 %v1564
        %v1613 = vunpack.c.h.b16 %v1564
        %v1614 = vunpack.c.l.b16 %v1565
        %v1615 = vunpack.c.h.b16 %v1565
        %v1616 = vunpack.c.l.b16 %v1566
        %v1617 = vunpack.c.h.b16 %v1566
        %v1618 = vunpack.c.l.b16 %v1567
        %v1619 = vunpack.c.h.b16 %v1567
        %v1620 = vunpack.c.l.b16 %v1568
        %v1621 = vunpack.c.h.b16 %v1568
        %v1622 = vunpack.c.l.b16 %v1569
        %v1623 = vunpack.c.h.b16 %v1569
        %v1624 = vunpack.c.l.b16 %v1570
        %v1625 = vunpack.c.h.b16 %v1570
        %v1626 = vunpack.c.l.b16 %v1571
        %v1627 = vunpack.c.h.b16 %v1571
        %v1628 = vunpack.c.l.b16 %v1572
        %v1629 = vunpack.c.h.b16 %v1572
        %v1630 = vunpack.c.l.b16 %v1573
        %v1631 = vunpack.c.h.b16 %v1573
        %v1632 = vunpack.c.l.b16 %v1574
        %v1633 = vunpack.c.h.b16 %v1574
        %v1634 = vpack.c.b16 %v1604, %v1602
        %v1635 = vpack.c.b16 %v1605, %v1603
        %v1636 = vpack.c.b16 %v1608, %v1606
        %v1637 = vpack.c.b16 %v1609, %v1607
        %v1638 = vpack.c.b16 %v1612, %v1610
        %v1639 = vpack.c.b16 %v1613, %v1611
        %v1640 = vpack.c.b16 %v1616, %v1614
        %v1641 = vpack.c.b16 %v1617, %v1615
        %v1642 = vpack.c.b16 %v1620, %v1618
        %v1643 = vpack.c.b16 %v1621, %v1619
        %v1644 = vpack.c.b16 %v1624, %v1622
        %v1645 = vpack.c.b16 %v1625, %v1623
        %v1646 = vpack.c.b16 %v1628, %v1626
        %v1647 = vpack.c.b16 %v1629, %v1627
        %v1648 = vpack.c.b16 %v1632, %v1630
        %v1649 = vpack.c.b16 %v1633, %v1631
        %1666 = vmatprep.subr.bf16.mxu0 %v1649
        %1667 = vmatpush1.bf16.msra.mxu0 %v1648
        %1668 = vmatprep.subr.bf16.mxu0 %v1647
        %1669 = vmatpush1.bf16.msra.mxu0 %v1646
        %1670 = vmatprep.subr.bf16.mxu0 %v1645
        %1671 = vmatpush1.bf16.msra.mxu0 %v1644
        %1672 = vmatprep.subr.bf16.mxu0 %v1643
        %1673 = vmatpush1.bf16.msra.mxu0 %v1642
        %1674 = vmatprep.subr.bf16.mxu0 %v1641
        %1675 = vmatpush1.bf16.msra.mxu0 %v1640
        %1676 = vmatprep.subr.bf16.mxu0 %v1639
        %1677 = vmatpush1.bf16.msra.mxu0 %v1638
        %1678 = vmatprep.subr.bf16.mxu0 %v1637
        %1679 = vmatpush1.bf16.msra.mxu0 %v1636
        %1680 = vmatprep.subr.bf16.mxu0 %v1635
        %1681 = vmatpush1.bf16.msra.mxu0 %v1634
        %1682 = vmatprep.subr.bf16.mxu0 0
        %1683 = vmatpush2.bf16.msra.mxu0 0
        %1684 = vmatprep.subr.bf16.mxu0 0
        %1685 = vmatpush2.bf16.msra.mxu0 0
        %1686 = vmatprep.subr.bf16.mxu0 0
        %1687 = vmatpush2.bf16.msra.mxu0 0
        %1688 = vmatprep.subr.bf16.mxu0 0
        %1689 = vmatpush2.bf16.msra.mxu0 0
        %1690 = vmatprep.subr.bf16.mxu0 0
        %1691 = vmatpush2.bf16.msra.mxu0 0
        %1692 = vmatprep.subr.bf16.mxu0 0
        %1693 = vmatpush2.bf16.msra.mxu0 0
        %1694 = vmatprep.subr.bf16.mxu0 0
        %1695 = vmatpush2.bf16.msra.mxu0 0
        %1696 = vmatprep.subr.bf16.mxu0 0
        %1697 = vmatpush2.bf16.msra.mxu0 0
        %1698 = vmatprep.mubr.bf16.mxu0 0
        %1699 = vmatmul.mubr.bf16.gmra.mxu0 %v1557
        %v1700 = vpop.f32.mrf.mxu0
        %v1701 = vadd.f32 %v1579, %v1700
        %v1702 = vpop.f32.mrf.mxu0
        %v1703 = vadd.f32 %v1583, %v1702
        %v1704 = vpop.f32.mrf.mxu0
        %v1705 = vadd.f32 %v1579, %v1704
        %v1706 = vpop.f32.mrf.mxu0
        %v1707 = vadd.f32 %v1583, %v1706
        %1708 = vmatprep.mubr.bf16.mxu0 0
        %1709 = vmatmul.mubr.bf16.gmra.mxu0 %v1558
        %v1710 = vpop.f32.mrf.mxu0
        %v1711 = vadd.f32 %v1579, %v1710
        %v1712 = vpop.f32.mrf.mxu0
        %v1713 = vadd.f32 %v1583, %v1712
        %v1714 = vpop.f32.mrf.mxu0
        %v1715 = vadd.f32 %v1579, %v1714
        %v1716 = vpop.f32.mrf.mxu0
        %v1717 = vadd.f32 %v1583, %v1716
        %1718 = vdwg.mxu0
        %v1719 = vmax.f32 %v1701, 0.0
        %v1720 = vmax.f32 %v1703, 0.0
        %v1721 = vmax.f32 %v1705, 0.0
        %v1722 = vmax.f32 %v1707, 0.0
        %v1723 = vmax.f32 %v1711, 0.0
        %v1724 = vmax.f32 %v1713, 0.0
        %v1725 = vmax.f32 %v1715, 0.0
        %v1726 = vmax.f32 %v1717, 0.0
        %v1727 = vpack.c.bf16 %v1721, %v1719
        %v1728 = vpack.c.bf16 %v1722, %v1720
        %v1729 = vpack.c.bf16 %v1725, %v1723
        %v1730 = vpack.c.bf16 %v1726, %v1724
        %v1731 = vld [vmem:[%s637] sm:$0xf]
        %v1732 = vld [vmem:[%s637 + $0x4] sm:$0xf]
        %v1733 = vld [vmem:[%s637 + $0x8] sm:$0xf]
        %v1734 = vld [vmem:[%s637 + $0xc] sm:$0xf]
        %v1735 = vld [vmem:[%s637 + $0x10] sm:$0xf]
        %v1736 = vld [vmem:[%s637 + $0x14] sm:$0xf]
        %v1737 = vld [vmem:[%s637 + $0x18] sm:$0xf]
        %v1738 = vld [vmem:[%s637 + $0x1c] sm:$0xf]
        %v1739 = vld [vmem:[%s637 + $0x20] sm:$0xf]
        %v1740 = vld [vmem:[%s637 + $0x24] sm:$0xf]
        %v1741 = vld [vmem:[%s637 + $0x28] sm:$0xf]
        %v1742 = vld [vmem:[%s637 + $0x2c] sm:$0xf]
        %v1743 = vld [vmem:[%s637 + $0x30] sm:$0xf]
        %v1744 = vld [vmem:[%s637 + $0x34] sm:$0xf]
        %v1745 = vld [vmem:[%s637 + $0x38] sm:$0xf]
        %v1746 = vld [vmem:[%s637 + $0x3c] sm:$0xf]
        %v1747 = vld [vmem:[%s637 + $0x40] sm:$0xf]
        %v1748 = vld [vmem:[%s637 + $0x44] sm:$0xf]
        %v1749 = vld [vmem:[%s637 + $0x48] sm:$0xf]
        %v1750 = vld [vmem:[%s637 + $0x4c] sm:$0xf]
        %v1751 = vld [vmem:[%s637 + $0x50] sm:$0xf]
        %v1752 = vld [vmem:[%s637 + $0x54] sm:$0xf]
        %v1753 = vld [vmem:[%s637 + $0x58] sm:$0xf]
        %v1754 = vld [vmem:[%s637 + $0x5c] sm:$0xf]
        %v1755 = vld [vmem:[%s637 + $0x60] sm:$0xf]
        %v1756 = vld [vmem:[%s637 + $0x64] sm:$0xf]
        %v1757 = vld [vmem:[%s637 + $0x68] sm:$0xf]
        %v1758 = vld [vmem:[%s637 + $0x6c] sm:$0xf]
        %v1759 = vld [vmem:[%s637 + $0x70] sm:$0xf]
        %v1760 = vld [vmem:[%s637 + $0x74] sm:$0xf]
        %v1761 = vld [vmem:[%s637 + $0x78] sm:$0xf]
        %v1762 = vld [vmem:[%s637 + $0x7c] sm:$0xf]
        %v1763 = vlaneseq
        %v1764 = vshrl.u32 %v1763, 7
        %v1765 = vsub.s32 6, %v1764
        %v1766 = vrot.slane %v762, %v1765
        %v1799 = vunpack.c.l.b16 %v1731
        %v1800 = vunpack.c.l.b16 %v1732
        %v1801 = vunpack.c.l.b16 %v1733
        %v1802 = vunpack.c.l.b16 %v1734
        %v1803 = vunpack.c.l.b16 %v1735
        %v1804 = vunpack.c.l.b16 %v1736
        %v1805 = vunpack.c.l.b16 %v1737
        %v1806 = vunpack.c.l.b16 %v1738
        %v1807 = vunpack.c.l.b16 %v1739
        %v1808 = vunpack.c.l.b16 %v1740
        %v1809 = vunpack.c.l.b16 %v1741
        %v1810 = vunpack.c.l.b16 %v1742
        %v1811 = vunpack.c.l.b16 %v1743
        %v1812 = vunpack.c.l.b16 %v1744
        %v1813 = vunpack.c.l.b16 %v1745
        %v1814 = vunpack.c.l.b16 %v1746
        %v1815 = vunpack.c.l.b16 %v1747
        %v1816 = vunpack.c.l.b16 %v1748
        %v1817 = vunpack.c.l.b16 %v1749
        %v1818 = vunpack.c.l.b16 %v1750
        %v1819 = vunpack.c.l.b16 %v1751
        %v1820 = vunpack.c.l.b16 %v1752
        %v1821 = vunpack.c.l.b16 %v1753
        %v1822 = vunpack.c.l.b16 %v1754
        %v1823 = vunpack.c.l.b16 %v1755
        %v1824 = vunpack.c.l.b16 %v1756
        %v1825 = vunpack.c.l.b16 %v1757
        %v1826 = vunpack.c.l.b16 %v1758
        %v1827 = vunpack.c.l.b16 %v1759
        %v1828 = vunpack.c.l.b16 %v1760
        %v1829 = vunpack.c.l.b16 %v1761
        %v1830 = vunpack.c.l.b16 %v1762
        %v1831 = vpack.c.b16 %v1800, %v1799
        %v1832 = vpack.c.b16 %v1802, %v1801
        %v1833 = vpack.c.b16 %v1804, %v1803
        %v1834 = vpack.c.b16 %v1806, %v1805
        %v1835 = vpack.c.b16 %v1808, %v1807
        %v1836 = vpack.c.b16 %v1810, %v1809
        %v1837 = vpack.c.b16 %v1812, %v1811
        %v1838 = vpack.c.b16 %v1814, %v1813
        %v1839 = vpack.c.b16 %v1816, %v1815
        %v1840 = vpack.c.b16 %v1818, %v1817
        %v1841 = vpack.c.b16 %v1820, %v1819
        %v1842 = vpack.c.b16 %v1822, %v1821
        %v1843 = vpack.c.b16 %v1824, %v1823
        %v1844 = vpack.c.b16 %v1826, %v1825
        %v1845 = vpack.c.b16 %v1828, %v1827
        %v1846 = vpack.c.b16 %v1830, %v1829
        %1863 = vmatprep.subr.bf16.mxu0 0
        %1864 = vmatpush1.bf16.msra.mxu0 %v1838
        %1865 = vmatprep.subr.bf16.mxu0 0
        %1866 = vmatpush1.bf16.msra.mxu0 %v1837
        %1867 = vmatprep.subr.bf16.mxu0 0
        %1868 = vmatpush1.bf16.msra.mxu0 %v1836
        %1869 = vmatprep.subr.bf16.mxu0 0
        %1870 = vmatpush1.bf16.msra.mxu0 %v1835
        %1871 = vmatprep.subr.bf16.mxu0 0
        %1872 = vmatpush1.bf16.msra.mxu0 %v1834
        %1873 = vmatprep.subr.bf16.mxu0 0
        %1874 = vmatpush1.bf16.msra.mxu0 %v1833
        %1875 = vmatprep.subr.bf16.mxu0 0
        %1876 = vmatpush1.bf16.msra.mxu0 %v1832
        %1877 = vmatprep.subr.bf16.mxu0 0
        %1878 = vmatpush1.bf16.msra.mxu0 %v1831
        %1879 = vmatprep.subr.bf16.mxu0 0
        %1880 = vmatpush2.bf16.msra.mxu0 %v1846
        %1881 = vmatprep.subr.bf16.mxu0 0
        %1882 = vmatpush2.bf16.msra.mxu0 %v1845
        %1883 = vmatprep.subr.bf16.mxu0 0
        %1884 = vmatpush2.bf16.msra.mxu0 %v1844
        %1885 = vmatprep.subr.bf16.mxu0 0
        %1886 = vmatpush2.bf16.msra.mxu0 %v1843
        %1887 = vmatprep.subr.bf16.mxu0 0
        %1888 = vmatpush2.bf16.msra.mxu0 %v1842
        %1889 = vmatprep.subr.bf16.mxu0 0
        %1890 = vmatpush2.bf16.msra.mxu0 %v1841
        %1891 = vmatprep.subr.bf16.mxu0 0
        %1892 = vmatpush2.bf16.msra.mxu0 %v1840
        %1893 = vmatprep.subr.bf16.mxu0 0
        %1894 = vmatpush2.bf16.msra.mxu0 %v1839
        %1895 = vmatprep.mubr.bf16.mxu0 %v1728
        %1896 = vmatmul.mubr.bf16.gmra.mxu0 %v1727
        %v1897 = vpop.f32.mrf.mxu0
        %v1898 = vadd.f32 %v1766, %v1897
        %v1899 = vpop.f32.mrf.mxu0
        %v1900 = vpop.f32.mrf.mxu0
        %v1901 = vadd.f32 %v1766, %v1900
        %v1902 = vpop.f32.mrf.mxu0
        %1903 = vmatprep.mubr.bf16.mxu0 %v1730
        %1904 = vmatmul.mubr.bf16.gmra.mxu0 %v1729
        %v1905 = vpop.f32.mrf.mxu0
        %v1906 = vadd.f32 %v1766, %v1905
        %v1907 = vpop.f32.mrf.mxu0
        %v1908 = vpop.f32.mrf.mxu0
        %v1909 = vadd.f32 %v1766, %v1908
        %v1910 = vpop.f32.mrf.mxu0
        %1911 = vdwg.mxu0
        %v1912 = vadd.f32 %v1553, %v1898
        %v1913 = vadd.f32 %v1554, %v1901
        %v1914 = vadd.f32 %v1555, %v1906
        %v1915 = vadd.f32 %v1556, %v1909
        %1916 = vadd.xlane.f32.xlu0 %v1912
        %v1917 = vpop.xlane.xlu0 %1916
        %1918 = vadd.xlane.f32.xlu0 %v1913
        %v1919 = vpop.xlane.xlu0 %1918
        %1920 = vadd.xlane.f32.xlu0 %v1914
        %v1921 = vpop.xlane.xlu0 %1920
        %1922 = vadd.xlane.f32.xlu0 %v1915
        %v1923 = vpop.xlane.xlu0 %1922
        %v1924 = vmul.f32 %v1917, %v1492
        %v1925 = vmul.f32 %v1919, %v1492
        %v1926 = vmul.f32 %v1921, %v1492
        %v1927 = vmul.f32 %v1923, %v1492
        %v1928 = vmul.f32 %v1912, %v1912
        %v1929 = vmul.f32 %v1913, %v1913
        %v1930 = vmul.f32 %v1914, %v1914
        %v1931 = vmul.f32 %v1915, %v1915
        %1932 = vadd.xlane.f32.xlu0 %v1928
        %v1933 = vpop.xlane.xlu0 %1932
        %1934 = vadd.xlane.f32.xlu0 %v1929
        %v1935 = vpop.xlane.xlu0 %1934
        %1936 = vadd.xlane.f32.xlu0 %v1930
        %v1937 = vpop.xlane.xlu0 %1936
        %1938 = vadd.xlane.f32.xlu0 %v1931
        %v1939 = vpop.xlane.xlu0 %1938
        %v1940 = vmul.f32 %v1933, %v1492
        %v1941 = vmul.f32 %v1935, %v1492
        %v1942 = vmul.f32 %v1937, %v1492
        %v1943 = vmul.f32 %v1939, %v1492
        %v1944 = vmul.f32 %v1924, %v1924
        %v1945 = vmul.f32 %v1925, %v1925
        %v1946 = vmul.f32 %v1926, %v1926
        %v1947 = vmul.f32 %v1927, %v1927
        %v1948 = vsub.f32 %v1940, %v1944
        %v1949 = vsub.f32 %v1941, %v1945
        %v1950 = vsub.f32 %v1942, %v1946
        %v1951 = vsub.f32 %v1943, %v1947
        %v1952 = vmax.f32 %v1948, 0.0
        %v1953 = vmax.f32 %v1949, 0.0
        %v1954 = vmax.f32 %v1950, 0.0
        %v1955 = vmax.f32 %v1951, 0.0
        %v1956 = vsub.f32 %v1912, %v1924
        %v1957 = vsub.f32 %v1913, %v1925
        %v1958 = vsub.f32 %v1914, %v1926
        %v1959 = vsub.f32 %v1915, %v1927
        %v1960 = vadd.f32 %v1952, 1e-05
        %v1961 = vadd.f32 %v1953, 1e-05
        %v1962 = vadd.f32 %v1954, 1e-05
        %v1963 = vadd.f32 %v1955, 1e-05
        %v1964 = vrsqrt.pop %v1960
        %v1965 = vrsqrt.pop %v1961
        %v1966 = vrsqrt.pop %v1962
        %v1967 = vrsqrt.pop %v1963
        %v1968 = vmul.f32 %v1956, %v1964
        %v1969 = vmul.f32 %v1957, %v1965
        %v1970 = vmul.f32 %v1958, %v1966
        %v1971 = vmul.f32 %v1959, %v1967
        %v1972 = vlaneseq
        %v1973 = vshrl.u32 %v1972, 7
        %v1974 = vsub.s32 7, %v1973
        %v1975 = vrot.slane %v762, %v1974
        %v1976 = vmul.f32 %v1968, %v1975
        %v1977 = vmul.f32 %v1969, %v1975
        %v1978 = vmul.f32 %v1970, %v1975
        %v1979 = vmul.f32 %v1971, %v1975
        %v1980 = vlaneseq
        %v1981 = vshrl.u32 %v1980, 7
        %v1982 = vsub.s32 0, %v1981
        %v1983 = vrot.slane %v763, %v1982
        %v1984 = vadd.f32 %v1976, %v1983
        %v1985 = vadd.f32 %v1977, %v1983
        %v1986 = vadd.f32 %v1978, %v1983
        %v1987 = vadd.f32 %v1979, %v1983
        %1988 = vst [vmem:[#allocation16] sm:$0xff] %v1984
        %1989 = vst [vmem:[#allocation16 + $0x8] sm:$0xff] %v1985
        %1990 = vst [vmem:[#allocation16 + $0x10] sm:$0xff] %v1986
        %1991 = vst [vmem:[#allocation16 + $0x18] sm:$0xff] %v1987
        // Predicated region
        $region105: #{tpu_custom_call.1} parent=67 // pred_check
          %p1992 = pneg %p369
        $region106: #{tpu_custom_call.1} parent=67 // pred_check_branch
          %1994 = sbr.rel (%p1992) target = $region108
        $region107: #{tpu_custom_call.1} parent=67 // pred_region
          %s1995 = smul.u32 2, %s41
          %s1997 = ssub.s32 512, 512
          %1998 = vsyncadd [#allocation4], %s1997
          %s1999 = smul.addr %s1995, 2
          %s2000 = smul.addr %s1999, 128
          %s2001 = scalar_lea.hbm %s12, %s2000
          %s2002 = sshll.u32 [#allocation16], 4
          %s2003 = int_to_ptr.vmem [resolvable:$true] %s2002
          %2008 = dma.vmem_to_hbm [thread:$0]  %s2003, 512, %s2001, [#allocation4], 128, 128, 8
        $region108: #{tpu_custom_call.1} parent=67 // pred_fallthru
          _
        // Predicated region
        $region109: #{tpu_custom_call.1} parent=67 // pred_check
          %p2009 = pneg %p369
        $region110: #{tpu_custom_call.1} parent=67 // pred_check_branch
          %2011 = sbr.rel (%p2009) target = $region112
        $region111: #{tpu_custom_call.1} parent=67 // pred_region
          %2012 = dma.done [#allocation4], 512
        $region112: #{tpu_custom_call.1} parent=67 // pred_fallthru
          _
      $region68: #{tpu_custom_call.1} parent=5 // pred_fallthru
        _
      %p2013 = scmp.le.s32.totalorder 2, %s32
      // Predicated region
      $region113: #{tpu_custom_call.1} parent=5 // pred_check
        %p2014 = pneg %p2013
      $region114: #{tpu_custom_call.1} parent=5 // pred_check_branch
        %2016 = sbr.rel (%p2014) target = $region116
      $region115: #{tpu_custom_call.1} parent=5 // pred_region
        %s2017 = ssub.s32 %s32, 2
      $region116: #{tpu_custom_call.1} parent=5 // pred_fallthru
        _
    $region6: #{tpu_custom_call.1} parent=1 // loop_footer
      %s36 = sadd.s32 1, %s32
    $region7: #{tpu_custom_call.1} parent=1 // loop_footer_branch
      %31 = sbr.rel target = $region3
    $region8: #{tpu_custom_call.1} parent=1 // loop_exit
      _
    %2018 = vsyncpa [#allocation3], 1
    %s2019 = scalar_lea.sflag [#allocation3], 1
    %2020 = vsyncpa %s2019, 1
    %2021 = vsyncpa [#allocation6], 1
    %s2022 = scalar_lea.sflag [#allocation6], 1
    %2023 = vsyncpa %s2022, 1
    %2024 = vsyncpa [#allocation9], 1
    %s2025 = scalar_lea.sflag [#allocation9], 1
    %2026 = vsyncpa %s2025, 1
    %2027 = vsyncpa [#allocation12], 1
    %s2028 = scalar_lea.sflag [#allocation12], 1
    %2029 = vsyncpa %s2028, 1
    %2030 = vsyncpa [#allocation15], 1
    %s2031 = scalar_lea.sflag [#allocation15], 1
    %2032 = vsyncpa %s2031, 1
    %2033 = vsyncpa [#allocation4], 1
    %s2034 = scalar_lea.sflag [#allocation4], 1
    %2035 = vsyncpa %s2034, 1

</llo_original>
